<compile_context>
chip_gen: v5e
topology: v5e:2x2
jax: 0.10.0
libtpu: 0.0.40
codegen_flags: <defaults>
</compile_context>

<pallas_src>
import numpy as np
import jax
import jax.numpy as jnp
from jax.experimental import pallas as pl
from jax.experimental.pallas import tpu as pltpu


# ----------------------------------------------------------------------------
# One VGG block, fully in VMEM:
#   zero-pad (halo strips only) -> 9 shifted accumulating MXU matmuls
#   -> 2x2 max-pool -> bias -> ReLU
# ----------------------------------------------------------------------------
def _conv3x3_relu_pool(x, pad_ref, w_ref, b_row, B, H, W, Cin, Cout):
    """x: (B, H, W, Cin) f32 value; pad_ref: VMEM (B, H+2, W+2, Cin) f32 scratch;
    w_ref: (9*Cin, Cout) bf16 ref, tap-major rows (dy, dx, cin) == row-major
    reshape of an HWIO (3,3,Cin,Cout) kernel; b_row: (1, Cout) f32.
    Returns (B, H//2, W//2, Cout) f32."""
    # --- zero only the halo strips; interior is fully overwritten below.
    pad_ref[:, 0:1, :, :]           = jnp.zeros((B, 1, W + 2, Cin), jnp.float32)
    pad_ref[:, H + 1:H + 2, :, :]   = jnp.zeros((B, 1, W + 2, Cin), jnp.float32)
    pad_ref[:, :, 0:1, :]           = jnp.zeros((B, H + 2, 1, Cin), jnp.float32)
    pad_ref[:, :, W + 1:W + 2, :]   = jnp.zeros((B, H + 2, 1, Cin), jnp.float32)
    pad_ref[:, 1:H + 1, 1:W + 1, :] = x

    # --- conv as 9 shifted, accumulating MXU matmuls (K = Cin each); operands
    # in bf16, accumulation in f32.  No im2col patch buffer, no concatenate.
    M = B * H * W
    acc = None
    for dy in range(3):
        for dx in range(3):
            t = dy * 3 + dx
            slab = pad_ref[:, dy:dy + H, dx:dx + W, :]           # (B,H,W,Cin) window load
            slab = slab.reshape(M, Cin).astype(jnp.bfloat16)     # (M, Cin)
            w_tap = w_ref[t * Cin:(t + 1) * Cin, :]              # (Cin, Cout) bf16
            part = jnp.dot(slab, w_tap, preferred_element_type=jnp.float32)
            acc = part if acc is None else acc + part            # (M, Cout) f32

    # --- 2x2 max-pool FIRST, then bias + ReLU (== pool(relu(conv + b)) since
    # bias is a per-channel constant and ReLU is monotone).
    y = acc.reshape(B * (H // 2), 2, W // 2, 2, Cout)
    y = jnp.max(y, axis=(1, 3))                                  # (B*H/2, W/2, Cout)
    y = jnp.maximum(y + b_row, 0.0)                              # f32 bias + ReLU
    return y.reshape(B, H // 2, W // 2, Cout)


# ----------------------------------------------------------------------------
# Fused features[:-3] kernel: grid over batch blocks, b_blk images per step.
# ----------------------------------------------------------------------------
def _vgg_features_kernel(x_ref, w1_ref, b1_ref, w2_ref, b2_ref, o_ref,
                         pad1_ref, pad2_ref):
    # x_ref : (b_blk, H, W, Cin) f32       (NHWC slab of the batch)
    # w1_ref: (9*Cin, C1) bf16   b1_ref: (1, C1) f32
    # w2_ref: (9*C1,  C2) bf16   b2_ref: (1, C2) f32
    # o_ref : (b_blk, H//4, (W//4)*C2) f32 (lane-dense output layout)
    B, H, W, Cin = x_ref.shape
    C1 = w1_ref.shape[1]
    C2 = w2_ref.shape[1]

    h1 = _conv3x3_relu_pool(x_ref[...], pad1_ref, w1_ref, b1_ref[...],
                            B, H, W, Cin, C1)                    # (B, H/2, W/2, C1)
    h2 = _conv3x3_relu_pool(h1, pad2_ref, w2_ref, b2_ref[...],
                            B, H // 2, W // 2, C1, C2)           # (B, H/4, W/4, C2)

    # Lane-dense store: merge (W/4, C2) onto lanes so the output DMA is a
    # dense, unmasked store stream (biggest single measured lever).
    o_ref[...] = h2.reshape(B, H // 4, (W // 4) * C2).astype(o_ref.dtype)


def vgg_features_nhwc(x_nhwc, params):
    """features[:-3] on an NHWC input, as one fused pallas_call."""
    w1, b1, w2, b2 = params
    n, h, w, cin = x_nhwc.shape
    c1 = w1.shape[-1]
    c2 = w2.shape[-1]
    assert h % 4 == 0 and w % 4 == 0, "two 2x2 pools need H, W divisible by 4"
    ho, wo = h // 4, w // 4

    # Batch blocking: fewest grid steps that still leaves >= 2 steps so the
    # "parallel" batch axis can be split across the two v7x TensorCores
    # (on v5e/v6e the grid is just a short serial loop).  With batch=2 this
    # is one image per step; at larger batches it packs n/2 images into each
    # step's matmuls (M = b_blk*H*W) to amortize the ~0.35us/step overhead.
    n_steps = min(n, 2)
    while n % n_steps:
        n_steps -= 1
    b_blk = n // n_steps

    # Weight prep (layout plumbing, once, in the wrapper): HWIO -> tap-major
    # (9*Cin, Cout) rows and bf16 for the MXU.  Biases stay f32 (VPU path).
    w1f = w1.reshape(9 * cin, c1).astype(jnp.bfloat16)
    w2f = w2.reshape(9 * c1, c2).astype(jnp.bfloat16)
    b1f = b1.reshape(1, c1).astype(jnp.float32)
    b2f = b2.reshape(1, c2).astype(jnp.float32)

    # TODO(synk): at real VGG weight sizes, single-buffer the constant-index
    # weight specs (pipeline_mode=pl.Buffered(1)) or copy them once into a
    # persistent VMEM scratch so they don't cost 2x VMEM on v7x.
    out_flat = pl.pallas_call(
        _vgg_features_kernel,
        out_shape=jax.ShapeDtypeStruct((n, ho, wo * c2), jnp.float32),
        grid=(n_steps,),
        in_specs=[
            pl.BlockSpec((b_blk, h, w, cin), lambda i: (i, 0, 0, 0)),
            # Weights / biases: full blocks, constant index -> stay resident
            # in VMEM across the whole grid (no per-step re-DMA).
            pl.BlockSpec((9 * cin, c1), lambda i: (0, 0)),
            pl.BlockSpec((1, c1), lambda i: (0, 0)),
            pl.BlockSpec((9 * c1, c2), lambda i: (0, 0)),
            pl.BlockSpec((1, c2), lambda i: (0, 0)),
        ],
        # Lane-dense output block: trailing dim is wo*c2 (a large multiple of
        # 128 at real VGG sizes) instead of a 16-wide channel dim.
        out_specs=pl.BlockSpec((b_blk, ho, wo * c2), lambda i: (i, 0, 0)),
        scratch_shapes=[
            pltpu.VMEM((b_blk, h + 2, w + 2, cin), jnp.float32),            # pad buf 1
            pltpu.VMEM((b_blk, h // 2 + 2, w // 2 + 2, c1), jnp.float32),   # pad buf 2
        ],
        compiler_params=pltpu.CompilerParams(
            dimension_semantics=("parallel",)),       # megacore split on v7x
    )(x_nhwc, w1f, b1f, w2f, b2f)

    return out_flat.reshape(n, ho, wo, c2)


# ----------------------------------------------------------------------------
# Module forward: NCHW in, NCHW out (PyTorch convention).
# ----------------------------------------------------------------------------
@jax.jit
def vgg_conv_forward(x_nchw, params):
    x = jnp.transpose(x_nchw, (0, 2, 3, 1))   # NCHW -> NHWC
    y = vgg_features_nhwc(x, params)
    return jnp.transpose(y, (0, 3, 1, 2))     # NHWC -> NCHW


# ----------------------------------------------------------------------------
# Pure-JAX reference (module semantics: conv -> bias+ReLU -> pool).
# With bf16_operands=True the conv operands are rounded to bf16 to model the
# kernel's MXU input precision (accumulation stays f32 in both), allowing a
# tight numerical comparison.
# ----------------------------------------------------------------------------
def _ref_forward(x_nchw, params, *, bf16_operands):
    w1, b1, w2, b2 = params
    x = jnp.transpose(x_nchw, (0, 2, 3, 1))

    def q(t):
        return t.astype(jnp.bfloat16).astype(jnp.float32) if bf16_operands else t

    def block(x, w, b):
        y = jax.lax.conv_general_dilated(
            q(x), q(w), window_strides=(1, 1), padding="SAME",
            dimension_numbers=("NHWC", "HWIO", "NHWC"),
            precision=jax.lax.Precision.HIGHEST)
        y = jax.nn.relu(y + b)
        return jax.lax.reduce_window(y, -jnp.inf, jax.lax.max,
                                     (1, 2, 2, 1), (1, 2, 2, 1), "VALID")

    x = block(block(x, w1, b1), w2, b2)
    return jnp.transpose(x, (0, 3, 1, 2))


if __name__ == "__main__":
    key = jax.random.PRNGKey(0)
    kx, k1, k2, k3, k4 = jax.random.split(key, 5)

    # NCHW input, like PyTorch: (batch=2, channels=4, 16, 16).
    x = jax.random.normal(kx, (2, 4, 16, 16), jnp.float32)

    # Synthetic deterministic VGG-like weights (HWIO layout for NHWC convs).
    w1 = jax.random.normal(k1, (3, 3, 4, 8), jnp.float32) * 0.1
    b1 = jax.random.normal(k2, (8,), jnp.float32) * 0.1
    w2 = jax.random.normal(k3, (3, 3, 8, 16), jnp.float32) * 0.1
    b2 = jax.random.normal(k4, (16,), jnp.float32) * 0.1
    params = (w1, b1, w2, b2)

    out = jax.block_until_ready(vgg_conv_forward(x, params))
    assert out.shape == (2, 16, 4, 4), out.shape

    # Tight check against a reference with the same bf16 MXU operand
    # quantization (f32 accumulation in both).
    ref_bf16 = jax.block_until_ready(_ref_forward(x, params, bf16_operands=True))
    np.testing.assert_allclose(np.asarray(out), np.asarray(ref_bf16),
                               rtol=1e-2, atol=1e-2)

    # Looser sanity check against the pure-f32 module semantics (bounds the
    # bf16 operand quantization error).
    ref_f32 = jax.block_until_ready(_ref_forward(x, params, bf16_operands=False))
    np.testing.assert_allclose(np.asarray(out), np.asarray(ref_f32),
                               rtol=5e-2, atol=5e-2)

    print("KERNEL_OK")
</pallas_src>

<mosaic_0001>
module attributes {stable_mosaic.version = 11 : i64} {
  func.func @_vgg_features_kernel(%arg0: i32, %arg1: memref<1x16x16x4xf32, #tpu.memory_space<vmem>>, %arg2: memref<36x8xbf16, #tpu.memory_space<vmem>>, %arg3: memref<1x8xf32, #tpu.memory_space<vmem>>, %arg4: memref<72x16xbf16, #tpu.memory_space<vmem>>, %arg5: memref<1x16xf32, #tpu.memory_space<vmem>>, %arg6: memref<1x4x64xf32, #tpu.memory_space<vmem>>, %arg7: memref<1x18x18x4xf32, #tpu.memory_space<vmem>>, %arg8: memref<1x10x10x8xf32, #tpu.memory_space<vmem>>) attributes {dimension_semantics = [#tpu.dimension_semantics<parallel>], iteration_bounds = array<i64: 2>, scalar_prefetch = 0 : i64, scratch_operands = 2 : i64, tpu.core_type = #tpu.core_type<tc>, window_params = [{transform_indices = @transform_0, window_bounds = array<i64: 1, 16, 16, 4>}, {pipeline_mode = #tpu.pipeline_mode<synchronous>, transform_indices = @transform_1, window_bounds = array<i64: 36, 8>}, {pipeline_mode = #tpu.pipeline_mode<synchronous>, transform_indices = @transform_2, window_bounds = array<i64: 1, 8>}, {pipeline_mode = #tpu.pipeline_mode<synchronous>, transform_indices = @transform_3, window_bounds = array<i64: 72, 16>}, {pipeline_mode = #tpu.pipeline_mode<synchronous>, transform_indices = @transform_4, window_bounds = array<i64: 1, 16>}, {transform_indices = @transform_5, window_bounds = array<i64: 1, 4, 64>}]} {
    %c0 = arith.constant 0 : index
    %c0_0 = arith.constant 0 : index
    %c0_1 = arith.constant 0 : index
    %c0_2 = arith.constant 0 : index
    %0 = vector.load %arg1[%c0, %c0_0, %c0_1, %c0_2] : memref<1x16x16x4xf32, #tpu.memory_space<vmem>>, vector<1x16x16x4xf32>
    %c0_3 = arith.constant 0 : index
    %c0_4 = arith.constant 0 : index
    %1 = vector.load %arg3[%c0_3, %c0_4] : memref<1x8xf32, #tpu.memory_space<vmem>>, vector<1x8xf32>
    %cst = arith.constant 0.000000e+00 : f32
    %2 = vector.broadcast %cst : f32 to vector<1x1x18x4xf32>
    %c0_5 = arith.constant 0 : index
    %c0_6 = arith.constant 0 : index
    %c0_7 = arith.constant 0 : index
    %c0_8 = arith.constant 0 : index
    %3 = vector.load %arg7[%c0_5, %c0_6, %c0_7, %c0_8] : memref<1x18x18x4xf32, #tpu.memory_space<vmem>>, vector<1x1x18x4xf32>
    tpu.vector_store %arg7[%c0_5, %c0_6, %c0_7, %c0_8], %2 {strides = array<i32>} : memref<1x18x18x4xf32, #tpu.memory_space<vmem>>, vector<1x1x18x4xf32>,
    %cst_9 = arith.constant 0.000000e+00 : f32
    %4 = vector.broadcast %cst_9 : f32 to vector<1x1x18x4xf32>
    %c0_10 = arith.constant 0 : index
    %c17 = arith.constant 17 : index
    %c0_11 = arith.constant 0 : index
    %c0_12 = arith.constant 0 : index
    %5 = vector.load %arg7[%c0_10, %c17, %c0_11, %c0_12] : memref<1x18x18x4xf32, #tpu.memory_space<vmem>>, vector<1x1x18x4xf32>
    tpu.vector_store %arg7[%c0_10, %c17, %c0_11, %c0_12], %4 {strides = array<i32>} : memref<1x18x18x4xf32, #tpu.memory_space<vmem>>, vector<1x1x18x4xf32>,
    %cst_13 = arith.constant 0.000000e+00 : f32
    %6 = vector.broadcast %cst_13 : f32 to vector<1x18x1x4xf32>
    %c0_14 = arith.constant 0 : index
    %c0_15 = arith.constant 0 : index
    %c0_16 = arith.constant 0 : index
    %c0_17 = arith.constant 0 : index
    %7 = vector.load %arg7[%c0_14, %c0_15, %c0_16, %c0_17] : memref<1x18x18x4xf32, #tpu.memory_space<vmem>>, vector<1x18x1x4xf32>
    tpu.vector_store %arg7[%c0_14, %c0_15, %c0_16, %c0_17], %6 {strides = array<i32>} : memref<1x18x18x4xf32, #tpu.memory_space<vmem>>, vector<1x18x1x4xf32>,
    %cst_18 = arith.constant 0.000000e+00 : f32
    %8 = vector.broadcast %cst_18 : f32 to vector<1x18x1x4xf32>
    %c0_19 = arith.constant 0 : index
    %c0_20 = arith.constant 0 : index
    %c17_21 = arith.constant 17 : index
    %c0_22 = arith.constant 0 : index
    %9 = vector.load %arg7[%c0_19, %c0_20, %c17_21, %c0_22] : memref<1x18x18x4xf32, #tpu.memory_space<vmem>>, vector<1x18x1x4xf32>
    tpu.vector_store %arg7[%c0_19, %c0_20, %c17_21, %c0_22], %8 {strides = array<i32>} : memref<1x18x18x4xf32, #tpu.memory_space<vmem>>, vector<1x18x1x4xf32>,
    %c0_23 = arith.constant 0 : index
    %c1 = arith.constant 1 : index
    %c1_24 = arith.constant 1 : index
    %c0_25 = arith.constant 0 : index
    %10 = vector.load %arg7[%c0_23, %c1, %c1_24, %c0_25] : memref<1x18x18x4xf32, #tpu.memory_space<vmem>>, vector<1x16x16x4xf32>
    tpu.vector_store %arg7[%c0_23, %c1, %c1_24, %c0_25], %0 {strides = array<i32>} : memref<1x18x18x4xf32, #tpu.memory_space<vmem>>, vector<1x16x16x4xf32>,
    %c0_26 = arith.constant 0 : index
    %c0_27 = arith.constant 0 : index
    %c0_28 = arith.constant 0 : index
    %c0_29 = arith.constant 0 : index
    %11 = vector.load %arg7[%c0_26, %c0_27, %c0_28, %c0_29] : memref<1x18x18x4xf32, #tpu.memory_space<vmem>>, vector<1x16x16x4xf32>
    %12 = vector.shape_cast %11 : vector<1x16x16x4xf32> to vector<256x4xf32>
    %13 = arith.truncf %12 : vector<256x4xf32> to vector<256x4xbf16>
    %c0_30 = arith.constant 0 : index
    %c0_31 = arith.constant 0 : index
    %14 = vector.load %arg2[%c0_30, %c0_31] : memref<36x8xbf16, #tpu.memory_space<vmem>>, vector<4x8xbf16>
    %cst_32 = arith.constant dense<0.000000e+00> : vector<256x8xf32>
    %15 = tpu.matmul %13, %14, %cst_32 {dimension_numbers = #tpu.dot_dimension_numbers<[1], [0], [0], [1], [0, 0, 1, 1], [], []>} : vector<256x4xbf16>, vector<4x8xbf16>, vector<256x8xf32> -> vector<256x8xf32>
    %c0_33 = arith.constant 0 : index
    %c0_34 = arith.constant 0 : index
    %c1_35 = arith.constant 1 : index
    %c0_36 = arith.constant 0 : index
    %16 = vector.load %arg7[%c0_33, %c0_34, %c1_35, %c0_36] : memref<1x18x18x4xf32, #tpu.memory_space<vmem>>, vector<1x16x16x4xf32>
    %17 = vector.shape_cast %16 : vector<1x16x16x4xf32> to vector<256x4xf32>
    %18 = arith.truncf %17 : vector<256x4xf32> to vector<256x4xbf16>
    %c4 = arith.constant 4 : index
    %c0_37 = arith.constant 0 : index
    %19 = vector.load %arg2[%c4, %c0_37] : memref<36x8xbf16, #tpu.memory_space<vmem>>, vector<4x8xbf16>
    %cst_38 = arith.constant dense<0.000000e+00> : vector<256x8xf32>
    %20 = tpu.matmul %18, %19, %cst_38 {dimension_numbers = #tpu.dot_dimension_numbers<[1], [0], [0], [1], [0, 0, 1, 1], [], []>} : vector<256x4xbf16>, vector<4x8xbf16>, vector<256x8xf32> -> vector<256x8xf32>
    %21 = arith.addf %15, %20 : vector<256x8xf32>
    %c0_39 = arith.constant 0 : index
    %c0_40 = arith.constant 0 : index
    %c2 = arith.constant 2 : index
    %c0_41 = arith.constant 0 : index
    %22 = vector.load %arg7[%c0_39, %c0_40, %c2, %c0_41] : memref<1x18x18x4xf32, #tpu.memory_space<vmem>>, vector<1x16x16x4xf32>
    %23 = vector.shape_cast %22 : vector<1x16x16x4xf32> to vector<256x4xf32>
    %24 = arith.truncf %23 : vector<256x4xf32> to vector<256x4xbf16>
    %c8 = arith.constant 8 : index
    %c0_42 = arith.constant 0 : index
    %25 = vector.load %arg2[%c8, %c0_42] : memref<36x8xbf16, #tpu.memory_space<vmem>>, vector<4x8xbf16>
    %cst_43 = arith.constant dense<0.000000e+00> : vector<256x8xf32>
    %26 = tpu.matmul %24, %25, %cst_43 {dimension_numbers = #tpu.dot_dimension_numbers<[1], [0], [0], [1], [0, 0, 1, 1], [], []>} : vector<256x4xbf16>, vector<4x8xbf16>, vector<256x8xf32> -> vector<256x8xf32>
    %27 = arith.addf %21, %26 : vector<256x8xf32>
    %c0_44 = arith.constant 0 : index
    %c1_45 = arith.constant 1 : index
    %c0_46 = arith.constant 0 : index
    %c0_47 = arith.constant 0 : index
    %28 = vector.load %arg7[%c0_44, %c1_45, %c0_46, %c0_47] : memref<1x18x18x4xf32, #tpu.memory_space<vmem>>, vector<1x16x16x4xf32>
    %29 = vector.shape_cast %28 : vector<1x16x16x4xf32> to vector<256x4xf32>
    %30 = arith.truncf %29 : vector<256x4xf32> to vector<256x4xbf16>
    %c12 = arith.constant 12 : index
    %c0_48 = arith.constant 0 : index
    %31 = vector.load %arg2[%c12, %c0_48] : memref<36x8xbf16, #tpu.memory_space<vmem>>, vector<4x8xbf16>
    %cst_49 = arith.constant dense<0.000000e+00> : vector<256x8xf32>
    %32 = tpu.matmul %30, %31, %cst_49 {dimension_numbers = #tpu.dot_dimension_numbers<[1], [0], [0], [1], [0, 0, 1, 1], [], []>} : vector<256x4xbf16>, vector<4x8xbf16>, vector<256x8xf32> -> vector<256x8xf32>
    %33 = arith.addf %27, %32 : vector<256x8xf32>
    %c0_50 = arith.constant 0 : index
    %c1_51 = arith.constant 1 : index
    %c1_52 = arith.constant 1 : index
    %c0_53 = arith.constant 0 : index
    %34 = vector.load %arg7[%c0_50, %c1_51, %c1_52, %c0_53] : memref<1x18x18x4xf32, #tpu.memory_space<vmem>>, vector<1x16x16x4xf32>
    %35 = vector.shape_cast %34 : vector<1x16x16x4xf32> to vector<256x4xf32>
    %36 = arith.truncf %35 : vector<256x4xf32> to vector<256x4xbf16>
    %c16 = arith.constant 16 : index
    %c0_54 = arith.constant 0 : index
    %37 = vector.load %arg2[%c16, %c0_54] : memref<36x8xbf16, #tpu.memory_space<vmem>>, vector<4x8xbf16>
    %cst_55 = arith.constant dense<0.000000e+00> : vector<256x8xf32>
    %38 = tpu.matmul %36, %37, %cst_55 {dimension_numbers = #tpu.dot_dimension_numbers<[1], [0], [0], [1], [0, 0, 1, 1], [], []>} : vector<256x4xbf16>, vector<4x8xbf16>, vector<256x8xf32> -> vector<256x8xf32>
    %39 = arith.addf %33, %38 : vector<256x8xf32>
    %c0_56 = arith.constant 0 : index
    %c1_57 = arith.constant 1 : index
    %c2_58 = arith.constant 2 : index
    %c0_59 = arith.constant 0 : index
    %40 = vector.load %arg7[%c0_56, %c1_57, %c2_58, %c0_59] : memref<1x18x18x4xf32, #tpu.memory_space<vmem>>, vector<1x16x16x4xf32>
    %41 = vector.shape_cast %40 : vector<1x16x16x4xf32> to vector<256x4xf32>
    %42 = arith.truncf %41 : vector<256x4xf32> to vector<256x4xbf16>
    %c20 = arith.constant 20 : index
    %c0_60 = arith.constant 0 : index
    %43 = vector.load %arg2[%c20, %c0_60] : memref<36x8xbf16, #tpu.memory_space<vmem>>, vector<4x8xbf16>
    %cst_61 = arith.constant dense<0.000000e+00> : vector<256x8xf32>
    %44 = tpu.matmul %42, %43, %cst_61 {dimension_numbers = #tpu.dot_dimension_numbers<[1], [0], [0], [1], [0, 0, 1, 1], [], []>} : vector<256x4xbf16>, vector<4x8xbf16>, vector<256x8xf32> -> vector<256x8xf32>
    %45 = arith.addf %39, %44 : vector<256x8xf32>
    %c0_62 = arith.constant 0 : index
    %c2_63 = arith.constant 2 : index
    %c0_64 = arith.constant 0 : index
    %c0_65 = arith.constant 0 : index
    %46 = vector.load %arg7[%c0_62, %c2_63, %c0_64, %c0_65] : memref<1x18x18x4xf32, #tpu.memory_space<vmem>>, vector<1x16x16x4xf32>
    %47 = vector.shape_cast %46 : vector<1x16x16x4xf32> to vector<256x4xf32>
    %48 = arith.truncf %47 : vector<256x4xf32> to vector<256x4xbf16>
    %c24 = arith.constant 24 : index
    %c0_66 = arith.constant 0 : index
    %49 = vector.load %arg2[%c24, %c0_66] : memref<36x8xbf16, #tpu.memory_space<vmem>>, vector<4x8xbf16>
    %cst_67 = arith.constant dense<0.000000e+00> : vector<256x8xf32>
    %50 = tpu.matmul %48, %49, %cst_67 {dimension_numbers = #tpu.dot_dimension_numbers<[1], [0], [0], [1], [0, 0, 1, 1], [], []>} : vector<256x4xbf16>, vector<4x8xbf16>, vector<256x8xf32> -> vector<256x8xf32>
    %51 = arith.addf %45, %50 : vector<256x8xf32>
    %c0_68 = arith.constant 0 : index
    %c2_69 = arith.constant 2 : index
    %c1_70 = arith.constant 1 : index
    %c0_71 = arith.constant 0 : index
    %52 = vector.load %arg7[%c0_68, %c2_69, %c1_70, %c0_71] : memref<1x18x18x4xf32, #tpu.memory_space<vmem>>, vector<1x16x16x4xf32>
    %53 = vector.shape_cast %52 : vector<1x16x16x4xf32> to vector<256x4xf32>
    %54 = arith.truncf %53 : vector<256x4xf32> to vector<256x4xbf16>
    %c28 = arith.constant 28 : index
    %c0_72 = arith.constant 0 : index
    %55 = vector.load %arg2[%c28, %c0_72] : memref<36x8xbf16, #tpu.memory_space<vmem>>, vector<4x8xbf16>
    %cst_73 = arith.constant dense<0.000000e+00> : vector<256x8xf32>
    %56 = tpu.matmul %54, %55, %cst_73 {dimension_numbers = #tpu.dot_dimension_numbers<[1], [0], [0], [1], [0, 0, 1, 1], [], []>} : vector<256x4xbf16>, vector<4x8xbf16>, vector<256x8xf32> -> vector<256x8xf32>
    %57 = arith.addf %51, %56 : vector<256x8xf32>
    %c0_74 = arith.constant 0 : index
    %c2_75 = arith.constant 2 : index
    %c2_76 = arith.constant 2 : index
    %c0_77 = arith.constant 0 : index
    %58 = vector.load %arg7[%c0_74, %c2_75, %c2_76, %c0_77] : memref<1x18x18x4xf32, #tpu.memory_space<vmem>>, vector<1x16x16x4xf32>
    %59 = vector.shape_cast %58 : vector<1x16x16x4xf32> to vector<256x4xf32>
    %60 = arith.truncf %59 : vector<256x4xf32> to vector<256x4xbf16>
    %c32 = arith.constant 32 : index
    %c0_78 = arith.constant 0 : index
    %61 = vector.load %arg2[%c32, %c0_78] : memref<36x8xbf16, #tpu.memory_space<vmem>>, vector<4x8xbf16>
    %cst_79 = arith.constant dense<0.000000e+00> : vector<256x8xf32>
    %62 = tpu.matmul %60, %61, %cst_79 {dimension_numbers = #tpu.dot_dimension_numbers<[1], [0], [0], [1], [0, 0, 1, 1], [], []>} : vector<256x4xbf16>, vector<4x8xbf16>, vector<256x8xf32> -> vector<256x8xf32>
    %63 = arith.addf %57, %62 : vector<256x8xf32>
    %64 = vector.shape_cast %63 : vector<256x8xf32> to vector<8x2x8x2x8xf32>
    %cst_80 = arith.constant dense<0xFF800000> : vector<8x8x8xf32>
    %65 = vector.multi_reduction <maximumf>, %64, %cst_80 [1, 3] : vector<8x2x8x2x8xf32> to vector<8x8x8xf32>
    %66 = vector.shape_cast %1 : vector<1x8xf32> to vector<1x1x8xf32>
    %67 = vector.broadcast %66 : vector<1x1x8xf32> to vector<8x8x8xf32>
    %68 = arith.addf %65, %67 : vector<8x8x8xf32>
    %cst_81 = arith.constant 0.000000e+00 : f32
    %69 = vector.broadcast %cst_81 : f32 to vector<8x8x8xf32>
    %70 = arith.maximumf %68, %69 : vector<8x8x8xf32>
    %71 = vector.shape_cast %70 : vector<8x8x8xf32> to vector<1x8x8x8xf32>
    %c0_82 = arith.constant 0 : index
    %c0_83 = arith.constant 0 : index
    %72 = vector.load %arg5[%c0_82, %c0_83] : memref<1x16xf32, #tpu.memory_space<vmem>>, vector<1x16xf32>
    %cst_84 = arith.constant 0.000000e+00 : f32
    %73 = vector.broadcast %cst_84 : f32 to vector<1x1x10x8xf32>
    %c0_85 = arith.constant 0 : index
    %c0_86 = arith.constant 0 : index
    %c0_87 = arith.constant 0 : index
    %c0_88 = arith.constant 0 : index
    %74 = vector.load %arg8[%c0_85, %c0_86, %c0_87, %c0_88] : memref<1x10x10x8xf32, #tpu.memory_space<vmem>>, vector<1x1x10x8xf32>
    tpu.vector_store %arg8[%c0_85, %c0_86, %c0_87, %c0_88], %73 {strides = array<i32>} : memref<1x10x10x8xf32, #tpu.memory_space<vmem>>, vector<1x1x10x8xf32>,
    %cst_89 = arith.constant 0.000000e+00 : f32
    %75 = vector.broadcast %cst_89 : f32 to vector<1x1x10x8xf32>
    %c0_90 = arith.constant 0 : index
    %c9 = arith.constant 9 : index
    %c0_91 = arith.constant 0 : index
    %c0_92 = arith.constant 0 : index
    %76 = vector.load %arg8[%c0_90, %c9, %c0_91, %c0_92] : memref<1x10x10x8xf32, #tpu.memory_space<vmem>>, vector<1x1x10x8xf32>
    tpu.vector_store %arg8[%c0_90, %c9, %c0_91, %c0_92], %75 {strides = array<i32>} : memref<1x10x10x8xf32, #tpu.memory_space<vmem>>, vector<1x1x10x8xf32>,
    %cst_93 = arith.constant 0.000000e+00 : f32
    %77 = vector.broadcast %cst_93 : f32 to vector<1x10x1x8xf32>
    %c0_94 = arith.constant 0 : index
    %c0_95 = arith.constant 0 : index
    %c0_96 = arith.constant 0 : index
    %c0_97 = arith.constant 0 : index
    %78 = vector.load %arg8[%c0_94, %c0_95, %c0_96, %c0_97] : memref<1x10x10x8xf32, #tpu.memory_space<vmem>>, vector<1x10x1x8xf32>
    tpu.vector_store %arg8[%c0_94, %c0_95, %c0_96, %c0_97], %77 {strides = array<i32>} : memref<1x10x10x8xf32, #tpu.memory_space<vmem>>, vector<1x10x1x8xf32>,
    %cst_98 = arith.constant 0.000000e+00 : f32
    %79 = vector.broadcast %cst_98 : f32 to vector<1x10x1x8xf32>
    %c0_99 = arith.constant 0 : index
    %c0_100 = arith.constant 0 : index
    %c9_101 = arith.constant 9 : index
    %c0_102 = arith.constant 0 : index
    %80 = vector.load %arg8[%c0_99, %c0_100, %c9_101, %c0_102] : memref<1x10x10x8xf32, #tpu.memory_space<vmem>>, vector<1x10x1x8xf32>
    tpu.vector_store %arg8[%c0_99, %c0_100, %c9_101, %c0_102], %79 {strides = array<i32>} : memref<1x10x10x8xf32, #tpu.memory_space<vmem>>, vector<1x10x1x8xf32>,
    %c0_103 = arith.constant 0 : index
    %c1_104 = arith.constant 1 : index
    %c1_105 = arith.constant 1 : index
    %c0_106 = arith.constant 0 : index
    %81 = vector.load %arg8[%c0_103, %c1_104, %c1_105, %c0_106] : memref<1x10x10x8xf32, #tpu.memory_space<vmem>>, vector<1x8x8x8xf32>
    tpu.vector_store %arg8[%c0_103, %c1_104, %c1_105, %c0_106], %71 {strides = array<i32>} : memref<1x10x10x8xf32, #tpu.memory_space<vmem>>, vector<1x8x8x8xf32>,
    %c0_107 = arith.constant 0 : index
    %c0_108 = arith.constant 0 : index
    %c0_109 = arith.constant 0 : index
    %c0_110 = arith.constant 0 : index
    %82 = vector.load %arg8[%c0_107, %c0_108, %c0_109, %c0_110] : memref<1x10x10x8xf32, #tpu.memory_space<vmem>>, vector<1x8x8x8xf32>
    %83 = vector.shape_cast %82 : vector<1x8x8x8xf32> to vector<64x8xf32>
    %84 = arith.truncf %83 : vector<64x8xf32> to vector<64x8xbf16>
    %c0_111 = arith.constant 0 : index
    %c0_112 = arith.constant 0 : index
    %85 = vector.load %arg4[%c0_111, %c0_112] : memref<72x16xbf16, #tpu.memory_space<vmem>>, vector<8x16xbf16>
    %cst_113 = arith.constant dense<0.000000e+00> : vector<64x16xf32>
    %86 = tpu.matmul %84, %85, %cst_113 {dimension_numbers = #tpu.dot_dimension_numbers<[1], [0], [0], [1], [0, 0, 1, 1], [], []>} : vector<64x8xbf16>, vector<8x16xbf16>, vector<64x16xf32> -> vector<64x16xf32>
    %c0_114 = arith.constant 0 : index
    %c0_115 = arith.constant 0 : index
    %c1_116 = arith.constant 1 : index
    %c0_117 = arith.constant 0 : index
    %87 = vector.load %arg8[%c0_114, %c0_115, %c1_116, %c0_117] : memref<1x10x10x8xf32, #tpu.memory_space<vmem>>, vector<1x8x8x8xf32>
    %88 = vector.shape_cast %87 : vector<1x8x8x8xf32> to vector<64x8xf32>
    %89 = arith.truncf %88 : vector<64x8xf32> to vector<64x8xbf16>
    %c8_118 = arith.constant 8 : index
    %c0_119 = arith.constant 0 : index
    %90 = vector.load %arg4[%c8_118, %c0_119] : memref<72x16xbf16, #tpu.memory_space<vmem>>, vector<8x16xbf16>
    %cst_120 = arith.constant dense<0.000000e+00> : vector<64x16xf32>
    %91 = tpu.matmul %89, %90, %cst_120 {dimension_numbers = #tpu.dot_dimension_numbers<[1], [0], [0], [1], [0, 0, 1, 1], [], []>} : vector<64x8xbf16>, vector<8x16xbf16>, vector<64x16xf32> -> vector<64x16xf32>
    %92 = arith.addf %86, %91 : vector<64x16xf32>
    %c0_121 = arith.constant 0 : index
    %c0_122 = arith.constant 0 : index
    %c2_123 = arith.constant 2 : index
    %c0_124 = arith.constant 0 : index
    %93 = vector.load %arg8[%c0_121, %c0_122, %c2_123, %c0_124] : memref<1x10x10x8xf32, #tpu.memory_space<vmem>>, vector<1x8x8x8xf32>
    %94 = vector.shape_cast %93 : vector<1x8x8x8xf32> to vector<64x8xf32>
    %95 = arith.truncf %94 : vector<64x8xf32> to vector<64x8xbf16>
    %c16_125 = arith.constant 16 : index
    %c0_126 = arith.constant 0 : index
    %96 = vector.load %arg4[%c16_125, %c0_126] : memref<72x16xbf16, #tpu.memory_space<vmem>>, vector<8x16xbf16>
    %cst_127 = arith.constant dense<0.000000e+00> : vector<64x16xf32>
    %97 = tpu.matmul %95, %96, %cst_127 {dimension_numbers = #tpu.dot_dimension_numbers<[1], [0], [0], [1], [0, 0, 1, 1], [], []>} : vector<64x8xbf16>, vector<8x16xbf16>, vector<64x16xf32> -> vector<64x16xf32>
    %98 = arith.addf %92, %97 : vector<64x16xf32>
    %c0_128 = arith.constant 0 : index
    %c1_129 = arith.constant 1 : index
    %c0_130 = arith.constant 0 : index
    %c0_131 = arith.constant 0 : index
    %99 = vector.load %arg8[%c0_128, %c1_129, %c0_130, %c0_131] : memref<1x10x10x8xf32, #tpu.memory_space<vmem>>, vector<1x8x8x8xf32>
    %100 = vector.shape_cast %99 : vector<1x8x8x8xf32> to vector<64x8xf32>
    %101 = arith.truncf %100 : vector<64x8xf32> to vector<64x8xbf16>
    %c24_132 = arith.constant 24 : index
    %c0_133 = arith.constant 0 : index
    %102 = vector.load %arg4[%c24_132, %c0_133] : memref<72x16xbf16, #tpu.memory_space<vmem>>, vector<8x16xbf16>
    %cst_134 = arith.constant dense<0.000000e+00> : vector<64x16xf32>
    %103 = tpu.matmul %101, %102, %cst_134 {dimension_numbers = #tpu.dot_dimension_numbers<[1], [0], [0], [1], [0, 0, 1, 1], [], []>} : vector<64x8xbf16>, vector<8x16xbf16>, vector<64x16xf32> -> vector<64x16xf32>
    %104 = arith.addf %98, %103 : vector<64x16xf32>
    %c0_135 = arith.constant 0 : index
    %c1_136 = arith.constant 1 : index
    %c1_137 = arith.constant 1 : index
    %c0_138 = arith.constant 0 : index
    %105 = vector.load %arg8[%c0_135, %c1_136, %c1_137, %c0_138] : memref<1x10x10x8xf32, #tpu.memory_space<vmem>>, vector<1x8x8x8xf32>
    %106 = vector.shape_cast %105 : vector<1x8x8x8xf32> to vector<64x8xf32>
    %107 = arith.truncf %106 : vector<64x8xf32> to vector<64x8xbf16>
    %c32_139 = arith.constant 32 : index
    %c0_140 = arith.constant 0 : index
    %108 = vector.load %arg4[%c32_139, %c0_140] : memref<72x16xbf16, #tpu.memory_space<vmem>>, vector<8x16xbf16>
    %cst_141 = arith.constant dense<0.000000e+00> : vector<64x16xf32>
    %109 = tpu.matmul %107, %108, %cst_141 {dimension_numbers = #tpu.dot_dimension_numbers<[1], [0], [0], [1], [0, 0, 1, 1], [], []>} : vector<64x8xbf16>, vector<8x16xbf16>, vector<64x16xf32> -> vector<64x16xf32>
    %110 = arith.addf %104, %109 : vector<64x16xf32>
    %c0_142 = arith.constant 0 : index
    %c1_143 = arith.constant 1 : index
    %c2_144 = arith.constant 2 : index
    %c0_145 = arith.constant 0 : index
    %111 = vector.load %arg8[%c0_142, %c1_143, %c2_144, %c0_145] : memref<1x10x10x8xf32, #tpu.memory_space<vmem>>, vector<1x8x8x8xf32>
    %112 = vector.shape_cast %111 : vector<1x8x8x8xf32> to vector<64x8xf32>
    %113 = arith.truncf %112 : vector<64x8xf32> to vector<64x8xbf16>
    %c40 = arith.constant 40 : index
    %c0_146 = arith.constant 0 : index
    %114 = vector.load %arg4[%c40, %c0_146] : memref<72x16xbf16, #tpu.memory_space<vmem>>, vector<8x16xbf16>
    %cst_147 = arith.constant dense<0.000000e+00> : vector<64x16xf32>
    %115 = tpu.matmul %113, %114, %cst_147 {dimension_numbers = #tpu.dot_dimension_numbers<[1], [0], [0], [1], [0, 0, 1, 1], [], []>} : vector<64x8xbf16>, vector<8x16xbf16>, vector<64x16xf32> -> vector<64x16xf32>
    %116 = arith.addf %110, %115 : vector<64x16xf32>
    %c0_148 = arith.constant 0 : index
    %c2_149 = arith.constant 2 : index
    %c0_150 = arith.constant 0 : index
    %c0_151 = arith.constant 0 : index
    %117 = vector.load %arg8[%c0_148, %c2_149, %c0_150, %c0_151] : memref<1x10x10x8xf32, #tpu.memory_space<vmem>>, vector<1x8x8x8xf32>
    %118 = vector.shape_cast %117 : vector<1x8x8x8xf32> to vector<64x8xf32>
    %119 = arith.truncf %118 : vector<64x8xf32> to vector<64x8xbf16>
    %c48 = arith.constant 48 : index
    %c0_152 = arith.constant 0 : index
    %120 = vector.load %arg4[%c48, %c0_152] : memref<72x16xbf16, #tpu.memory_space<vmem>>, vector<8x16xbf16>
    %cst_153 = arith.constant dense<0.000000e+00> : vector<64x16xf32>
    %121 = tpu.matmul %119, %120, %cst_153 {dimension_numbers = #tpu.dot_dimension_numbers<[1], [0], [0], [1], [0, 0, 1, 1], [], []>} : vector<64x8xbf16>, vector<8x16xbf16>, vector<64x16xf32> -> vector<64x16xf32>
    %122 = arith.addf %116, %121 : vector<64x16xf32>
    %c0_154 = arith.constant 0 : index
    %c2_155 = arith.constant 2 : index
    %c1_156 = arith.constant 1 : index
    %c0_157 = arith.constant 0 : index
    %123 = vector.load %arg8[%c0_154, %c2_155, %c1_156, %c0_157] : memref<1x10x10x8xf32, #tpu.memory_space<vmem>>, vector<1x8x8x8xf32>
    %124 = vector.shape_cast %123 : vector<1x8x8x8xf32> to vector<64x8xf32>
    %125 = arith.truncf %124 : vector<64x8xf32> to vector<64x8xbf16>
    %c56 = arith.constant 56 : index
    %c0_158 = arith.constant 0 : index
    %126 = vector.load %arg4[%c56, %c0_158] : memref<72x16xbf16, #tpu.memory_space<vmem>>, vector<8x16xbf16>
    %cst_159 = arith.constant dense<0.000000e+00> : vector<64x16xf32>
    %127 = tpu.matmul %125, %126, %cst_159 {dimension_numbers = #tpu.dot_dimension_numbers<[1], [0], [0], [1], [0, 0, 1, 1], [], []>} : vector<64x8xbf16>, vector<8x16xbf16>, vector<64x16xf32> -> vector<64x16xf32>
    %128 = arith.addf %122, %127 : vector<64x16xf32>
    %c0_160 = arith.constant 0 : index
    %c2_161 = arith.constant 2 : index
    %c2_162 = arith.constant 2 : index
    %c0_163 = arith.constant 0 : index
    %129 = vector.load %arg8[%c0_160, %c2_161, %c2_162, %c0_163] : memref<1x10x10x8xf32, #tpu.memory_space<vmem>>, vector<1x8x8x8xf32>
    %130 = vector.shape_cast %129 : vector<1x8x8x8xf32> to vector<64x8xf32>
    %131 = arith.truncf %130 : vector<64x8xf32> to vector<64x8xbf16>
    %c64 = arith.constant 64 : index
    %c0_164 = arith.constant 0 : index
    %132 = vector.load %arg4[%c64, %c0_164] : memref<72x16xbf16, #tpu.memory_space<vmem>>, vector<8x16xbf16>
    %cst_165 = arith.constant dense<0.000000e+00> : vector<64x16xf32>
    %133 = tpu.matmul %131, %132, %cst_165 {dimension_numbers = #tpu.dot_dimension_numbers<[1], [0], [0], [1], [0, 0, 1, 1], [], []>} : vector<64x8xbf16>, vector<8x16xbf16>, vector<64x16xf32> -> vector<64x16xf32>
    %134 = arith.addf %128, %133 : vector<64x16xf32>
    %135 = vector.shape_cast %134 : vector<64x16xf32> to vector<4x2x4x2x16xf32>
    %cst_166 = arith.constant dense<0xFF800000> : vector<4x4x16xf32>
    %136 = vector.multi_reduction <maximumf>, %135, %cst_166 [1, 3] : vector<4x2x4x2x16xf32> to vector<4x4x16xf32>
    %137 = vector.shape_cast %72 : vector<1x16xf32> to vector<1x1x16xf32>
    %138 = vector.broadcast %137 : vector<1x1x16xf32> to vector<4x4x16xf32>
    %139 = arith.addf %136, %138 : vector<4x4x16xf32>
    %cst_167 = arith.constant 0.000000e+00 : f32
    %140 = vector.broadcast %cst_167 : f32 to vector<4x4x16xf32>
    %141 = arith.maximumf %139, %140 : vector<4x4x16xf32>
    %142 = vector.shape_cast %141 : vector<4x4x16xf32> to vector<1x4x4x16xf32>
    %143 = vector.shape_cast %142 : vector<1x4x4x16xf32> to vector<1x4x64xf32>
    %c0_168 = arith.constant 0 : index
    %c0_169 = arith.constant 0 : index
    %c0_170 = arith.constant 0 : index
    %144 = vector.load %arg6[%c0_168, %c0_169, %c0_170] : memref<1x4x64xf32, #tpu.memory_space<vmem>>, vector<1x4x64xf32>
    tpu.vector_store %arg6[%c0_168, %c0_169, %c0_170], %143 {strides = array<i32>} : memref<1x4x64xf32, #tpu.memory_space<vmem>>, vector<1x4x64xf32>,
    return
  }
  func.func @transform_0(%arg0: i32) -> (i32, i32, i32, i32) {
    %c0_i32 = arith.constant 0 : i32
    %c0_i32_0 = arith.constant 0 : i32
    %c0_i32_1 = arith.constant 0 : i32
    %c0_i32_2 = arith.constant 0 : i32
    return %arg0, %c0_i32, %c0_i32_0, %c0_i32_1 : i32, i32, i32, i32
  }
  func.func @transform_1(%arg0: i32) -> (i32, i32) {
    %c0_i32 = arith.constant 0 : i32
    %c0_i32_0 = arith.constant 0 : i32
    %c0_i32_1 = arith.constant 0 : i32
    return %c0_i32, %c0_i32_0 : i32, i32
  }
  func.func @transform_2(%arg0: i32) -> (i32, i32) {
    %c0_i32 = arith.constant 0 : i32
    %c0_i32_0 = arith.constant 0 : i32
    %c0_i32_1 = arith.constant 0 : i32
    return %c0_i32, %c0_i32_0 : i32, i32
  }
  func.func @transform_3(%arg0: i32) -> (i32, i32) {
    %c0_i32 = arith.constant 0 : i32
    %c0_i32_0 = arith.constant 0 : i32
    %c0_i32_1 = arith.constant 0 : i32
    return %c0_i32, %c0_i32_0 : i32, i32
  }
  func.func @transform_4(%arg0: i32) -> (i32, i32) {
    %c0_i32 = arith.constant 0 : i32
    %c0_i32_0 = arith.constant 0 : i32
    %c0_i32_1 = arith.constant 0 : i32
    return %c0_i32, %c0_i32_0 : i32, i32
  }
  func.func @transform_5(%arg0: i32) -> (i32, i32, i32) {
    %c0_i32 = arith.constant 0 : i32
    %c0_i32_0 = arith.constant 0 : i32
    %c0_i32_1 = arith.constant 0 : i32
    return %arg0, %c0_i32, %c0_i32_0 : i32, i32, i32
  }
}

</mosaic_0001>

<llo_original>
// kernel: vgg_conv_forward.1
$region0: #{vgg_conv_forward.1}
  #allocation0 [shape = 'u32[]', space=smem, size = 0x4, offset = 0x4, fixed_abs, tag = 'smem constant byte address 0x4 - core index']
  #allocation1 [shape = 'u32[72,128]{1,0:T(1,128)}', space=vmem, size = 0x9000, scoped, tag = 'internal scratch']
  #allocation2 [shape = 'f32[1,18,18,4]{3,2,1,0:T(8,128)}', space=vmem, size = 0x36000, scoped, tag = 'scratch operand']
  #allocation3 [shape = 'f32[1,10,10,8]{3,2,1,0:T(8,128)}', space=vmem, size = 0x14000, scoped, tag = 'scratch operand']
  %s0 = inlined_call_operand.vmem [shape: f32[2,16,16,4], index: 0, kind: input, shape index: {}]
  %s1 = inlined_call_operand.vmem [shape: bf16[36,8], index: 1, kind: input, shape index: {}]
  %s2 = inlined_call_operand.vmem [shape: f32[1,8], index: 2, kind: input, shape index: {}]
  %s3 = inlined_call_operand.vmem [shape: bf16[72,16], index: 3, kind: input, shape index: {}]
  %s4 = inlined_call_operand.vmem [shape: f32[1,16], index: 4, kind: input, shape index: {}]
  %s5 = inlined_call_operand.vmem [shape: f32[2,4,64], index: 5, kind: output, shape index: {}]
  %s6 = sld [smem:[#allocation0]]
  $region53: #{vgg_conv_forward.1} parent=0
    _
  %s8 = ssub.s32 1, %s6
  %s9 = scalar_select 0, %s8, %s6
  loop: start=0, step=1, limit=4
  $region2: #{vgg_conv_forward.1} parent=0 // loop_pre_header
    _
  $region3: #{vgg_conv_forward.1} parent=0 // loop_header
    %s11 = sphi 0, %s15
    %p12 = scmp.ge.s32.totalorder %s11, 4
    %s21 = sphi 0, %s23
    %s24 = sphi 0, %s21
    %s25 = sphi 0, %s24
    %s41 = sphi 0, %s25
    %s45 = sphi 0, %s45
    %s47 = sphi 0, %s45
    %s48 = sphi 0, %s47
    %s62 = sphi 0, %s48
    %s66 = sphi 0, %s66
    %s68 = sphi 0, %s66
    %s69 = sphi 0, %s68
    %s83 = sphi 0, %s69
    %s87 = sphi 0, %s87
    %s89 = sphi 0, %s87
    %s90 = sphi 0, %s89
    %s104 = sphi 0, %s90
    %s108 = sphi 0, %s108
    %s110 = sphi 0, %s108
    %s111 = sphi 0, %s110
    %s125 = sphi 0, %s111
    %s131 = sphi 0, %s133
    %s134 = sphi 0, %s131
    %s135 = sphi 0, %s134
    %s151 = sphi 0, %s135
  $region4: #{vgg_conv_forward.1} parent=0 // loop_header_branch
    %14 = sbr.rel (%p12) target = $region8
  $region5: #{vgg_conv_forward.1} parent=0 // loop_body
    %s16 = ssub.s32 %s11, 1
    %s17 = ssub.s32 %s11, 2
    %s18 = sadd.s32 %s11, 1
    %s19 = ssub.s32 %s11, %s18
    %p20 = scmp.eq.s32.totalorder %s19, 0
    %s22 = sadd.s32 %s21, 1
    %s23 = scalar_select %p20, %s21, %s22
    %p26 = pneg %p20
    %p27 = scmp.eq.s32.totalorder %s11, 1
    %p28 = por %p26, %p27
    %p29 = scmp.ne.s32.totalorder %s21, %s24
    %p30 = scmp.eq.s32.totalorder %s11, 0
    %p31 = por %p29, %p30
    %p32 = scmp.ne.s32.totalorder %s21, %s24
    %p33 = scmp.eq.s32.totalorder %s16, 1
    %p34 = por %p32, %p33
    %p35 = scmp.ne.s32.totalorder %s24, %s25
    %p36 = scmp.eq.s32.totalorder %s16, 0
    %p37 = por %p35, %p36
    %p38 = scmp.ne.s32.totalorder %s24, %s25
    %p39 = scmp.eq.s32.totalorder %s17, 1
    %p40 = por %p38, %p39
    %p42 = scmp.ne.s32.totalorder %s25, %s41
    %p43 = scmp.eq.s32.totalorder %s17, 0
    %p44 = por %p42, %p43
    %s46 = sadd.s32 %s45, 1
    %p49 = scmp.eq.s32.totalorder %s11, 1
    %p50 = scmp.ne.s32.totalorder %s45, %s47
    %p51 = scmp.eq.s32.totalorder %s11, 0
    %p52 = por %p50, %p51
    %p53 = scmp.ne.s32.totalorder %s45, %s47
    %p54 = scmp.eq.s32.totalorder %s16, 1
    %p55 = por %p53, %p54
    %p56 = scmp.ne.s32.totalorder %s47, %s48
    %p57 = scmp.eq.s32.totalorder %s16, 0
    %p58 = por %p56, %p57
    %p59 = scmp.ne.s32.totalorder %s47, %s48
    %p60 = scmp.eq.s32.totalorder %s17, 1
    %p61 = por %p59, %p60
    %p63 = scmp.ne.s32.totalorder %s48, %s62
    %p64 = scmp.eq.s32.totalorder %s17, 0
    %p65 = por %p63, %p64
    %s67 = sadd.s32 %s66, 1
    %p70 = scmp.eq.s32.totalorder %s11, 1
    %p71 = scmp.ne.s32.totalorder %s66, %s68
    %p72 = scmp.eq.s32.totalorder %s11, 0
    %p73 = por %p71, %p72
    %p74 = scmp.ne.s32.totalorder %s66, %s68
    %p75 = scmp.eq.s32.totalorder %s16, 1
    %p76 = por %p74, %p75
    %p77 = scmp.ne.s32.totalorder %s68, %s69
    %p78 = scmp.eq.s32.totalorder %s16, 0
    %p79 = por %p77, %p78
    %p80 = scmp.ne.s32.totalorder %s68, %s69
    %p81 = scmp.eq.s32.totalorder %s17, 1
    %p82 = por %p80, %p81
    %p84 = scmp.ne.s32.totalorder %s69, %s83
    %p85 = scmp.eq.s32.totalorder %s17, 0
    %p86 = por %p84, %p85
    %s88 = sadd.s32 %s87, 1
    %p91 = scmp.eq.s32.totalorder %s11, 1
    %p92 = scmp.ne.s32.totalorder %s87, %s89
    %p93 = scmp.eq.s32.totalorder %s11, 0
    %p94 = por %p92, %p93
    %p95 = scmp.ne.s32.totalorder %s87, %s89
    %p96 = scmp.eq.s32.totalorder %s16, 1
    %p97 = por %p95, %p96
    %p98 = scmp.ne.s32.totalorder %s89, %s90
    %p99 = scmp.eq.s32.totalorder %s16, 0
    %p100 = por %p98, %p99
    %p101 = scmp.ne.s32.totalorder %s89, %s90
    %p102 = scmp.eq.s32.totalorder %s17, 1
    %p103 = por %p101, %p102
    %p105 = scmp.ne.s32.totalorder %s90, %s104
    %p106 = scmp.eq.s32.totalorder %s17, 0
    %p107 = por %p105, %p106
    %s109 = sadd.s32 %s108, 1
    %p112 = scmp.eq.s32.totalorder %s11, 1
    %p113 = scmp.ne.s32.totalorder %s108, %s110
    %p114 = scmp.eq.s32.totalorder %s11, 0
    %p115 = por %p113, %p114
    %p116 = scmp.ne.s32.totalorder %s108, %s110
    %p117 = scmp.eq.s32.totalorder %s16, 1
    %p118 = por %p116, %p117
    %p119 = scmp.ne.s32.totalorder %s110, %s111
    %p120 = scmp.eq.s32.totalorder %s16, 0
    %p121 = por %p119, %p120
    %p122 = scmp.ne.s32.totalorder %s110, %s111
    %p123 = scmp.eq.s32.totalorder %s17, 1
    %p124 = por %p122, %p123
    %p126 = scmp.ne.s32.totalorder %s111, %s125
    %p127 = scmp.eq.s32.totalorder %s17, 0
    %p128 = por %p126, %p127
    %s129 = ssub.s32 %s11, %s18
    %p130 = scmp.eq.s32.totalorder %s129, 0
    %s132 = sadd.s32 %s131, 1
    %s133 = scalar_select %p130, %s131, %s132
    %p136 = pneg %p130
    %p137 = scmp.eq.s32.totalorder %s11, 1
    %p138 = por %p136, %p137
    %p139 = scmp.ne.s32.totalorder %s131, %s134
    %p140 = scmp.eq.s32.totalorder %s11, 0
    %p141 = por %p139, %p140
    %p142 = scmp.ne.s32.totalorder %s131, %s134
    %p143 = scmp.eq.s32.totalorder %s16, 1
    %p144 = por %p142, %p143
    %p145 = scmp.ne.s32.totalorder %s134, %s135
    %p146 = scmp.eq.s32.totalorder %s16, 0
    %p147 = por %p145, %p146
    %p148 = scmp.ne.s32.totalorder %s134, %s135
    %p149 = scmp.eq.s32.totalorder %s17, 1
    %p150 = por %p148, %p149
    %p152 = scmp.ne.s32.totalorder %s135, %s151
    %p153 = scmp.eq.s32.totalorder %s17, 0
    %p154 = por %p152, %p153
    %p155 = scmp.le.s32.totalorder 1, %s11
    %p156 = scmp.lt.s32.totalorder %s11, 3
    %p157 = pnand %p155, %p156
    %p158 = pneg %p157
    // Predicated region
    $region9: #{vgg_conv_forward.1} parent=5 // pred_check
      _
    $region10: #{vgg_conv_forward.1} parent=5 // pred_check_branch
      %160 = sbr.rel (%p157) target = $region12
    $region11: #{vgg_conv_forward.1} parent=5 // pred_region
      %s161 = ssub.s32 %s11, 1
      // Predicated region
      $region13: #{vgg_conv_forward.1} parent=11 // pred_check
        %p162 = pneg %p58
      $region14: #{vgg_conv_forward.1} parent=11 // pred_check_branch
        %164 = sbr.rel (%p162) target = $region16
      $region15: #{vgg_conv_forward.1} parent=11 // pred_region
        _
      $region16: #{vgg_conv_forward.1} parent=11 // pred_fallthru
        _
      // Predicated region
      $region17: #{vgg_conv_forward.1} parent=11 // pred_check
        %p165 = pneg %p79
      $region18: #{vgg_conv_forward.1} parent=11 // pred_check_branch
        %167 = sbr.rel (%p165) target = $region20
      $region19: #{vgg_conv_forward.1} parent=11 // pred_region
        _
      $region20: #{vgg_conv_forward.1} parent=11 // pred_fallthru
        _
      // Predicated region
      $region21: #{vgg_conv_forward.1} parent=11 // pred_check
        %p168 = pneg %p100
      $region22: #{vgg_conv_forward.1} parent=11 // pred_check_branch
        %170 = sbr.rel (%p168) target = $region24
      $region23: #{vgg_conv_forward.1} parent=11 // pred_region
        _
      $region24: #{vgg_conv_forward.1} parent=11 // pred_fallthru
        _
      // Predicated region
      $region25: #{vgg_conv_forward.1} parent=11 // pred_check
        %p171 = pneg %p121
      $region26: #{vgg_conv_forward.1} parent=11 // pred_check_branch
        %173 = sbr.rel (%p171) target = $region28
      $region27: #{vgg_conv_forward.1} parent=11 // pred_region
        _
      $region28: #{vgg_conv_forward.1} parent=11 // pred_fallthru
        _
    $region12: #{vgg_conv_forward.1} parent=5 // pred_fallthru
      _
    %p174 = scmp.lt.s32.totalorder %s11, 2
    // Predicated region
    $region29: #{vgg_conv_forward.1} parent=5 // pred_check
      %p175 = pneg %p174
    $region30: #{vgg_conv_forward.1} parent=5 // pred_check_branch
      %177 = sbr.rel (%p175) target = $region32
    $region31: #{vgg_conv_forward.1} parent=5 // pred_region
      // Predicated region
      $region33: #{vgg_conv_forward.1} parent=31 // pred_check
        %p178 = pneg %p31
      $region34: #{vgg_conv_forward.1} parent=31 // pred_check_branch
        %180 = sbr.rel (%p178) target = $region36
      $region35: #{vgg_conv_forward.1} parent=31 // pred_region
        %p181 = scmp.lt.s32.totalorder %s11, 1
        %s182 = scalar_select %p181, %s11, 1
        %s183 = smul.addr %s182, 32
        %s184 = smul.addr %s183, 8
        %s185 = scalar_lea.vmem %s0, %s184
      $region36: #{vgg_conv_forward.1} parent=31 // pred_fallthru
        _
    $region32: #{vgg_conv_forward.1} parent=5 // pred_fallthru
      _
    %p186 = scmp.le.s32.totalorder 1, %s11
    %p187 = scmp.lt.s32.totalorder %s11, 3
    %p188 = pnand %p186, %p187
    %p189 = pneg %p188
    // Predicated region
    $region37: #{vgg_conv_forward.1} parent=5 // pred_check
      _
    $region38: #{vgg_conv_forward.1} parent=5 // pred_check_branch
      %191 = sbr.rel (%p188) target = $region40
    $region39: #{vgg_conv_forward.1} parent=5 // pred_region
      %s192 = ssub.s32 %s11, 1
      %p193 = scmp.lt.s32.totalorder %s16, 1
      %s194 = scalar_select %p193, %s16, 1
      %s195 = smul.addr %s194, 32
      %s196 = smul.addr %s195, 8
      %s197 = scalar_lea.vmem %s0, %s196
      %p198 = pneg %p37
      %p199 = pneg %p34
      %p200 = pneg %p58
      %p201 = pneg %p55
      %p202 = pneg %p79
      %p203 = pneg %p76
      %p204 = pneg %p100
      %p205 = pneg %p97
      %p206 = pneg %p121
      %p207 = pneg %p118
      %p208 = pneg %p147
      %p209 = pneg %p144
      %p210 = scmp.lt.s32.totalorder %s16, 1
      %s211 = scalar_select %p210, %s16, 1
      %s212 = smul.addr %s211, 4
      %s213 = scalar_lea.vmem %s5, %s212
      %p214 = scmp.lt.s32.totalorder %s16, 1
      %s215 = scalar_select %p214, %s16, 1
      %s216 = smul.addr %s215, 32
      %s217 = smul.addr %s216, 8
      %s218 = scalar_lea.vmem %s0, %s217
      %p219 = scmp.lt.s32.totalorder %s16, 1
      %s220 = scalar_select %p219, %s16, 1
      %s221 = smul.addr %s220, 4
      %s222 = scalar_lea.vmem %s5, %s221
      %v224 = vld [vmem:[%s218] sm:$0xff]
      %v225 = vld [vmem:[%s218 + $0x8] sm:$0xff]
      %v226 = vld [vmem:[%s218 + $0x10] sm:$0xff]
      %v227 = vld [vmem:[%s218 + $0x18] sm:$0xff]
      %v228 = vld [vmem:[%s218 + $0x20] sm:$0xff]
      %v229 = vld [vmem:[%s218 + $0x28] sm:$0xff]
      %v230 = vld [vmem:[%s218 + $0x30] sm:$0xff]
      %v231 = vld [vmem:[%s218 + $0x38] sm:$0xff]
      %v232 = vld [vmem:[%s218 + $0x40] sm:$0xff]
      %v233 = vld [vmem:[%s218 + $0x48] sm:$0xff]
      %v234 = vld [vmem:[%s218 + $0x50] sm:$0xff]
      %v235 = vld [vmem:[%s218 + $0x58] sm:$0xff]
      %v236 = vld [vmem:[%s218 + $0x60] sm:$0xff]
      %v237 = vld [vmem:[%s218 + $0x68] sm:$0xff]
      %v238 = vld [vmem:[%s218 + $0x70] sm:$0xff]
      %v239 = vld [vmem:[%s218 + $0x78] sm:$0xff]
      %v240 = vld [vmem:[%s218 + $0x80] sm:$0xff]
      %v241 = vld [vmem:[%s218 + $0x88] sm:$0xff]
      %v242 = vld [vmem:[%s218 + $0x90] sm:$0xff]
      %v243 = vld [vmem:[%s218 + $0x98] sm:$0xff]
      %v244 = vld [vmem:[%s218 + $0xa0] sm:$0xff]
      %v245 = vld [vmem:[%s218 + $0xa8] sm:$0xff]
      %v246 = vld [vmem:[%s218 + $0xb0] sm:$0xff]
      %v247 = vld [vmem:[%s218 + $0xb8] sm:$0xff]
      %v248 = vld [vmem:[%s218 + $0xc0] sm:$0xff]
      %v249 = vld [vmem:[%s218 + $0xc8] sm:$0xff]
      %v250 = vld [vmem:[%s218 + $0xd0] sm:$0xff]
      %v251 = vld [vmem:[%s218 + $0xd8] sm:$0xff]
      %v252 = vld [vmem:[%s218 + $0xe0] sm:$0xff]
      %v253 = vld [vmem:[%s218 + $0xe8] sm:$0xff]
      %v254 = vld [vmem:[%s218 + $0xf0] sm:$0xff]
      %v255 = vld [vmem:[%s218 + $0xf8] sm:$0xff]
      %v256 = vld [vmem:[%s2] sm:$0x1]
      %vm257 = vcmask 31744
      %258 = vst.msk [vmem:[#allocation2] sm:$0xff] %vm257, 0.0
      %259 = vst.msk [vmem:[#allocation2 + $0x8] sm:$0xff] %vm257, 0.0
      %vm260 = vcmask 25600
      %261 = vst.msk [vmem:[#allocation2 + $0x10] sm:$0x3] %vm260, 0.0
      %s262 = scalar_lea.vmem [#allocation2], 408
      %263 = vst.msk [vmem:[%s262] sm:$0xff] %vm257, 0.0
      %264 = vst.msk [vmem:[%s262 + $0x8] sm:$0xff] %vm257, 0.0
      %265 = vst.msk [vmem:[%s262 + $0x10] sm:$0x3] %vm260, 0.0
      %vm266 = vcmask 24576
      %267 = vst.msk [vmem:[#allocation2] sm:$0x1] %vm266, 0.0
      %268 = vst.msk [vmem:[#allocation2 + $0x18] sm:$0x1] %vm266, 0.0
      %269 = vst.msk [vmem:[#allocation2 + $0x30] sm:$0x1] %vm266, 0.0
      %270 = vst.msk [vmem:[#allocation2 + $0x48] sm:$0x1] %vm266, 0.0
      %271 = vst.msk [vmem:[#allocation2 + $0x60] sm:$0x1] %vm266, 0.0
      %272 = vst.msk [vmem:[#allocation2 + $0x78] sm:$0x1] %vm266, 0.0
      %273 = vst.msk [vmem:[#allocation2 + $0x90] sm:$0x1] %vm266, 0.0
      %274 = vst.msk [vmem:[#allocation2 + $0xa8] sm:$0x1] %vm266, 0.0
      %275 = vst.msk [vmem:[#allocation2 + $0xc0] sm:$0x1] %vm266, 0.0
      %276 = vst.msk [vmem:[#allocation2 + $0xd8] sm:$0x1] %vm266, 0.0
      %277 = vst.msk [vmem:[#allocation2 + $0xf0] sm:$0x1] %vm266, 0.0
      %278 = vst.msk [vmem:[#allocation2 + $0x108] sm:$0x1] %vm266, 0.0
      %279 = vst.msk [vmem:[#allocation2 + $0x120] sm:$0x1] %vm266, 0.0
      %280 = vst.msk [vmem:[#allocation2 + $0x138] sm:$0x1] %vm266, 0.0
      %281 = vst.msk [vmem:[#allocation2 + $0x150] sm:$0x1] %vm266, 0.0
      %282 = vst.msk [vmem:[#allocation2 + $0x168] sm:$0x1] %vm266, 0.0
      %283 = vst.msk [vmem:[#allocation2 + $0x180] sm:$0x1] %vm266, 0.0
      %284 = vst.msk [vmem:[#allocation2 + $0x198] sm:$0x1] %vm266, 0.0
      %285 = vst.msk [vmem:[#allocation2 + $0x11] sm:$0x1] %vm266, 0.0
      %286 = vst.msk [vmem:[#allocation2 + $0x29] sm:$0x1] %vm266, 0.0
      %287 = vst.msk [vmem:[#allocation2 + $0x41] sm:$0x1] %vm266, 0.0
      %288 = vst.msk [vmem:[#allocation2 + $0x59] sm:$0x1] %vm266, 0.0
      %289 = vst.msk [vmem:[#allocation2 + $0x71] sm:$0x1] %vm266, 0.0
      %290 = vst.msk [vmem:[#allocation2 + $0x89] sm:$0x1] %vm266, 0.0
      %291 = vst.msk [vmem:[#allocation2 + $0xa1] sm:$0x1] %vm266, 0.0
      %292 = vst.msk [vmem:[#allocation2 + $0xb9] sm:$0x1] %vm266, 0.0
      %293 = vst.msk [vmem:[#allocation2 + $0xd1] sm:$0x1] %vm266, 0.0
      %294 = vst.msk [vmem:[#allocation2 + $0xe9] sm:$0x1] %vm266, 0.0
      %295 = vst.msk [vmem:[#allocation2 + $0x101] sm:$0x1] %vm266, 0.0
      %296 = vst.msk [vmem:[#allocation2 + $0x119] sm:$0x1] %vm266, 0.0
      %297 = vst.msk [vmem:[#allocation2 + $0x131] sm:$0x1] %vm266, 0.0
      %298 = vst.msk [vmem:[#allocation2 + $0x149] sm:$0x1] %vm266, 0.0
      %299 = vst.msk [vmem:[#allocation2 + $0x161] sm:$0x1] %vm266, 0.0
      %300 = vst.msk [vmem:[#allocation2 + $0x179] sm:$0x1] %vm266, 0.0
      %301 = vst.msk [vmem:[#allocation2 + $0x191] sm:$0x1] %vm266, 0.0
      %302 = vst.msk [vmem:[#allocation2 + $0x1a9] sm:$0x1] %vm266, 0.0
      %s303 = scalar_lea.vmem [#allocation2], 24
      %304 = vst.msk [vmem:[%s303 + $0x1] sm:$0xff] %vm257, %v224
      %305 = vst.msk [vmem:[%s303 + $0x9] sm:$0xff] %vm257, %v225
      %306 = vst.msk [vmem:[%s303 + $0x19] sm:$0xff] %vm257, %v226
      %307 = vst.msk [vmem:[%s303 + $0x21] sm:$0xff] %vm257, %v227
      %308 = vst.msk [vmem:[%s303 + $0x31] sm:$0xff] %vm257, %v228
      %309 = vst.msk [vmem:[%s303 + $0x39] sm:$0xff] %vm257, %v229
      %310 = vst.msk [vmem:[%s303 + $0x49] sm:$0xff] %vm257, %v230
      %311 = vst.msk [vmem:[%s303 + $0x51] sm:$0xff] %vm257, %v231
      %312 = vst.msk [vmem:[%s303 + $0x61] sm:$0xff] %vm257, %v232
      %313 = vst.msk [vmem:[%s303 + $0x69] sm:$0xff] %vm257, %v233
      %314 = vst.msk [vmem:[%s303 + $0x79] sm:$0xff] %vm257, %v234
      %315 = vst.msk [vmem:[%s303 + $0x81] sm:$0xff] %vm257, %v235
      %316 = vst.msk [vmem:[%s303 + $0x91] sm:$0xff] %vm257, %v236
      %317 = vst.msk [vmem:[%s303 + $0x99] sm:$0xff] %vm257, %v237
      %318 = vst.msk [vmem:[%s303 + $0xa9] sm:$0xff] %vm257, %v238
      %319 = vst.msk [vmem:[%s303 + $0xb1] sm:$0xff] %vm257, %v239
      %320 = vst.msk [vmem:[%s303 + $0xc1] sm:$0xff] %vm257, %v240
      %321 = vst.msk [vmem:[%s303 + $0xc9] sm:$0xff] %vm257, %v241
      %322 = vst.msk [vmem:[%s303 + $0xd9] sm:$0xff] %vm257, %v242
      %323 = vst.msk [vmem:[%s303 + $0xe1] sm:$0xff] %vm257, %v243
      %324 = vst.msk [vmem:[%s303 + $0xf1] sm:$0xff] %vm257, %v244
      %325 = vst.msk [vmem:[%s303 + $0xf9] sm:$0xff] %vm257, %v245
      %326 = vst.msk [vmem:[%s303 + $0x109] sm:$0xff] %vm257, %v246
      %327 = vst.msk [vmem:[%s303 + $0x111] sm:$0xff] %vm257, %v247
      %328 = vst.msk [vmem:[%s303 + $0x121] sm:$0xff] %vm257, %v248
      %329 = vst.msk [vmem:[%s303 + $0x129] sm:$0xff] %vm257, %v249
      %330 = vst.msk [vmem:[%s303 + $0x139] sm:$0xff] %vm257, %v250
      %331 = vst.msk [vmem:[%s303 + $0x141] sm:$0xff] %vm257, %v251
      %332 = vst.msk [vmem:[%s303 + $0x151] sm:$0xff] %vm257, %v252
      %333 = vst.msk [vmem:[%s303 + $0x159] sm:$0xff] %vm257, %v253
      %334 = vst.msk [vmem:[%s303 + $0x169] sm:$0xff] %vm257, %v254
      %335 = vst.msk [vmem:[%s303 + $0x171] sm:$0xff] %vm257, %v255
      %v336 = vld [vmem:[#allocation2] sm:$0xff]
      %v337 = vld [vmem:[#allocation2 + $0x8] sm:$0xff]
      %v338 = vld [vmem:[#allocation2 + $0x18] sm:$0xff]
      %v339 = vld [vmem:[#allocation2 + $0x20] sm:$0xff]
      %v340 = vld [vmem:[#allocation2 + $0x30] sm:$0xff]
      %v341 = vld [vmem:[#allocation2 + $0x38] sm:$0xff]
      %v342 = vld [vmem:[#allocation2 + $0x48] sm:$0xff]
      %v343 = vld [vmem:[#allocation2 + $0x50] sm:$0xff]
      %v344 = vld [vmem:[#allocation2 + $0x60] sm:$0xff]
      %v345 = vld [vmem:[#allocation2 + $0x68] sm:$0xff]
      %v346 = vld [vmem:[#allocation2 + $0x78] sm:$0xff]
      %v347 = vld [vmem:[#allocation2 + $0x80] sm:$0xff]
      %v348 = vld [vmem:[#allocation2 + $0x90] sm:$0xff]
      %v349 = vld [vmem:[#allocation2 + $0x98] sm:$0xff]
      %v350 = vld [vmem:[#allocation2 + $0xa8] sm:$0xff]
      %v351 = vld [vmem:[#allocation2 + $0xb0] sm:$0xff]
      %v352 = vld [vmem:[#allocation2 + $0xc0] sm:$0xff]
      %v353 = vld [vmem:[#allocation2 + $0xc8] sm:$0xff]
      %v354 = vld [vmem:[#allocation2 + $0xd8] sm:$0xff]
      %v355 = vld [vmem:[#allocation2 + $0xe0] sm:$0xff]
      %v356 = vld [vmem:[#allocation2 + $0xf0] sm:$0xff]
      %v357 = vld [vmem:[#allocation2 + $0xf8] sm:$0xff]
      %v358 = vld [vmem:[#allocation2 + $0x108] sm:$0xff]
      %v359 = vld [vmem:[#allocation2 + $0x110] sm:$0xff]
      %v360 = vld [vmem:[#allocation2 + $0x120] sm:$0xff]
      %v361 = vld [vmem:[#allocation2 + $0x128] sm:$0xff]
      %v362 = vld [vmem:[#allocation2 + $0x138] sm:$0xff]
      %v363 = vld [vmem:[#allocation2 + $0x140] sm:$0xff]
      %v364 = vld [vmem:[#allocation2 + $0x150] sm:$0xff]
      %v365 = vld [vmem:[#allocation2 + $0x158] sm:$0xff]
      %v366 = vld [vmem:[#allocation2 + $0x168] sm:$0xff]
      %v367 = vld [vmem:[#allocation2 + $0x170] sm:$0xff]
      %v368 = vpack.c.bf16 %v337, %v336
      %v369 = vpack.c.bf16 %v339, %v338
      %v370 = vpack.c.bf16 %v341, %v340
      %v371 = vpack.c.bf16 %v343, %v342
      %v372 = vpack.c.bf16 %v345, %v344
      %v373 = vpack.c.bf16 %v347, %v346
      %v374 = vpack.c.bf16 %v349, %v348
      %v375 = vpack.c.bf16 %v351, %v350
      %v376 = vpack.c.bf16 %v353, %v352
      %v377 = vpack.c.bf16 %v355, %v354
      %v378 = vpack.c.bf16 %v357, %v356
      %v379 = vpack.c.bf16 %v359, %v358
      %v380 = vpack.c.bf16 %v361, %v360
      %v381 = vpack.c.bf16 %v363, %v362
      %v382 = vpack.c.bf16 %v365, %v364
      %v383 = vpack.c.bf16 %v367, %v366
      %v384 = vld [vmem:[%s1] sm:$0x3]
      %v385 = vld [vmem:[#allocation2 + $0x1] sm:$0xff]
      %v386 = vld [vmem:[#allocation2 + $0x9] sm:$0xff]
      %v387 = vld [vmem:[#allocation2 + $0x19] sm:$0xff]
      %v388 = vld [vmem:[#allocation2 + $0x21] sm:$0xff]
      %v389 = vld [vmem:[#allocation2 + $0x31] sm:$0xff]
      %v390 = vld [vmem:[#allocation2 + $0x39] sm:$0xff]
      %v391 = vld [vmem:[#allocation2 + $0x49] sm:$0xff]
      %v392 = vld [vmem:[#allocation2 + $0x51] sm:$0xff]
      %v393 = vld [vmem:[#allocation2 + $0x61] sm:$0xff]
      %v394 = vld [vmem:[#allocation2 + $0x69] sm:$0xff]
      %v395 = vld [vmem:[#allocation2 + $0x79] sm:$0xff]
      %v396 = vld [vmem:[#allocation2 + $0x81] sm:$0xff]
      %v397 = vld [vmem:[#allocation2 + $0x91] sm:$0xff]
      %v398 = vld [vmem:[#allocation2 + $0x99] sm:$0xff]
      %v399 = vld [vmem:[#allocation2 + $0xa9] sm:$0xff]
      %v400 = vld [vmem:[#allocation2 + $0xb1] sm:$0xff]
      %v401 = vld [vmem:[#allocation2 + $0xc1] sm:$0xff]
      %v402 = vld [vmem:[#allocation2 + $0xc9] sm:$0xff]
      %v403 = vld [vmem:[#allocation2 + $0xd9] sm:$0xff]
      %v404 = vld [vmem:[#allocation2 + $0xe1] sm:$0xff]
      %v405 = vld [vmem:[#allocation2 + $0xf1] sm:$0xff]
      %v406 = vld [vmem:[#allocation2 + $0xf9] sm:$0xff]
      %v407 = vld [vmem:[#allocation2 + $0x109] sm:$0xff]
      %v408 = vld [vmem:[#allocation2 + $0x111] sm:$0xff]
      %v409 = vld [vmem:[#allocation2 + $0x121] sm:$0xff]
      %v410 = vld [vmem:[#allocation2 + $0x129] sm:$0xff]
      %v411 = vld [vmem:[#allocation2 + $0x139] sm:$0xff]
      %v412 = vld [vmem:[#allocation2 + $0x141] sm:$0xff]
      %v413 = vld [vmem:[#allocation2 + $0x151] sm:$0xff]
      %v414 = vld [vmem:[#allocation2 + $0x159] sm:$0xff]
      %v415 = vld [vmem:[#allocation2 + $0x169] sm:$0xff]
      %v416 = vld [vmem:[#allocation2 + $0x171] sm:$0xff]
      %v417 = vpack.c.bf16 %v386, %v385
      %v418 = vpack.c.bf16 %v388, %v387
      %v419 = vpack.c.bf16 %v390, %v389
      %v420 = vpack.c.bf16 %v392, %v391
      %v421 = vpack.c.bf16 %v394, %v393
      %v422 = vpack.c.bf16 %v396, %v395
      %v423 = vpack.c.bf16 %v398, %v397
      %v424 = vpack.c.bf16 %v400, %v399
      %v425 = vpack.c.bf16 %v402, %v401
      %v426 = vpack.c.bf16 %v404, %v403
      %v427 = vpack.c.bf16 %v406, %v405
      %v428 = vpack.c.bf16 %v408, %v407
      %v429 = vpack.c.bf16 %v410, %v409
      %v430 = vpack.c.bf16 %v412, %v411
      %v431 = vpack.c.bf16 %v414, %v413
      %v432 = vpack.c.bf16 %v416, %v415
      %v433 = vld [vmem:[%s1] sm:$0xc]
      %v435 = vunpack.c.l.b16 %v433
      %v436 = vpack.c.b16 %v435, %v435
      %v437 = vrot.slane %v436, 2
      %v439 = vsel %vm257, %v417, 0
      %v442 = vsel %vm257, %v418, 0
      %v445 = vsel %vm257, %v419, 0
      %v448 = vsel %vm257, %v420, 0
      %v451 = vsel %vm257, %v421, 0
      %v454 = vsel %vm257, %v422, 0
      %v457 = vsel %vm257, %v423, 0
      %v460 = vsel %vm257, %v424, 0
      %v463 = vsel %vm257, %v425, 0
      %v466 = vsel %vm257, %v426, 0
      %v469 = vsel %vm257, %v427, 0
      %v472 = vsel %vm257, %v428, 0
      %v475 = vsel %vm257, %v429, 0
      %v478 = vsel %vm257, %v430, 0
      %v481 = vsel %vm257, %v431, 0
      %v484 = vsel %vm257, %v432, 0
      %vm486 = vcmask 1041408
      %v488 = vsel %vm486, %v437, 0
      %490 = vmatpush.bf16.msra.mxu0 0
      %491 = vmatpush.bf16.msra.mxu0 0
      %492 = vmatpush.bf16.msra.mxu0 0
      %493 = vmatpush.bf16.msra.mxu0 0
      %494 = vmatpush.bf16.msra.mxu0 0
      %495 = vmatpush.bf16.msra.mxu0 0
      %496 = vmatpush.bf16.msra.mxu0 0
      %497 = vmatpush.bf16.msra.mxu0 %v488
      %498 = vmatmul.bf16.gmra.mxu0 %v439
      %v499 = vpop.f32.mrf.mxu0
      %v500 = vadd.f32 0.0, %v499
      %v501 = vpop.f32.mrf.mxu0
      %v502 = vadd.f32 0.0, %v501
      %503 = vmatmul.bf16.gmra.mxu0 %v442
      %v504 = vpop.f32.mrf.mxu0
      %v505 = vadd.f32 0.0, %v504
      %v506 = vpop.f32.mrf.mxu0
      %v507 = vadd.f32 0.0, %v506
      %508 = vmatmul.bf16.gmra.mxu0 %v445
      %v509 = vpop.f32.mrf.mxu0
      %v510 = vadd.f32 0.0, %v509
      %v511 = vpop.f32.mrf.mxu0
      %v512 = vadd.f32 0.0, %v511
      %513 = vmatmul.bf16.gmra.mxu0 %v448
      %v514 = vpop.f32.mrf.mxu0
      %v515 = vadd.f32 0.0, %v514
      %v516 = vpop.f32.mrf.mxu0
      %v517 = vadd.f32 0.0, %v516
      %518 = vmatmul.bf16.gmra.mxu0 %v451
      %v519 = vpop.f32.mrf.mxu0
      %v520 = vadd.f32 0.0, %v519
      %v521 = vpop.f32.mrf.mxu0
      %v522 = vadd.f32 0.0, %v521
      %523 = vmatmul.bf16.gmra.mxu0 %v454
      %v524 = vpop.f32.mrf.mxu0
      %v525 = vadd.f32 0.0, %v524
      %v526 = vpop.f32.mrf.mxu0
      %v527 = vadd.f32 0.0, %v526
      %528 = vmatmul.bf16.gmra.mxu0 %v457
      %v529 = vpop.f32.mrf.mxu0
      %v530 = vadd.f32 0.0, %v529
      %v531 = vpop.f32.mrf.mxu0
      %v532 = vadd.f32 0.0, %v531
      %533 = vmatmul.bf16.gmra.mxu0 %v460
      %v534 = vpop.f32.mrf.mxu0
      %v535 = vadd.f32 0.0, %v534
      %v536 = vpop.f32.mrf.mxu0
      %v537 = vadd.f32 0.0, %v536
      %538 = vmatmul.bf16.gmra.mxu0 %v463
      %v539 = vpop.f32.mrf.mxu0
      %v540 = vadd.f32 0.0, %v539
      %v541 = vpop.f32.mrf.mxu0
      %v542 = vadd.f32 0.0, %v541
      %543 = vmatmul.bf16.gmra.mxu0 %v466
      %v544 = vpop.f32.mrf.mxu0
      %v545 = vadd.f32 0.0, %v544
      %v546 = vpop.f32.mrf.mxu0
      %v547 = vadd.f32 0.0, %v546
      %548 = vmatmul.bf16.gmra.mxu0 %v469
      %v549 = vpop.f32.mrf.mxu0
      %v550 = vadd.f32 0.0, %v549
      %v551 = vpop.f32.mrf.mxu0
      %v552 = vadd.f32 0.0, %v551
      %553 = vmatmul.bf16.gmra.mxu0 %v472
      %v554 = vpop.f32.mrf.mxu0
      %v555 = vadd.f32 0.0, %v554
      %v556 = vpop.f32.mrf.mxu0
      %v557 = vadd.f32 0.0, %v556
      %558 = vmatmul.bf16.gmra.mxu0 %v475
      %v559 = vpop.f32.mrf.mxu0
      %v560 = vadd.f32 0.0, %v559
      %v561 = vpop.f32.mrf.mxu0
      %v562 = vadd.f32 0.0, %v561
      %563 = vmatmul.bf16.gmra.mxu0 %v478
      %v564 = vpop.f32.mrf.mxu0
      %v565 = vadd.f32 0.0, %v564
      %v566 = vpop.f32.mrf.mxu0
      %v567 = vadd.f32 0.0, %v566
      %568 = vmatmul.bf16.gmra.mxu0 %v481
      %v569 = vpop.f32.mrf.mxu0
      %v570 = vadd.f32 0.0, %v569
      %v571 = vpop.f32.mrf.mxu0
      %v572 = vadd.f32 0.0, %v571
      %573 = vmatmul.bf16.gmra.mxu0 %v484
      %v574 = vpop.f32.mrf.mxu0
      %v575 = vadd.f32 0.0, %v574
      %v576 = vpop.f32.mrf.mxu0
      %v577 = vadd.f32 0.0, %v576
      %578 = vdwg.mxu0
      %v580 = vsel %vm257, %v368, 0
      %v583 = vsel %vm257, %v369, 0
      %v586 = vsel %vm257, %v370, 0
      %v589 = vsel %vm257, %v371, 0
      %v592 = vsel %vm257, %v372, 0
      %v595 = vsel %vm257, %v373, 0
      %v598 = vsel %vm257, %v374, 0
      %v601 = vsel %vm257, %v375, 0
      %v604 = vsel %vm257, %v376, 0
      %v607 = vsel %vm257, %v377, 0
      %v610 = vsel %vm257, %v378, 0
      %v613 = vsel %vm257, %v379, 0
      %v616 = vsel %vm257, %v380, 0
      %v619 = vsel %vm257, %v381, 0
      %v622 = vsel %vm257, %v382, 0
      %v625 = vsel %vm257, %v383, 0
      %v628 = vsel %vm486, %v384, 0
      %630 = vmatpush.bf16.msra.mxu0 0
      %631 = vmatpush.bf16.msra.mxu0 0
      %632 = vmatpush.bf16.msra.mxu0 0
      %633 = vmatpush.bf16.msra.mxu0 0
      %634 = vmatpush.bf16.msra.mxu0 0
      %635 = vmatpush.bf16.msra.mxu0 0
      %636 = vmatpush.bf16.msra.mxu0 0
      %637 = vmatpush.bf16.msra.mxu0 %v628
      %638 = vmatmul.bf16.gmra.mxu0 %v580
      %v639 = vpop.f32.mrf.mxu0
      %v640 = vadd.f32 %v500, %v639
      %v641 = vpop.f32.mrf.mxu0
      %v642 = vadd.f32 %v502, %v641
      %643 = vmatmul.bf16.gmra.mxu0 %v583
      %v644 = vpop.f32.mrf.mxu0
      %v645 = vadd.f32 %v505, %v644
      %v646 = vpop.f32.mrf.mxu0
      %v647 = vadd.f32 %v507, %v646
      %648 = vmatmul.bf16.gmra.mxu0 %v586
      %v649 = vpop.f32.mrf.mxu0
      %v650 = vadd.f32 %v510, %v649
      %v651 = vpop.f32.mrf.mxu0
      %v652 = vadd.f32 %v512, %v651
      %653 = vmatmul.bf16.gmra.mxu0 %v589
      %v654 = vpop.f32.mrf.mxu0
      %v655 = vadd.f32 %v515, %v654
      %v656 = vpop.f32.mrf.mxu0
      %v657 = vadd.f32 %v517, %v656
      %658 = vmatmul.bf16.gmra.mxu0 %v592
      %v659 = vpop.f32.mrf.mxu0
      %v660 = vadd.f32 %v520, %v659
      %v661 = vpop.f32.mrf.mxu0
      %v662 = vadd.f32 %v522, %v661
      %663 = vmatmul.bf16.gmra.mxu0 %v595
      %v664 = vpop.f32.mrf.mxu0
      %v665 = vadd.f32 %v525, %v664
      %v666 = vpop.f32.mrf.mxu0
      %v667 = vadd.f32 %v527, %v666
      %668 = vmatmul.bf16.gmra.mxu0 %v598
      %v669 = vpop.f32.mrf.mxu0
      %v670 = vadd.f32 %v530, %v669
      %v671 = vpop.f32.mrf.mxu0
      %v672 = vadd.f32 %v532, %v671
      %673 = vmatmul.bf16.gmra.mxu0 %v601
      %v674 = vpop.f32.mrf.mxu0
      %v675 = vadd.f32 %v535, %v674
      %v676 = vpop.f32.mrf.mxu0
      %v677 = vadd.f32 %v537, %v676
      %678 = vmatmul.bf16.gmra.mxu0 %v604
      %v679 = vpop.f32.mrf.mxu0
      %v680 = vadd.f32 %v540, %v679
      %v681 = vpop.f32.mrf.mxu0
      %v682 = vadd.f32 %v542, %v681
      %683 = vmatmul.bf16.gmra.mxu0 %v607
      %v684 = vpop.f32.mrf.mxu0
      %v685 = vadd.f32 %v545, %v684
      %v686 = vpop.f32.mrf.mxu0
      %v687 = vadd.f32 %v547, %v686
      %688 = vmatmul.bf16.gmra.mxu0 %v610
      %v689 = vpop.f32.mrf.mxu0
      %v690 = vadd.f32 %v550, %v689
      %v691 = vpop.f32.mrf.mxu0
      %v692 = vadd.f32 %v552, %v691
      %693 = vmatmul.bf16.gmra.mxu0 %v613
      %v694 = vpop.f32.mrf.mxu0
      %v695 = vadd.f32 %v555, %v694
      %v696 = vpop.f32.mrf.mxu0
      %v697 = vadd.f32 %v557, %v696
      %698 = vmatmul.bf16.gmra.mxu0 %v616
      %v699 = vpop.f32.mrf.mxu0
      %v700 = vadd.f32 %v560, %v699
      %v701 = vpop.f32.mrf.mxu0
      %v702 = vadd.f32 %v562, %v701
      %703 = vmatmul.bf16.gmra.mxu0 %v619
      %v704 = vpop.f32.mrf.mxu0
      %v705 = vadd.f32 %v565, %v704
      %v706 = vpop.f32.mrf.mxu0
      %v707 = vadd.f32 %v567, %v706
      %708 = vmatmul.bf16.gmra.mxu0 %v622
      %v709 = vpop.f32.mrf.mxu0
      %v710 = vadd.f32 %v570, %v709
      %v711 = vpop.f32.mrf.mxu0
      %v712 = vadd.f32 %v572, %v711
      %713 = vmatmul.bf16.gmra.mxu0 %v625
      %v714 = vpop.f32.mrf.mxu0
      %v715 = vadd.f32 %v575, %v714
      %v716 = vpop.f32.mrf.mxu0
      %v717 = vadd.f32 %v577, %v716
      %718 = vdwg.mxu0
      %v719 = vld [vmem:[#allocation2 + $0x2] sm:$0xff]
      %v720 = vld [vmem:[#allocation2 + $0xa] sm:$0xff]
      %v721 = vld [vmem:[#allocation2 + $0x1a] sm:$0xff]
      %v722 = vld [vmem:[#allocation2 + $0x22] sm:$0xff]
      %v723 = vld [vmem:[#allocation2 + $0x32] sm:$0xff]
      %v724 = vld [vmem:[#allocation2 + $0x3a] sm:$0xff]
      %v725 = vld [vmem:[#allocation2 + $0x4a] sm:$0xff]
      %v726 = vld [vmem:[#allocation2 + $0x52] sm:$0xff]
      %v727 = vld [vmem:[#allocation2 + $0x62] sm:$0xff]
      %v728 = vld [vmem:[#allocation2 + $0x6a] sm:$0xff]
      %v729 = vld [vmem:[#allocation2 + $0x7a] sm:$0xff]
      %v730 = vld [vmem:[#allocation2 + $0x82] sm:$0xff]
      %v731 = vld [vmem:[#allocation2 + $0x92] sm:$0xff]
      %v732 = vld [vmem:[#allocation2 + $0x9a] sm:$0xff]
      %v733 = vld [vmem:[#allocation2 + $0xaa] sm:$0xff]
      %v734 = vld [vmem:[#allocation2 + $0xb2] sm:$0xff]
      %v735 = vld [vmem:[#allocation2 + $0xc2] sm:$0xff]
      %v736 = vld [vmem:[#allocation2 + $0xca] sm:$0xff]
      %v737 = vld [vmem:[#allocation2 + $0xda] sm:$0xff]
      %v738 = vld [vmem:[#allocation2 + $0xe2] sm:$0xff]
      %v739 = vld [vmem:[#allocation2 + $0xf2] sm:$0xff]
      %v740 = vld [vmem:[#allocation2 + $0xfa] sm:$0xff]
      %v741 = vld [vmem:[#allocation2 + $0x10a] sm:$0xff]
      %v742 = vld [vmem:[#allocation2 + $0x112] sm:$0xff]
      %v743 = vld [vmem:[#allocation2 + $0x122] sm:$0xff]
      %v744 = vld [vmem:[#allocation2 + $0x12a] sm:$0xff]
      %v745 = vld [vmem:[#allocation2 + $0x13a] sm:$0xff]
      %v746 = vld [vmem:[#allocation2 + $0x142] sm:$0xff]
      %v747 = vld [vmem:[#allocation2 + $0x152] sm:$0xff]
      %v748 = vld [vmem:[#allocation2 + $0x15a] sm:$0xff]
      %v749 = vld [vmem:[#allocation2 + $0x16a] sm:$0xff]
      %v750 = vld [vmem:[#allocation2 + $0x172] sm:$0xff]
      %v751 = vpack.c.bf16 %v720, %v719
      %v752 = vpack.c.bf16 %v722, %v721
      %v753 = vpack.c.bf16 %v724, %v723
      %v754 = vpack.c.bf16 %v726, %v725
      %v755 = vpack.c.bf16 %v728, %v727
      %v756 = vpack.c.bf16 %v730, %v729
      %v757 = vpack.c.bf16 %v732, %v731
      %v758 = vpack.c.bf16 %v734, %v733
      %v759 = vpack.c.bf16 %v736, %v735
      %v760 = vpack.c.bf16 %v738, %v737
      %v761 = vpack.c.bf16 %v740, %v739
      %v762 = vpack.c.bf16 %v742, %v741
      %v763 = vpack.c.bf16 %v744, %v743
      %v764 = vpack.c.bf16 %v746, %v745
      %v765 = vpack.c.bf16 %v748, %v747
      %v766 = vpack.c.bf16 %v750, %v749
      %v767 = vld [vmem:[%s1 + $0x4] sm:$0x3]
      %v769 = vsel %vm257, %v751, 0
      %v772 = vsel %vm257, %v752, 0
      %v775 = vsel %vm257, %v753, 0
      %v778 = vsel %vm257, %v754, 0
      %v781 = vsel %vm257, %v755, 0
      %v784 = vsel %vm257, %v756, 0
      %v787 = vsel %vm257, %v757, 0
      %v790 = vsel %vm257, %v758, 0
      %v793 = vsel %vm257, %v759, 0
      %v796 = vsel %vm257, %v760, 0
      %v799 = vsel %vm257, %v761, 0
      %v802 = vsel %vm257, %v762, 0
      %v805 = vsel %vm257, %v763, 0
      %v808 = vsel %vm257, %v764, 0
      %v811 = vsel %vm257, %v765, 0
      %v814 = vsel %vm257, %v766, 0
      %v817 = vsel %vm486, %v767, 0
      %819 = vmatpush.bf16.msra.mxu0 0
      %820 = vmatpush.bf16.msra.mxu0 0
      %821 = vmatpush.bf16.msra.mxu0 0
      %822 = vmatpush.bf16.msra.mxu0 0
      %823 = vmatpush.bf16.msra.mxu0 0
      %824 = vmatpush.bf16.msra.mxu0 0
      %825 = vmatpush.bf16.msra.mxu0 0
      %826 = vmatpush.bf16.msra.mxu0 %v817
      %827 = vmatmul.bf16.gmra.mxu0 %v769
      %v828 = vpop.f32.mrf.mxu0
      %v829 = vadd.f32 0.0, %v828
      %v830 = vpop.f32.mrf.mxu0
      %v831 = vadd.f32 0.0, %v830
      %832 = vmatmul.bf16.gmra.mxu0 %v772
      %v833 = vpop.f32.mrf.mxu0
      %v834 = vadd.f32 0.0, %v833
      %v835 = vpop.f32.mrf.mxu0
      %v836 = vadd.f32 0.0, %v835
      %837 = vmatmul.bf16.gmra.mxu0 %v775
      %v838 = vpop.f32.mrf.mxu0
      %v839 = vadd.f32 0.0, %v838
      %v840 = vpop.f32.mrf.mxu0
      %v841 = vadd.f32 0.0, %v840
      %842 = vmatmul.bf16.gmra.mxu0 %v778
      %v843 = vpop.f32.mrf.mxu0
      %v844 = vadd.f32 0.0, %v843
      %v845 = vpop.f32.mrf.mxu0
      %v846 = vadd.f32 0.0, %v845
      %847 = vmatmul.bf16.gmra.mxu0 %v781
      %v848 = vpop.f32.mrf.mxu0
      %v849 = vadd.f32 0.0, %v848
      %v850 = vpop.f32.mrf.mxu0
      %v851 = vadd.f32 0.0, %v850
      %852 = vmatmul.bf16.gmra.mxu0 %v784
      %v853 = vpop.f32.mrf.mxu0
      %v854 = vadd.f32 0.0, %v853
      %v855 = vpop.f32.mrf.mxu0
      %v856 = vadd.f32 0.0, %v855
      %857 = vmatmul.bf16.gmra.mxu0 %v787
      %v858 = vpop.f32.mrf.mxu0
      %v859 = vadd.f32 0.0, %v858
      %v860 = vpop.f32.mrf.mxu0
      %v861 = vadd.f32 0.0, %v860
      %862 = vmatmul.bf16.gmra.mxu0 %v790
      %v863 = vpop.f32.mrf.mxu0
      %v864 = vadd.f32 0.0, %v863
      %v865 = vpop.f32.mrf.mxu0
      %v866 = vadd.f32 0.0, %v865
      %867 = vmatmul.bf16.gmra.mxu0 %v793
      %v868 = vpop.f32.mrf.mxu0
      %v869 = vadd.f32 0.0, %v868
      %v870 = vpop.f32.mrf.mxu0
      %v871 = vadd.f32 0.0, %v870
      %872 = vmatmul.bf16.gmra.mxu0 %v796
      %v873 = vpop.f32.mrf.mxu0
      %v874 = vadd.f32 0.0, %v873
      %v875 = vpop.f32.mrf.mxu0
      %v876 = vadd.f32 0.0, %v875
      %877 = vmatmul.bf16.gmra.mxu0 %v799
      %v878 = vpop.f32.mrf.mxu0
      %v879 = vadd.f32 0.0, %v878
      %v880 = vpop.f32.mrf.mxu0
      %v881 = vadd.f32 0.0, %v880
      %882 = vmatmul.bf16.gmra.mxu0 %v802
      %v883 = vpop.f32.mrf.mxu0
      %v884 = vadd.f32 0.0, %v883
      %v885 = vpop.f32.mrf.mxu0
      %v886 = vadd.f32 0.0, %v885
      %887 = vmatmul.bf16.gmra.mxu0 %v805
      %v888 = vpop.f32.mrf.mxu0
      %v889 = vadd.f32 0.0, %v888
      %v890 = vpop.f32.mrf.mxu0
      %v891 = vadd.f32 0.0, %v890
      %892 = vmatmul.bf16.gmra.mxu0 %v808
      %v893 = vpop.f32.mrf.mxu0
      %v894 = vadd.f32 0.0, %v893
      %v895 = vpop.f32.mrf.mxu0
      %v896 = vadd.f32 0.0, %v895
      %897 = vmatmul.bf16.gmra.mxu0 %v811
      %v898 = vpop.f32.mrf.mxu0
      %v899 = vadd.f32 0.0, %v898
      %v900 = vpop.f32.mrf.mxu0
      %v901 = vadd.f32 0.0, %v900
      %902 = vmatmul.bf16.gmra.mxu0 %v814
      %v903 = vpop.f32.mrf.mxu0
      %v904 = vadd.f32 0.0, %v903
      %v905 = vpop.f32.mrf.mxu0
      %v906 = vadd.f32 0.0, %v905
      %907 = vdwg.mxu0
      %v908 = vadd.f32 %v640, %v829
      %v909 = vadd.f32 %v642, %v831
      %v910 = vadd.f32 %v645, %v834
      %v911 = vadd.f32 %v647, %v836
      %v912 = vadd.f32 %v650, %v839
      %v913 = vadd.f32 %v652, %v841
      %v914 = vadd.f32 %v655, %v844
      %v915 = vadd.f32 %v657, %v846
      %v916 = vadd.f32 %v660, %v849
      %v917 = vadd.f32 %v662, %v851
      %v918 = vadd.f32 %v665, %v854
      %v919 = vadd.f32 %v667, %v856
      %v920 = vadd.f32 %v670, %v859
      %v921 = vadd.f32 %v672, %v861
      %v922 = vadd.f32 %v675, %v864
      %v923 = vadd.f32 %v677, %v866
      %v924 = vadd.f32 %v680, %v869
      %v925 = vadd.f32 %v682, %v871
      %v926 = vadd.f32 %v685, %v874
      %v927 = vadd.f32 %v687, %v876
      %v928 = vadd.f32 %v690, %v879
      %v929 = vadd.f32 %v692, %v881
      %v930 = vadd.f32 %v695, %v884
      %v931 = vadd.f32 %v697, %v886
      %v932 = vadd.f32 %v700, %v889
      %v933 = vadd.f32 %v702, %v891
      %v934 = vadd.f32 %v705, %v894
      %v935 = vadd.f32 %v707, %v896
      %v936 = vadd.f32 %v710, %v899
      %v937 = vadd.f32 %v712, %v901
      %v938 = vadd.f32 %v715, %v904
      %v939 = vadd.f32 %v717, %v906
      %v940 = vld [vmem:[%s303] sm:$0xff]
      %v941 = vld [vmem:[%s303 + $0x8] sm:$0xff]
      %v942 = vld [vmem:[%s303 + $0x18] sm:$0xff]
      %v943 = vld [vmem:[%s303 + $0x20] sm:$0xff]
      %v944 = vld [vmem:[%s303 + $0x30] sm:$0xff]
      %v945 = vld [vmem:[%s303 + $0x38] sm:$0xff]
      %v946 = vld [vmem:[%s303 + $0x48] sm:$0xff]
      %v947 = vld [vmem:[%s303 + $0x50] sm:$0xff]
      %v948 = vld [vmem:[%s303 + $0x60] sm:$0xff]
      %v949 = vld [vmem:[%s303 + $0x68] sm:$0xff]
      %v950 = vld [vmem:[%s303 + $0x78] sm:$0xff]
      %v951 = vld [vmem:[%s303 + $0x80] sm:$0xff]
      %v952 = vld [vmem:[%s303 + $0x90] sm:$0xff]
      %v953 = vld [vmem:[%s303 + $0x98] sm:$0xff]
      %v954 = vld [vmem:[%s303 + $0xa8] sm:$0xff]
      %v955 = vld [vmem:[%s303 + $0xb0] sm:$0xff]
      %v956 = vld [vmem:[%s303 + $0xc0] sm:$0xff]
      %v957 = vld [vmem:[%s303 + $0xc8] sm:$0xff]
      %v958 = vld [vmem:[%s303 + $0xd8] sm:$0xff]
      %v959 = vld [vmem:[%s303 + $0xe0] sm:$0xff]
      %v960 = vld [vmem:[%s303 + $0xf0] sm:$0xff]
      %v961 = vld [vmem:[%s303 + $0xf8] sm:$0xff]
      %v962 = vld [vmem:[%s303 + $0x108] sm:$0xff]
      %v963 = vld [vmem:[%s303 + $0x110] sm:$0xff]
      %v964 = vld [vmem:[%s303 + $0x120] sm:$0xff]
      %v965 = vld [vmem:[%s303 + $0x128] sm:$0xff]
      %v966 = vld [vmem:[%s303 + $0x138] sm:$0xff]
      %v967 = vld [vmem:[%s303 + $0x140] sm:$0xff]
      %v968 = vld [vmem:[%s303 + $0x150] sm:$0xff]
      %v969 = vld [vmem:[%s303 + $0x158] sm:$0xff]
      %v970 = vld [vmem:[%s303 + $0x168] sm:$0xff]
      %v971 = vld [vmem:[%s303 + $0x170] sm:$0xff]
      %v972 = vpack.c.bf16 %v941, %v940
      %v973 = vpack.c.bf16 %v943, %v942
      %v974 = vpack.c.bf16 %v945, %v944
      %v975 = vpack.c.bf16 %v947, %v946
      %v976 = vpack.c.bf16 %v949, %v948
      %v977 = vpack.c.bf16 %v951, %v950
      %v978 = vpack.c.bf16 %v953, %v952
      %v979 = vpack.c.bf16 %v955, %v954
      %v980 = vpack.c.bf16 %v957, %v956
      %v981 = vpack.c.bf16 %v959, %v958
      %v982 = vpack.c.bf16 %v961, %v960
      %v983 = vpack.c.bf16 %v963, %v962
      %v984 = vpack.c.bf16 %v965, %v964
      %v985 = vpack.c.bf16 %v967, %v966
      %v986 = vpack.c.bf16 %v969, %v968
      %v987 = vpack.c.bf16 %v971, %v970
      %v988 = vld [vmem:[%s1 + $0x4] sm:$0xc]
      %v990 = vunpack.c.l.b16 %v988
      %v991 = vpack.c.b16 %v990, %v990
      %v992 = vrot.slane %v991, 2
      %v994 = vsel %vm257, %v972, 0
      %v997 = vsel %vm257, %v973, 0
      %v1000 = vsel %vm257, %v974, 0
      %v1003 = vsel %vm257, %v975, 0
      %v1006 = vsel %vm257, %v976, 0
      %v1009 = vsel %vm257, %v977, 0
      %v1012 = vsel %vm257, %v978, 0
      %v1015 = vsel %vm257, %v979, 0
      %v1018 = vsel %vm257, %v980, 0
      %v1021 = vsel %vm257, %v981, 0
      %v1024 = vsel %vm257, %v982, 0
      %v1027 = vsel %vm257, %v983, 0
      %v1030 = vsel %vm257, %v984, 0
      %v1033 = vsel %vm257, %v985, 0
      %v1036 = vsel %vm257, %v986, 0
      %v1039 = vsel %vm257, %v987, 0
      %v1042 = vsel %vm486, %v992, 0
      %1044 = vmatpush.bf16.msra.mxu0 0
      %1045 = vmatpush.bf16.msra.mxu0 0
      %1046 = vmatpush.bf16.msra.mxu0 0
      %1047 = vmatpush.bf16.msra.mxu0 0
      %1048 = vmatpush.bf16.msra.mxu0 0
      %1049 = vmatpush.bf16.msra.mxu0 0
      %1050 = vmatpush.bf16.msra.mxu0 0
      %1051 = vmatpush.bf16.msra.mxu0 %v1042
      %1052 = vmatmul.bf16.gmra.mxu0 %v994
      %v1053 = vpop.f32.mrf.mxu0
      %v1054 = vadd.f32 0.0, %v1053
      %v1055 = vpop.f32.mrf.mxu0
      %v1056 = vadd.f32 0.0, %v1055
      %1057 = vmatmul.bf16.gmra.mxu0 %v997
      %v1058 = vpop.f32.mrf.mxu0
      %v1059 = vadd.f32 0.0, %v1058
      %v1060 = vpop.f32.mrf.mxu0
      %v1061 = vadd.f32 0.0, %v1060
      %1062 = vmatmul.bf16.gmra.mxu0 %v1000
      %v1063 = vpop.f32.mrf.mxu0
      %v1064 = vadd.f32 0.0, %v1063
      %v1065 = vpop.f32.mrf.mxu0
      %v1066 = vadd.f32 0.0, %v1065
      %1067 = vmatmul.bf16.gmra.mxu0 %v1003
      %v1068 = vpop.f32.mrf.mxu0
      %v1069 = vadd.f32 0.0, %v1068
      %v1070 = vpop.f32.mrf.mxu0
      %v1071 = vadd.f32 0.0, %v1070
      %1072 = vmatmul.bf16.gmra.mxu0 %v1006
      %v1073 = vpop.f32.mrf.mxu0
      %v1074 = vadd.f32 0.0, %v1073
      %v1075 = vpop.f32.mrf.mxu0
      %v1076 = vadd.f32 0.0, %v1075
      %1077 = vmatmul.bf16.gmra.mxu0 %v1009
      %v1078 = vpop.f32.mrf.mxu0
      %v1079 = vadd.f32 0.0, %v1078
      %v1080 = vpop.f32.mrf.mxu0
      %v1081 = vadd.f32 0.0, %v1080
      %1082 = vmatmul.bf16.gmra.mxu0 %v1012
      %v1083 = vpop.f32.mrf.mxu0
      %v1084 = vadd.f32 0.0, %v1083
      %v1085 = vpop.f32.mrf.mxu0
      %v1086 = vadd.f32 0.0, %v1085
      %1087 = vmatmul.bf16.gmra.mxu0 %v1015
      %v1088 = vpop.f32.mrf.mxu0
      %v1089 = vadd.f32 0.0, %v1088
      %v1090 = vpop.f32.mrf.mxu0
      %v1091 = vadd.f32 0.0, %v1090
      %1092 = vmatmul.bf16.gmra.mxu0 %v1018
      %v1093 = vpop.f32.mrf.mxu0
      %v1094 = vadd.f32 0.0, %v1093
      %v1095 = vpop.f32.mrf.mxu0
      %v1096 = vadd.f32 0.0, %v1095
      %1097 = vmatmul.bf16.gmra.mxu0 %v1021
      %v1098 = vpop.f32.mrf.mxu0
      %v1099 = vadd.f32 0.0, %v1098
      %v1100 = vpop.f32.mrf.mxu0
      %v1101 = vadd.f32 0.0, %v1100
      %1102 = vmatmul.bf16.gmra.mxu0 %v1024
      %v1103 = vpop.f32.mrf.mxu0
      %v1104 = vadd.f32 0.0, %v1103
      %v1105 = vpop.f32.mrf.mxu0
      %v1106 = vadd.f32 0.0, %v1105
      %1107 = vmatmul.bf16.gmra.mxu0 %v1027
      %v1108 = vpop.f32.mrf.mxu0
      %v1109 = vadd.f32 0.0, %v1108
      %v1110 = vpop.f32.mrf.mxu0
      %v1111 = vadd.f32 0.0, %v1110
      %1112 = vmatmul.bf16.gmra.mxu0 %v1030
      %v1113 = vpop.f32.mrf.mxu0
      %v1114 = vadd.f32 0.0, %v1113
      %v1115 = vpop.f32.mrf.mxu0
      %v1116 = vadd.f32 0.0, %v1115
      %1117 = vmatmul.bf16.gmra.mxu0 %v1033
      %v1118 = vpop.f32.mrf.mxu0
      %v1119 = vadd.f32 0.0, %v1118
      %v1120 = vpop.f32.mrf.mxu0
      %v1121 = vadd.f32 0.0, %v1120
      %1122 = vmatmul.bf16.gmra.mxu0 %v1036
      %v1123 = vpop.f32.mrf.mxu0
      %v1124 = vadd.f32 0.0, %v1123
      %v1125 = vpop.f32.mrf.mxu0
      %v1126 = vadd.f32 0.0, %v1125
      %1127 = vmatmul.bf16.gmra.mxu0 %v1039
      %v1128 = vpop.f32.mrf.mxu0
      %v1129 = vadd.f32 0.0, %v1128
      %v1130 = vpop.f32.mrf.mxu0
      %v1131 = vadd.f32 0.0, %v1130
      %1132 = vdwg.mxu0
      %v1133 = vadd.f32 %v908, %v1054
      %v1134 = vadd.f32 %v909, %v1056
      %v1135 = vadd.f32 %v910, %v1059
      %v1136 = vadd.f32 %v911, %v1061
      %v1137 = vadd.f32 %v912, %v1064
      %v1138 = vadd.f32 %v913, %v1066
      %v1139 = vadd.f32 %v914, %v1069
      %v1140 = vadd.f32 %v915, %v1071
      %v1141 = vadd.f32 %v916, %v1074
      %v1142 = vadd.f32 %v917, %v1076
      %v1143 = vadd.f32 %v918, %v1079
      %v1144 = vadd.f32 %v919, %v1081
      %v1145 = vadd.f32 %v920, %v1084
      %v1146 = vadd.f32 %v921, %v1086
      %v1147 = vadd.f32 %v922, %v1089
      %v1148 = vadd.f32 %v923, %v1091
      %v1149 = vadd.f32 %v924, %v1094
      %v1150 = vadd.f32 %v925, %v1096
      %v1151 = vadd.f32 %v926, %v1099
      %v1152 = vadd.f32 %v927, %v1101
      %v1153 = vadd.f32 %v928, %v1104
      %v1154 = vadd.f32 %v929, %v1106
      %v1155 = vadd.f32 %v930, %v1109
      %v1156 = vadd.f32 %v931, %v1111
      %v1157 = vadd.f32 %v932, %v1114
      %v1158 = vadd.f32 %v933, %v1116
      %v1159 = vadd.f32 %v934, %v1119
      %v1160 = vadd.f32 %v935, %v1121
      %v1161 = vadd.f32 %v936, %v1124
      %v1162 = vadd.f32 %v937, %v1126
      %v1163 = vadd.f32 %v938, %v1129
      %v1164 = vadd.f32 %v939, %v1131
      %v1165 = vld [vmem:[%s303 + $0x1] sm:$0xff]
      %v1166 = vld [vmem:[%s303 + $0x9] sm:$0xff]
      %v1167 = vld [vmem:[%s303 + $0x19] sm:$0xff]
      %v1168 = vld [vmem:[%s303 + $0x21] sm:$0xff]
      %v1169 = vld [vmem:[%s303 + $0x31] sm:$0xff]
      %v1170 = vld [vmem:[%s303 + $0x39] sm:$0xff]
      %v1171 = vld [vmem:[%s303 + $0x49] sm:$0xff]
      %v1172 = vld [vmem:[%s303 + $0x51] sm:$0xff]
      %v1173 = vld [vmem:[%s303 + $0x61] sm:$0xff]
      %v1174 = vld [vmem:[%s303 + $0x69] sm:$0xff]
      %v1175 = vld [vmem:[%s303 + $0x79] sm:$0xff]
      %v1176 = vld [vmem:[%s303 + $0x81] sm:$0xff]
      %v1177 = vld [vmem:[%s303 + $0x91] sm:$0xff]
      %v1178 = vld [vmem:[%s303 + $0x99] sm:$0xff]
      %v1179 = vld [vmem:[%s303 + $0xa9] sm:$0xff]
      %v1180 = vld [vmem:[%s303 + $0xb1] sm:$0xff]
      %v1181 = vld [vmem:[%s303 + $0xc1] sm:$0xff]
      %v1182 = vld [vmem:[%s303 + $0xc9] sm:$0xff]
      %v1183 = vld [vmem:[%s303 + $0xd9] sm:$0xff]
      %v1184 = vld [vmem:[%s303 + $0xe1] sm:$0xff]
      %v1185 = vld [vmem:[%s303 + $0xf1] sm:$0xff]
      %v1186 = vld [vmem:[%s303 + $0xf9] sm:$0xff]
      %v1187 = vld [vmem:[%s303 + $0x109] sm:$0xff]
      %v1188 = vld [vmem:[%s303 + $0x111] sm:$0xff]
      %v1189 = vld [vmem:[%s303 + $0x121] sm:$0xff]
      %v1190 = vld [vmem:[%s303 + $0x129] sm:$0xff]
      %v1191 = vld [vmem:[%s303 + $0x139] sm:$0xff]
      %v1192 = vld [vmem:[%s303 + $0x141] sm:$0xff]
      %v1193 = vld [vmem:[%s303 + $0x151] sm:$0xff]
      %v1194 = vld [vmem:[%s303 + $0x159] sm:$0xff]
      %v1195 = vld [vmem:[%s303 + $0x169] sm:$0xff]
      %v1196 = vld [vmem:[%s303 + $0x171] sm:$0xff]
      %v1197 = vpack.c.bf16 %v1166, %v1165
      %v1198 = vpack.c.bf16 %v1168, %v1167
      %v1199 = vpack.c.bf16 %v1170, %v1169
      %v1200 = vpack.c.bf16 %v1172, %v1171
      %v1201 = vpack.c.bf16 %v1174, %v1173
      %v1202 = vpack.c.bf16 %v1176, %v1175
      %v1203 = vpack.c.bf16 %v1178, %v1177
      %v1204 = vpack.c.bf16 %v1180, %v1179
      %v1205 = vpack.c.bf16 %v1182, %v1181
      %v1206 = vpack.c.bf16 %v1184, %v1183
      %v1207 = vpack.c.bf16 %v1186, %v1185
      %v1208 = vpack.c.bf16 %v1188, %v1187
      %v1209 = vpack.c.bf16 %v1190, %v1189
      %v1210 = vpack.c.bf16 %v1192, %v1191
      %v1211 = vpack.c.bf16 %v1194, %v1193
      %v1212 = vpack.c.bf16 %v1196, %v1195
      %v1213 = vld [vmem:[%s1 + $0x8] sm:$0x3]
      %v1215 = vsel %vm257, %v1197, 0
      %v1218 = vsel %vm257, %v1198, 0
      %v1221 = vsel %vm257, %v1199, 0
      %v1224 = vsel %vm257, %v1200, 0
      %v1227 = vsel %vm257, %v1201, 0
      %v1230 = vsel %vm257, %v1202, 0
      %v1233 = vsel %vm257, %v1203, 0
      %v1236 = vsel %vm257, %v1204, 0
      %v1239 = vsel %vm257, %v1205, 0
      %v1242 = vsel %vm257, %v1206, 0
      %v1245 = vsel %vm257, %v1207, 0
      %v1248 = vsel %vm257, %v1208, 0
      %v1251 = vsel %vm257, %v1209, 0
      %v1254 = vsel %vm257, %v1210, 0
      %v1257 = vsel %vm257, %v1211, 0
      %v1260 = vsel %vm257, %v1212, 0
      %v1263 = vsel %vm486, %v1213, 0
      %1265 = vmatpush.bf16.msra.mxu0 0
      %1266 = vmatpush.bf16.msra.mxu0 0
      %1267 = vmatpush.bf16.msra.mxu0 0
      %1268 = vmatpush.bf16.msra.mxu0 0
      %1269 = vmatpush.bf16.msra.mxu0 0
      %1270 = vmatpush.bf16.msra.mxu0 0
      %1271 = vmatpush.bf16.msra.mxu0 0
      %1272 = vmatpush.bf16.msra.mxu0 %v1263
      %1273 = vmatmul.bf16.gmra.mxu0 %v1215
      %v1274 = vpop.f32.mrf.mxu0
      %v1275 = vadd.f32 0.0, %v1274
      %v1276 = vpop.f32.mrf.mxu0
      %v1277 = vadd.f32 0.0, %v1276
      %1278 = vmatmul.bf16.gmra.mxu0 %v1218
      %v1279 = vpop.f32.mrf.mxu0
      %v1280 = vadd.f32 0.0, %v1279
      %v1281 = vpop.f32.mrf.mxu0
      %v1282 = vadd.f32 0.0, %v1281
      %1283 = vmatmul.bf16.gmra.mxu0 %v1221
      %v1284 = vpop.f32.mrf.mxu0
      %v1285 = vadd.f32 0.0, %v1284
      %v1286 = vpop.f32.mrf.mxu0
      %v1287 = vadd.f32 0.0, %v1286
      %1288 = vmatmul.bf16.gmra.mxu0 %v1224
      %v1289 = vpop.f32.mrf.mxu0
      %v1290 = vadd.f32 0.0, %v1289
      %v1291 = vpop.f32.mrf.mxu0
      %v1292 = vadd.f32 0.0, %v1291
      %1293 = vmatmul.bf16.gmra.mxu0 %v1227
      %v1294 = vpop.f32.mrf.mxu0
      %v1295 = vadd.f32 0.0, %v1294
      %v1296 = vpop.f32.mrf.mxu0
      %v1297 = vadd.f32 0.0, %v1296
      %1298 = vmatmul.bf16.gmra.mxu0 %v1230
      %v1299 = vpop.f32.mrf.mxu0
      %v1300 = vadd.f32 0.0, %v1299
      %v1301 = vpop.f32.mrf.mxu0
      %v1302 = vadd.f32 0.0, %v1301
      %1303 = vmatmul.bf16.gmra.mxu0 %v1233
      %v1304 = vpop.f32.mrf.mxu0
      %v1305 = vadd.f32 0.0, %v1304
      %v1306 = vpop.f32.mrf.mxu0
      %v1307 = vadd.f32 0.0, %v1306
      %1308 = vmatmul.bf16.gmra.mxu0 %v1236
      %v1309 = vpop.f32.mrf.mxu0
      %v1310 = vadd.f32 0.0, %v1309
      %v1311 = vpop.f32.mrf.mxu0
      %v1312 = vadd.f32 0.0, %v1311
      %1313 = vmatmul.bf16.gmra.mxu0 %v1239
      %v1314 = vpop.f32.mrf.mxu0
      %v1315 = vadd.f32 0.0, %v1314
      %v1316 = vpop.f32.mrf.mxu0
      %v1317 = vadd.f32 0.0, %v1316
      %1318 = vmatmul.bf16.gmra.mxu0 %v1242
      %v1319 = vpop.f32.mrf.mxu0
      %v1320 = vadd.f32 0.0, %v1319
      %v1321 = vpop.f32.mrf.mxu0
      %v1322 = vadd.f32 0.0, %v1321
      %1323 = vmatmul.bf16.gmra.mxu0 %v1245
      %v1324 = vpop.f32.mrf.mxu0
      %v1325 = vadd.f32 0.0, %v1324
      %v1326 = vpop.f32.mrf.mxu0
      %v1327 = vadd.f32 0.0, %v1326
      %1328 = vmatmul.bf16.gmra.mxu0 %v1248
      %v1329 = vpop.f32.mrf.mxu0
      %v1330 = vadd.f32 0.0, %v1329
      %v1331 = vpop.f32.mrf.mxu0
      %v1332 = vadd.f32 0.0, %v1331
      %1333 = vmatmul.bf16.gmra.mxu0 %v1251
      %v1334 = vpop.f32.mrf.mxu0
      %v1335 = vadd.f32 0.0, %v1334
      %v1336 = vpop.f32.mrf.mxu0
      %v1337 = vadd.f32 0.0, %v1336
      %1338 = vmatmul.bf16.gmra.mxu0 %v1254
      %v1339 = vpop.f32.mrf.mxu0
      %v1340 = vadd.f32 0.0, %v1339
      %v1341 = vpop.f32.mrf.mxu0
      %v1342 = vadd.f32 0.0, %v1341
      %1343 = vmatmul.bf16.gmra.mxu0 %v1257
      %v1344 = vpop.f32.mrf.mxu0
      %v1345 = vadd.f32 0.0, %v1344
      %v1346 = vpop.f32.mrf.mxu0
      %v1347 = vadd.f32 0.0, %v1346
      %1348 = vmatmul.bf16.gmra.mxu0 %v1260
      %v1349 = vpop.f32.mrf.mxu0
      %v1350 = vadd.f32 0.0, %v1349
      %v1351 = vpop.f32.mrf.mxu0
      %v1352 = vadd.f32 0.0, %v1351
      %1353 = vdwg.mxu0
      %v1354 = vadd.f32 %v1133, %v1275
      %v1355 = vadd.f32 %v1134, %v1277
      %v1356 = vadd.f32 %v1135, %v1280
      %v1357 = vadd.f32 %v1136, %v1282
      %v1358 = vadd.f32 %v1137, %v1285
      %v1359 = vadd.f32 %v1138, %v1287
      %v1360 = vadd.f32 %v1139, %v1290
      %v1361 = vadd.f32 %v1140, %v1292
      %v1362 = vadd.f32 %v1141, %v1295
      %v1363 = vadd.f32 %v1142, %v1297
      %v1364 = vadd.f32 %v1143, %v1300
      %v1365 = vadd.f32 %v1144, %v1302
      %v1366 = vadd.f32 %v1145, %v1305
      %v1367 = vadd.f32 %v1146, %v1307
      %v1368 = vadd.f32 %v1147, %v1310
      %v1369 = vadd.f32 %v1148, %v1312
      %v1370 = vadd.f32 %v1149, %v1315
      %v1371 = vadd.f32 %v1150, %v1317
      %v1372 = vadd.f32 %v1151, %v1320
      %v1373 = vadd.f32 %v1152, %v1322
      %v1374 = vadd.f32 %v1153, %v1325
      %v1375 = vadd.f32 %v1154, %v1327
      %v1376 = vadd.f32 %v1155, %v1330
      %v1377 = vadd.f32 %v1156, %v1332
      %v1378 = vadd.f32 %v1157, %v1335
      %v1379 = vadd.f32 %v1158, %v1337
      %v1380 = vadd.f32 %v1159, %v1340
      %v1381 = vadd.f32 %v1160, %v1342
      %v1382 = vadd.f32 %v1161, %v1345
      %v1383 = vadd.f32 %v1162, %v1347
      %v1384 = vadd.f32 %v1163, %v1350
      %v1385 = vadd.f32 %v1164, %v1352
      %v1386 = vld [vmem:[%s303 + $0x2] sm:$0xff]
      %v1387 = vld [vmem:[%s303 + $0xa] sm:$0xff]
      %v1388 = vld [vmem:[%s303 + $0x1a] sm:$0xff]
      %v1389 = vld [vmem:[%s303 + $0x22] sm:$0xff]
      %v1390 = vld [vmem:[%s303 + $0x32] sm:$0xff]
      %v1391 = vld [vmem:[%s303 + $0x3a] sm:$0xff]
      %v1392 = vld [vmem:[%s303 + $0x4a] sm:$0xff]
      %v1393 = vld [vmem:[%s303 + $0x52] sm:$0xff]
      %v1394 = vld [vmem:[%s303 + $0x62] sm:$0xff]
      %v1395 = vld [vmem:[%s303 + $0x6a] sm:$0xff]
      %v1396 = vld [vmem:[%s303 + $0x7a] sm:$0xff]
      %v1397 = vld [vmem:[%s303 + $0x82] sm:$0xff]
      %v1398 = vld [vmem:[%s303 + $0x92] sm:$0xff]
      %v1399 = vld [vmem:[%s303 + $0x9a] sm:$0xff]
      %v1400 = vld [vmem:[%s303 + $0xaa] sm:$0xff]
      %v1401 = vld [vmem:[%s303 + $0xb2] sm:$0xff]
      %v1402 = vld [vmem:[%s303 + $0xc2] sm:$0xff]
      %v1403 = vld [vmem:[%s303 + $0xca] sm:$0xff]
      %v1404 = vld [vmem:[%s303 + $0xda] sm:$0xff]
      %v1405 = vld [vmem:[%s303 + $0xe2] sm:$0xff]
      %v1406 = vld [vmem:[%s303 + $0xf2] sm:$0xff]
      %v1407 = vld [vmem:[%s303 + $0xfa] sm:$0xff]
      %v1408 = vld [vmem:[%s303 + $0x10a] sm:$0xff]
      %v1409 = vld [vmem:[%s303 + $0x112] sm:$0xff]
      %v1410 = vld [vmem:[%s303 + $0x122] sm:$0xff]
      %v1411 = vld [vmem:[%s303 + $0x12a] sm:$0xff]
      %v1412 = vld [vmem:[%s303 + $0x13a] sm:$0xff]
      %v1413 = vld [vmem:[%s303 + $0x142] sm:$0xff]
      %v1414 = vld [vmem:[%s303 + $0x152] sm:$0xff]
      %v1415 = vld [vmem:[%s303 + $0x15a] sm:$0xff]
      %v1416 = vld [vmem:[%s303 + $0x16a] sm:$0xff]
      %v1417 = vld [vmem:[%s303 + $0x172] sm:$0xff]
      %v1418 = vpack.c.bf16 %v1387, %v1386
      %v1419 = vpack.c.bf16 %v1389, %v1388
      %v1420 = vpack.c.bf16 %v1391, %v1390
      %v1421 = vpack.c.bf16 %v1393, %v1392
      %v1422 = vpack.c.bf16 %v1395, %v1394
      %v1423 = vpack.c.bf16 %v1397, %v1396
      %v1424 = vpack.c.bf16 %v1399, %v1398
      %v1425 = vpack.c.bf16 %v1401, %v1400
      %v1426 = vpack.c.bf16 %v1403, %v1402
      %v1427 = vpack.c.bf16 %v1405, %v1404
      %v1428 = vpack.c.bf16 %v1407, %v1406
      %v1429 = vpack.c.bf16 %v1409, %v1408
      %v1430 = vpack.c.bf16 %v1411, %v1410
      %v1431 = vpack.c.bf16 %v1413, %v1412
      %v1432 = vpack.c.bf16 %v1415, %v1414
      %v1433 = vpack.c.bf16 %v1417, %v1416
      %v1434 = vld [vmem:[%s1 + $0x8] sm:$0xc]
      %v1436 = vunpack.c.l.b16 %v1434
      %v1437 = vpack.c.b16 %v1436, %v1436
      %v1438 = vrot.slane %v1437, 2
      %v1440 = vsel %vm257, %v1418, 0
      %v1443 = vsel %vm257, %v1419, 0
      %v1446 = vsel %vm257, %v1420, 0
      %v1449 = vsel %vm257, %v1421, 0
      %v1452 = vsel %vm257, %v1422, 0
      %v1455 = vsel %vm257, %v1423, 0
      %v1458 = vsel %vm257, %v1424, 0
      %v1461 = vsel %vm257, %v1425, 0
      %v1464 = vsel %vm257, %v1426, 0
      %v1467 = vsel %vm257, %v1427, 0
      %v1470 = vsel %vm257, %v1428, 0
      %v1473 = vsel %vm257, %v1429, 0
      %v1476 = vsel %vm257, %v1430, 0
      %v1479 = vsel %vm257, %v1431, 0
      %v1482 = vsel %vm257, %v1432, 0
      %v1485 = vsel %vm257, %v1433, 0
      %v1488 = vsel %vm486, %v1438, 0
      %1490 = vmatpush.bf16.msra.mxu0 0
      %1491 = vmatpush.bf16.msra.mxu0 0
      %1492 = vmatpush.bf16.msra.mxu0 0
      %1493 = vmatpush.bf16.msra.mxu0 0
      %1494 = vmatpush.bf16.msra.mxu0 0
      %1495 = vmatpush.bf16.msra.mxu0 0
      %1496 = vmatpush.bf16.msra.mxu0 0
      %1497 = vmatpush.bf16.msra.mxu0 %v1488
      %1498 = vmatmul.bf16.gmra.mxu0 %v1440
      %v1499 = vpop.f32.mrf.mxu0
      %v1500 = vadd.f32 0.0, %v1499
      %v1501 = vpop.f32.mrf.mxu0
      %v1502 = vadd.f32 0.0, %v1501
      %1503 = vmatmul.bf16.gmra.mxu0 %v1443
      %v1504 = vpop.f32.mrf.mxu0
      %v1505 = vadd.f32 0.0, %v1504
      %v1506 = vpop.f32.mrf.mxu0
      %v1507 = vadd.f32 0.0, %v1506
      %1508 = vmatmul.bf16.gmra.mxu0 %v1446
      %v1509 = vpop.f32.mrf.mxu0
      %v1510 = vadd.f32 0.0, %v1509
      %v1511 = vpop.f32.mrf.mxu0
      %v1512 = vadd.f32 0.0, %v1511
      %1513 = vmatmul.bf16.gmra.mxu0 %v1449
      %v1514 = vpop.f32.mrf.mxu0
      %v1515 = vadd.f32 0.0, %v1514
      %v1516 = vpop.f32.mrf.mxu0
      %v1517 = vadd.f32 0.0, %v1516
      %1518 = vmatmul.bf16.gmra.mxu0 %v1452
      %v1519 = vpop.f32.mrf.mxu0
      %v1520 = vadd.f32 0.0, %v1519
      %v1521 = vpop.f32.mrf.mxu0
      %v1522 = vadd.f32 0.0, %v1521
      %1523 = vmatmul.bf16.gmra.mxu0 %v1455
      %v1524 = vpop.f32.mrf.mxu0
      %v1525 = vadd.f32 0.0, %v1524
      %v1526 = vpop.f32.mrf.mxu0
      %v1527 = vadd.f32 0.0, %v1526
      %1528 = vmatmul.bf16.gmra.mxu0 %v1458
      %v1529 = vpop.f32.mrf.mxu0
      %v1530 = vadd.f32 0.0, %v1529
      %v1531 = vpop.f32.mrf.mxu0
      %v1532 = vadd.f32 0.0, %v1531
      %1533 = vmatmul.bf16.gmra.mxu0 %v1461
      %v1534 = vpop.f32.mrf.mxu0
      %v1535 = vadd.f32 0.0, %v1534
      %v1536 = vpop.f32.mrf.mxu0
      %v1537 = vadd.f32 0.0, %v1536
      %1538 = vmatmul.bf16.gmra.mxu0 %v1464
      %v1539 = vpop.f32.mrf.mxu0
      %v1540 = vadd.f32 0.0, %v1539
      %v1541 = vpop.f32.mrf.mxu0
      %v1542 = vadd.f32 0.0, %v1541
      %1543 = vmatmul.bf16.gmra.mxu0 %v1467
      %v1544 = vpop.f32.mrf.mxu0
      %v1545 = vadd.f32 0.0, %v1544
      %v1546 = vpop.f32.mrf.mxu0
      %v1547 = vadd.f32 0.0, %v1546
      %1548 = vmatmul.bf16.gmra.mxu0 %v1470
      %v1549 = vpop.f32.mrf.mxu0
      %v1550 = vadd.f32 0.0, %v1549
      %v1551 = vpop.f32.mrf.mxu0
      %v1552 = vadd.f32 0.0, %v1551
      %1553 = vmatmul.bf16.gmra.mxu0 %v1473
      %v1554 = vpop.f32.mrf.mxu0
      %v1555 = vadd.f32 0.0, %v1554
      %v1556 = vpop.f32.mrf.mxu0
      %v1557 = vadd.f32 0.0, %v1556
      %1558 = vmatmul.bf16.gmra.mxu0 %v1476
      %v1559 = vpop.f32.mrf.mxu0
      %v1560 = vadd.f32 0.0, %v1559
      %v1561 = vpop.f32.mrf.mxu0
      %v1562 = vadd.f32 0.0, %v1561
      %1563 = vmatmul.bf16.gmra.mxu0 %v1479
      %v1564 = vpop.f32.mrf.mxu0
      %v1565 = vadd.f32 0.0, %v1564
      %v1566 = vpop.f32.mrf.mxu0
      %v1567 = vadd.f32 0.0, %v1566
      %1568 = vmatmul.bf16.gmra.mxu0 %v1482
      %v1569 = vpop.f32.mrf.mxu0
      %v1570 = vadd.f32 0.0, %v1569
      %v1571 = vpop.f32.mrf.mxu0
      %v1572 = vadd.f32 0.0, %v1571
      %1573 = vmatmul.bf16.gmra.mxu0 %v1485
      %v1574 = vpop.f32.mrf.mxu0
      %v1575 = vadd.f32 0.0, %v1574
      %v1576 = vpop.f32.mrf.mxu0
      %v1577 = vadd.f32 0.0, %v1576
      %1578 = vdwg.mxu0
      %v1579 = vadd.f32 %v1354, %v1500
      %v1580 = vadd.f32 %v1355, %v1502
      %v1581 = vadd.f32 %v1356, %v1505
      %v1582 = vadd.f32 %v1357, %v1507
      %v1583 = vadd.f32 %v1358, %v1510
      %v1584 = vadd.f32 %v1359, %v1512
      %v1585 = vadd.f32 %v1360, %v1515
      %v1586 = vadd.f32 %v1361, %v1517
      %v1587 = vadd.f32 %v1362, %v1520
      %v1588 = vadd.f32 %v1363, %v1522
      %v1589 = vadd.f32 %v1364, %v1525
      %v1590 = vadd.f32 %v1365, %v1527
      %v1591 = vadd.f32 %v1366, %v1530
      %v1592 = vadd.f32 %v1367, %v1532
      %v1593 = vadd.f32 %v1368, %v1535
      %v1594 = vadd.f32 %v1369, %v1537
      %v1595 = vadd.f32 %v1370, %v1540
      %v1596 = vadd.f32 %v1371, %v1542
      %v1597 = vadd.f32 %v1372, %v1545
      %v1598 = vadd.f32 %v1373, %v1547
      %v1599 = vadd.f32 %v1374, %v1550
      %v1600 = vadd.f32 %v1375, %v1552
      %v1601 = vadd.f32 %v1376, %v1555
      %v1602 = vadd.f32 %v1377, %v1557
      %v1603 = vadd.f32 %v1378, %v1560
      %v1604 = vadd.f32 %v1379, %v1562
      %v1605 = vadd.f32 %v1380, %v1565
      %v1606 = vadd.f32 %v1381, %v1567
      %v1607 = vadd.f32 %v1382, %v1570
      %v1608 = vadd.f32 %v1383, %v1572
      %v1609 = vadd.f32 %v1384, %v1575
      %v1610 = vadd.f32 %v1385, %v1577
      %s1611 = scalar_lea.vmem [#allocation2], 48
      %v1612 = vld [vmem:[%s1611] sm:$0xff]
      %v1613 = vld [vmem:[%s1611 + $0x8] sm:$0xff]
      %v1614 = vld [vmem:[%s1611 + $0x18] sm:$0xff]
      %v1615 = vld [vmem:[%s1611 + $0x20] sm:$0xff]
      %v1616 = vld [vmem:[%s1611 + $0x30] sm:$0xff]
      %v1617 = vld [vmem:[%s1611 + $0x38] sm:$0xff]
      %v1618 = vld [vmem:[%s1611 + $0x48] sm:$0xff]
      %v1619 = vld [vmem:[%s1611 + $0x50] sm:$0xff]
      %v1620 = vld [vmem:[%s1611 + $0x60] sm:$0xff]
      %v1621 = vld [vmem:[%s1611 + $0x68] sm:$0xff]
      %v1622 = vld [vmem:[%s1611 + $0x78] sm:$0xff]
      %v1623 = vld [vmem:[%s1611 + $0x80] sm:$0xff]
      %v1624 = vld [vmem:[%s1611 + $0x90] sm:$0xff]
      %v1625 = vld [vmem:[%s1611 + $0x98] sm:$0xff]
      %v1626 = vld [vmem:[%s1611 + $0xa8] sm:$0xff]
      %v1627 = vld [vmem:[%s1611 + $0xb0] sm:$0xff]
      %v1628 = vld [vmem:[%s1611 + $0xc0] sm:$0xff]
      %v1629 = vld [vmem:[%s1611 + $0xc8] sm:$0xff]
      %v1630 = vld [vmem:[%s1611 + $0xd8] sm:$0xff]
      %v1631 = vld [vmem:[%s1611 + $0xe0] sm:$0xff]
      %v1632 = vld [vmem:[%s1611 + $0xf0] sm:$0xff]
      %v1633 = vld [vmem:[%s1611 + $0xf8] sm:$0xff]
      %v1634 = vld [vmem:[%s1611 + $0x108] sm:$0xff]
      %v1635 = vld [vmem:[%s1611 + $0x110] sm:$0xff]
      %v1636 = vld [vmem:[%s1611 + $0x120] sm:$0xff]
      %v1637 = vld [vmem:[%s1611 + $0x128] sm:$0xff]
      %v1638 = vld [vmem:[%s1611 + $0x138] sm:$0xff]
      %v1639 = vld [vmem:[%s1611 + $0x140] sm:$0xff]
      %v1640 = vld [vmem:[%s1611 + $0x150] sm:$0xff]
      %v1641 = vld [vmem:[%s1611 + $0x158] sm:$0xff]
      %v1642 = vld [vmem:[%s1611 + $0x168] sm:$0xff]
      %v1643 = vld [vmem:[%s1611 + $0x170] sm:$0xff]
      %v1644 = vpack.c.bf16 %v1613, %v1612
      %v1645 = vpack.c.bf16 %v1615, %v1614
      %v1646 = vpack.c.bf16 %v1617, %v1616
      %v1647 = vpack.c.bf16 %v1619, %v1618
      %v1648 = vpack.c.bf16 %v1621, %v1620
      %v1649 = vpack.c.bf16 %v1623, %v1622
      %v1650 = vpack.c.bf16 %v1625, %v1624
      %v1651 = vpack.c.bf16 %v1627, %v1626
      %v1652 = vpack.c.bf16 %v1629, %v1628
      %v1653 = vpack.c.bf16 %v1631, %v1630
      %v1654 = vpack.c.bf16 %v1633, %v1632
      %v1655 = vpack.c.bf16 %v1635, %v1634
      %v1656 = vpack.c.bf16 %v1637, %v1636
      %v1657 = vpack.c.bf16 %v1639, %v1638
      %v1658 = vpack.c.bf16 %v1641, %v1640
      %v1659 = vpack.c.bf16 %v1643, %v1642
      %v1660 = vld [vmem:[%s1 + $0xc] sm:$0x3]
      %v1662 = vsel %vm257, %v1644, 0
      %v1665 = vsel %vm257, %v1645, 0
      %v1668 = vsel %vm257, %v1646, 0
      %v1671 = vsel %vm257, %v1647, 0
      %v1674 = vsel %vm257, %v1648, 0
      %v1677 = vsel %vm257, %v1649, 0
      %v1680 = vsel %vm257, %v1650, 0
      %v1683 = vsel %vm257, %v1651, 0
      %v1686 = vsel %vm257, %v1652, 0
      %v1689 = vsel %vm257, %v1653, 0
      %v1692 = vsel %vm257, %v1654, 0
      %v1695 = vsel %vm257, %v1655, 0
      %v1698 = vsel %vm257, %v1656, 0
      %v1701 = vsel %vm257, %v1657, 0
      %v1704 = vsel %vm257, %v1658, 0
      %v1707 = vsel %vm257, %v1659, 0
      %v1710 = vsel %vm486, %v1660, 0
      %1712 = vmatpush.bf16.msra.mxu0 0
      %1713 = vmatpush.bf16.msra.mxu0 0
      %1714 = vmatpush.bf16.msra.mxu0 0
      %1715 = vmatpush.bf16.msra.mxu0 0
      %1716 = vmatpush.bf16.msra.mxu0 0
      %1717 = vmatpush.bf16.msra.mxu0 0
      %1718 = vmatpush.bf16.msra.mxu0 0
      %1719 = vmatpush.bf16.msra.mxu0 %v1710
      %1720 = vmatmul.bf16.gmra.mxu0 %v1662
      %v1721 = vpop.f32.mrf.mxu0
      %v1722 = vadd.f32 0.0, %v1721
      %v1723 = vpop.f32.mrf.mxu0
      %v1724 = vadd.f32 0.0, %v1723
      %1725 = vmatmul.bf16.gmra.mxu0 %v1665
      %v1726 = vpop.f32.mrf.mxu0
      %v1727 = vadd.f32 0.0, %v1726
      %v1728 = vpop.f32.mrf.mxu0
      %v1729 = vadd.f32 0.0, %v1728
      %1730 = vmatmul.bf16.gmra.mxu0 %v1668
      %v1731 = vpop.f32.mrf.mxu0
      %v1732 = vadd.f32 0.0, %v1731
      %v1733 = vpop.f32.mrf.mxu0
      %v1734 = vadd.f32 0.0, %v1733
      %1735 = vmatmul.bf16.gmra.mxu0 %v1671
      %v1736 = vpop.f32.mrf.mxu0
      %v1737 = vadd.f32 0.0, %v1736
      %v1738 = vpop.f32.mrf.mxu0
      %v1739 = vadd.f32 0.0, %v1738
      %1740 = vmatmul.bf16.gmra.mxu0 %v1674
      %v1741 = vpop.f32.mrf.mxu0
      %v1742 = vadd.f32 0.0, %v1741
      %v1743 = vpop.f32.mrf.mxu0
      %v1744 = vadd.f32 0.0, %v1743
      %1745 = vmatmul.bf16.gmra.mxu0 %v1677
      %v1746 = vpop.f32.mrf.mxu0
      %v1747 = vadd.f32 0.0, %v1746
      %v1748 = vpop.f32.mrf.mxu0
      %v1749 = vadd.f32 0.0, %v1748
      %1750 = vmatmul.bf16.gmra.mxu0 %v1680
      %v1751 = vpop.f32.mrf.mxu0
      %v1752 = vadd.f32 0.0, %v1751
      %v1753 = vpop.f32.mrf.mxu0
      %v1754 = vadd.f32 0.0, %v1753
      %1755 = vmatmul.bf16.gmra.mxu0 %v1683
      %v1756 = vpop.f32.mrf.mxu0
      %v1757 = vadd.f32 0.0, %v1756
      %v1758 = vpop.f32.mrf.mxu0
      %v1759 = vadd.f32 0.0, %v1758
      %1760 = vmatmul.bf16.gmra.mxu0 %v1686
      %v1761 = vpop.f32.mrf.mxu0
      %v1762 = vadd.f32 0.0, %v1761
      %v1763 = vpop.f32.mrf.mxu0
      %v1764 = vadd.f32 0.0, %v1763
      %1765 = vmatmul.bf16.gmra.mxu0 %v1689
      %v1766 = vpop.f32.mrf.mxu0
      %v1767 = vadd.f32 0.0, %v1766
      %v1768 = vpop.f32.mrf.mxu0
      %v1769 = vadd.f32 0.0, %v1768
      %1770 = vmatmul.bf16.gmra.mxu0 %v1692
      %v1771 = vpop.f32.mrf.mxu0
      %v1772 = vadd.f32 0.0, %v1771
      %v1773 = vpop.f32.mrf.mxu0
      %v1774 = vadd.f32 0.0, %v1773
      %1775 = vmatmul.bf16.gmra.mxu0 %v1695
      %v1776 = vpop.f32.mrf.mxu0
      %v1777 = vadd.f32 0.0, %v1776
      %v1778 = vpop.f32.mrf.mxu0
      %v1779 = vadd.f32 0.0, %v1778
      %1780 = vmatmul.bf16.gmra.mxu0 %v1698
      %v1781 = vpop.f32.mrf.mxu0
      %v1782 = vadd.f32 0.0, %v1781
      %v1783 = vpop.f32.mrf.mxu0
      %v1784 = vadd.f32 0.0, %v1783
      %1785 = vmatmul.bf16.gmra.mxu0 %v1701
      %v1786 = vpop.f32.mrf.mxu0
      %v1787 = vadd.f32 0.0, %v1786
      %v1788 = vpop.f32.mrf.mxu0
      %v1789 = vadd.f32 0.0, %v1788
      %1790 = vmatmul.bf16.gmra.mxu0 %v1704
      %v1791 = vpop.f32.mrf.mxu0
      %v1792 = vadd.f32 0.0, %v1791
      %v1793 = vpop.f32.mrf.mxu0
      %v1794 = vadd.f32 0.0, %v1793
      %1795 = vmatmul.bf16.gmra.mxu0 %v1707
      %v1796 = vpop.f32.mrf.mxu0
      %v1797 = vadd.f32 0.0, %v1796
      %v1798 = vpop.f32.mrf.mxu0
      %v1799 = vadd.f32 0.0, %v1798
      %1800 = vdwg.mxu0
      %v1801 = vadd.f32 %v1579, %v1722
      %v1802 = vadd.f32 %v1580, %v1724
      %v1803 = vadd.f32 %v1581, %v1727
      %v1804 = vadd.f32 %v1582, %v1729
      %v1805 = vadd.f32 %v1583, %v1732
      %v1806 = vadd.f32 %v1584, %v1734
      %v1807 = vadd.f32 %v1585, %v1737
      %v1808 = vadd.f32 %v1586, %v1739
      %v1809 = vadd.f32 %v1587, %v1742
      %v1810 = vadd.f32 %v1588, %v1744
      %v1811 = vadd.f32 %v1589, %v1747
      %v1812 = vadd.f32 %v1590, %v1749
      %v1813 = vadd.f32 %v1591, %v1752
      %v1814 = vadd.f32 %v1592, %v1754
      %v1815 = vadd.f32 %v1593, %v1757
      %v1816 = vadd.f32 %v1594, %v1759
      %v1817 = vadd.f32 %v1595, %v1762
      %v1818 = vadd.f32 %v1596, %v1764
      %v1819 = vadd.f32 %v1597, %v1767
      %v1820 = vadd.f32 %v1598, %v1769
      %v1821 = vadd.f32 %v1599, %v1772
      %v1822 = vadd.f32 %v1600, %v1774
      %v1823 = vadd.f32 %v1601, %v1777
      %v1824 = vadd.f32 %v1602, %v1779
      %v1825 = vadd.f32 %v1603, %v1782
      %v1826 = vadd.f32 %v1604, %v1784
      %v1827 = vadd.f32 %v1605, %v1787
      %v1828 = vadd.f32 %v1606, %v1789
      %v1829 = vadd.f32 %v1607, %v1792
      %v1830 = vadd.f32 %v1608, %v1794
      %v1831 = vadd.f32 %v1609, %v1797
      %v1832 = vadd.f32 %v1610, %v1799
      %v1833 = vld [vmem:[%s1611 + $0x1] sm:$0xff]
      %v1834 = vld [vmem:[%s1611 + $0x9] sm:$0xff]
      %v1835 = vld [vmem:[%s1611 + $0x19] sm:$0xff]
      %v1836 = vld [vmem:[%s1611 + $0x21] sm:$0xff]
      %v1837 = vld [vmem:[%s1611 + $0x31] sm:$0xff]
      %v1838 = vld [vmem:[%s1611 + $0x39] sm:$0xff]
      %v1839 = vld [vmem:[%s1611 + $0x49] sm:$0xff]
      %v1840 = vld [vmem:[%s1611 + $0x51] sm:$0xff]
      %v1841 = vld [vmem:[%s1611 + $0x61] sm:$0xff]
      %v1842 = vld [vmem:[%s1611 + $0x69] sm:$0xff]
      %v1843 = vld [vmem:[%s1611 + $0x79] sm:$0xff]
      %v1844 = vld [vmem:[%s1611 + $0x81] sm:$0xff]
      %v1845 = vld [vmem:[%s1611 + $0x91] sm:$0xff]
      %v1846 = vld [vmem:[%s1611 + $0x99] sm:$0xff]
      %v1847 = vld [vmem:[%s1611 + $0xa9] sm:$0xff]
      %v1848 = vld [vmem:[%s1611 + $0xb1] sm:$0xff]
      %v1849 = vld [vmem:[%s1611 + $0xc1] sm:$0xff]
      %v1850 = vld [vmem:[%s1611 + $0xc9] sm:$0xff]
      %v1851 = vld [vmem:[%s1611 + $0xd9] sm:$0xff]
      %v1852 = vld [vmem:[%s1611 + $0xe1] sm:$0xff]
      %v1853 = vld [vmem:[%s1611 + $0xf1] sm:$0xff]
      %v1854 = vld [vmem:[%s1611 + $0xf9] sm:$0xff]
      %v1855 = vld [vmem:[%s1611 + $0x109] sm:$0xff]
      %v1856 = vld [vmem:[%s1611 + $0x111] sm:$0xff]
      %v1857 = vld [vmem:[%s1611 + $0x121] sm:$0xff]
      %v1858 = vld [vmem:[%s1611 + $0x129] sm:$0xff]
      %v1859 = vld [vmem:[%s1611 + $0x139] sm:$0xff]
      %v1860 = vld [vmem:[%s1611 + $0x141] sm:$0xff]
      %v1861 = vld [vmem:[%s1611 + $0x151] sm:$0xff]
      %v1862 = vld [vmem:[%s1611 + $0x159] sm:$0xff]
      %v1863 = vld [vmem:[%s1611 + $0x169] sm:$0xff]
      %v1864 = vld [vmem:[%s1611 + $0x171] sm:$0xff]
      %v1865 = vpack.c.bf16 %v1834, %v1833
      %v1866 = vpack.c.bf16 %v1836, %v1835
      %v1867 = vpack.c.bf16 %v1838, %v1837
      %v1868 = vpack.c.bf16 %v1840, %v1839
      %v1869 = vpack.c.bf16 %v1842, %v1841
      %v1870 = vpack.c.bf16 %v1844, %v1843
      %v1871 = vpack.c.bf16 %v1846, %v1845
      %v1872 = vpack.c.bf16 %v1848, %v1847
      %v1873 = vpack.c.bf16 %v1850, %v1849
      %v1874 = vpack.c.bf16 %v1852, %v1851
      %v1875 = vpack.c.bf16 %v1854, %v1853
      %v1876 = vpack.c.bf16 %v1856, %v1855
      %v1877 = vpack.c.bf16 %v1858, %v1857
      %v1878 = vpack.c.bf16 %v1860, %v1859
      %v1879 = vpack.c.bf16 %v1862, %v1861
      %v1880 = vpack.c.bf16 %v1864, %v1863
      %v1881 = vld [vmem:[%s1 + $0xc] sm:$0xc]
      %v1883 = vunpack.c.l.b16 %v1881
      %v1884 = vpack.c.b16 %v1883, %v1883
      %v1885 = vrot.slane %v1884, 2
      %v1887 = vsel %vm257, %v1865, 0
      %v1890 = vsel %vm257, %v1866, 0
      %v1893 = vsel %vm257, %v1867, 0
      %v1896 = vsel %vm257, %v1868, 0
      %v1899 = vsel %vm257, %v1869, 0
      %v1902 = vsel %vm257, %v1870, 0
      %v1905 = vsel %vm257, %v1871, 0
      %v1908 = vsel %vm257, %v1872, 0
      %v1911 = vsel %vm257, %v1873, 0
      %v1914 = vsel %vm257, %v1874, 0
      %v1917 = vsel %vm257, %v1875, 0
      %v1920 = vsel %vm257, %v1876, 0
      %v1923 = vsel %vm257, %v1877, 0
      %v1926 = vsel %vm257, %v1878, 0
      %v1929 = vsel %vm257, %v1879, 0
      %v1932 = vsel %vm257, %v1880, 0
      %v1935 = vsel %vm486, %v1885, 0
      %1937 = vmatpush.bf16.msra.mxu0 0
      %1938 = vmatpush.bf16.msra.mxu0 0
      %1939 = vmatpush.bf16.msra.mxu0 0
      %1940 = vmatpush.bf16.msra.mxu0 0
      %1941 = vmatpush.bf16.msra.mxu0 0
      %1942 = vmatpush.bf16.msra.mxu0 0
      %1943 = vmatpush.bf16.msra.mxu0 0
      %1944 = vmatpush.bf16.msra.mxu0 %v1935
      %1945 = vmatmul.bf16.gmra.mxu0 %v1887
      %v1946 = vpop.f32.mrf.mxu0
      %v1947 = vadd.f32 0.0, %v1946
      %v1948 = vpop.f32.mrf.mxu0
      %v1949 = vadd.f32 0.0, %v1948
      %1950 = vmatmul.bf16.gmra.mxu0 %v1890
      %v1951 = vpop.f32.mrf.mxu0
      %v1952 = vadd.f32 0.0, %v1951
      %v1953 = vpop.f32.mrf.mxu0
      %v1954 = vadd.f32 0.0, %v1953
      %1955 = vmatmul.bf16.gmra.mxu0 %v1893
      %v1956 = vpop.f32.mrf.mxu0
      %v1957 = vadd.f32 0.0, %v1956
      %v1958 = vpop.f32.mrf.mxu0
      %v1959 = vadd.f32 0.0, %v1958
      %1960 = vmatmul.bf16.gmra.mxu0 %v1896
      %v1961 = vpop.f32.mrf.mxu0
      %v1962 = vadd.f32 0.0, %v1961
      %v1963 = vpop.f32.mrf.mxu0
      %v1964 = vadd.f32 0.0, %v1963
      %1965 = vmatmul.bf16.gmra.mxu0 %v1899
      %v1966 = vpop.f32.mrf.mxu0
      %v1967 = vadd.f32 0.0, %v1966
      %v1968 = vpop.f32.mrf.mxu0
      %v1969 = vadd.f32 0.0, %v1968
      %1970 = vmatmul.bf16.gmra.mxu0 %v1902
      %v1971 = vpop.f32.mrf.mxu0
      %v1972 = vadd.f32 0.0, %v1971
      %v1973 = vpop.f32.mrf.mxu0
      %v1974 = vadd.f32 0.0, %v1973
      %1975 = vmatmul.bf16.gmra.mxu0 %v1905
      %v1976 = vpop.f32.mrf.mxu0
      %v1977 = vadd.f32 0.0, %v1976
      %v1978 = vpop.f32.mrf.mxu0
      %v1979 = vadd.f32 0.0, %v1978
      %1980 = vmatmul.bf16.gmra.mxu0 %v1908
      %v1981 = vpop.f32.mrf.mxu0
      %v1982 = vadd.f32 0.0, %v1981
      %v1983 = vpop.f32.mrf.mxu0
      %v1984 = vadd.f32 0.0, %v1983
      %1985 = vmatmul.bf16.gmra.mxu0 %v1911
      %v1986 = vpop.f32.mrf.mxu0
      %v1987 = vadd.f32 0.0, %v1986
      %v1988 = vpop.f32.mrf.mxu0
      %v1989 = vadd.f32 0.0, %v1988
      %1990 = vmatmul.bf16.gmra.mxu0 %v1914
      %v1991 = vpop.f32.mrf.mxu0
      %v1992 = vadd.f32 0.0, %v1991
      %v1993 = vpop.f32.mrf.mxu0
      %v1994 = vadd.f32 0.0, %v1993
      %1995 = vmatmul.bf16.gmra.mxu0 %v1917
      %v1996 = vpop.f32.mrf.mxu0
      %v1997 = vadd.f32 0.0, %v1996
      %v1998 = vpop.f32.mrf.mxu0
      %v1999 = vadd.f32 0.0, %v1998
      %2000 = vmatmul.bf16.gmra.mxu0 %v1920
      %v2001 = vpop.f32.mrf.mxu0
      %v2002 = vadd.f32 0.0, %v2001
      %v2003 = vpop.f32.mrf.mxu0
      %v2004 = vadd.f32 0.0, %v2003
      %2005 = vmatmul.bf16.gmra.mxu0 %v1923
      %v2006 = vpop.f32.mrf.mxu0
      %v2007 = vadd.f32 0.0, %v2006
      %v2008 = vpop.f32.mrf.mxu0
      %v2009 = vadd.f32 0.0, %v2008
      %2010 = vmatmul.bf16.gmra.mxu0 %v1926
      %v2011 = vpop.f32.mrf.mxu0
      %v2012 = vadd.f32 0.0, %v2011
      %v2013 = vpop.f32.mrf.mxu0
      %v2014 = vadd.f32 0.0, %v2013
      %2015 = vmatmul.bf16.gmra.mxu0 %v1929
      %v2016 = vpop.f32.mrf.mxu0
      %v2017 = vadd.f32 0.0, %v2016
      %v2018 = vpop.f32.mrf.mxu0
      %v2019 = vadd.f32 0.0, %v2018
      %2020 = vmatmul.bf16.gmra.mxu0 %v1932
      %v2021 = vpop.f32.mrf.mxu0
      %v2022 = vadd.f32 0.0, %v2021
      %v2023 = vpop.f32.mrf.mxu0
      %v2024 = vadd.f32 0.0, %v2023
      %2025 = vdwg.mxu0
      %v2026 = vadd.f32 %v1801, %v1947
      %v2027 = vadd.f32 %v1802, %v1949
      %v2028 = vadd.f32 %v1803, %v1952
      %v2029 = vadd.f32 %v1804, %v1954
      %v2030 = vadd.f32 %v1805, %v1957
      %v2031 = vadd.f32 %v1806, %v1959
      %v2032 = vadd.f32 %v1807, %v1962
      %v2033 = vadd.f32 %v1808, %v1964
      %v2034 = vadd.f32 %v1809, %v1967
      %v2035 = vadd.f32 %v1810, %v1969
      %v2036 = vadd.f32 %v1811, %v1972
      %v2037 = vadd.f32 %v1812, %v1974
      %v2038 = vadd.f32 %v1813, %v1977
      %v2039 = vadd.f32 %v1814, %v1979
      %v2040 = vadd.f32 %v1815, %v1982
      %v2041 = vadd.f32 %v1816, %v1984
      %v2042 = vadd.f32 %v1817, %v1987
      %v2043 = vadd.f32 %v1818, %v1989
      %v2044 = vadd.f32 %v1819, %v1992
      %v2045 = vadd.f32 %v1820, %v1994
      %v2046 = vadd.f32 %v1821, %v1997
      %v2047 = vadd.f32 %v1822, %v1999
      %v2048 = vadd.f32 %v1823, %v2002
      %v2049 = vadd.f32 %v1824, %v2004
      %v2050 = vadd.f32 %v1825, %v2007
      %v2051 = vadd.f32 %v1826, %v2009
      %v2052 = vadd.f32 %v1827, %v2012
      %v2053 = vadd.f32 %v1828, %v2014
      %v2054 = vadd.f32 %v1829, %v2017
      %v2055 = vadd.f32 %v1830, %v2019
      %v2056 = vadd.f32 %v1831, %v2022
      %v2057 = vadd.f32 %v1832, %v2024
      %v2058 = vld [vmem:[%s1611 + $0x2] sm:$0xff]
      %v2059 = vld [vmem:[%s1611 + $0xa] sm:$0xff]
      %v2060 = vld [vmem:[%s1611 + $0x1a] sm:$0xff]
      %v2061 = vld [vmem:[%s1611 + $0x22] sm:$0xff]
      %v2062 = vld [vmem:[%s1611 + $0x32] sm:$0xff]
      %v2063 = vld [vmem:[%s1611 + $0x3a] sm:$0xff]
      %v2064 = vld [vmem:[%s1611 + $0x4a] sm:$0xff]
      %v2065 = vld [vmem:[%s1611 + $0x52] sm:$0xff]
      %v2066 = vld [vmem:[%s1611 + $0x62] sm:$0xff]
      %v2067 = vld [vmem:[%s1611 + $0x6a] sm:$0xff]
      %v2068 = vld [vmem:[%s1611 + $0x7a] sm:$0xff]
      %v2069 = vld [vmem:[%s1611 + $0x82] sm:$0xff]
      %v2070 = vld [vmem:[%s1611 + $0x92] sm:$0xff]
      %v2071 = vld [vmem:[%s1611 + $0x9a] sm:$0xff]
      %v2072 = vld [vmem:[%s1611 + $0xaa] sm:$0xff]
      %v2073 = vld [vmem:[%s1611 + $0xb2] sm:$0xff]
      %v2074 = vld [vmem:[%s1611 + $0xc2] sm:$0xff]
      %v2075 = vld [vmem:[%s1611 + $0xca] sm:$0xff]
      %v2076 = vld [vmem:[%s1611 + $0xda] sm:$0xff]
      %v2077 = vld [vmem:[%s1611 + $0xe2] sm:$0xff]
      %v2078 = vld [vmem:[%s1611 + $0xf2] sm:$0xff]
      %v2079 = vld [vmem:[%s1611 + $0xfa] sm:$0xff]
      %v2080 = vld [vmem:[%s1611 + $0x10a] sm:$0xff]
      %v2081 = vld [vmem:[%s1611 + $0x112] sm:$0xff]
      %v2082 = vld [vmem:[%s1611 + $0x122] sm:$0xff]
      %v2083 = vld [vmem:[%s1611 + $0x12a] sm:$0xff]
      %v2084 = vld [vmem:[%s1611 + $0x13a] sm:$0xff]
      %v2085 = vld [vmem:[%s1611 + $0x142] sm:$0xff]
      %v2086 = vld [vmem:[%s1611 + $0x152] sm:$0xff]
      %v2087 = vld [vmem:[%s1611 + $0x15a] sm:$0xff]
      %v2088 = vld [vmem:[%s1611 + $0x16a] sm:$0xff]
      %v2089 = vld [vmem:[%s1611 + $0x172] sm:$0xff]
      %v2090 = vpack.c.bf16 %v2059, %v2058
      %v2091 = vpack.c.bf16 %v2061, %v2060
      %v2092 = vpack.c.bf16 %v2063, %v2062
      %v2093 = vpack.c.bf16 %v2065, %v2064
      %v2094 = vpack.c.bf16 %v2067, %v2066
      %v2095 = vpack.c.bf16 %v2069, %v2068
      %v2096 = vpack.c.bf16 %v2071, %v2070
      %v2097 = vpack.c.bf16 %v2073, %v2072
      %v2098 = vpack.c.bf16 %v2075, %v2074
      %v2099 = vpack.c.bf16 %v2077, %v2076
      %v2100 = vpack.c.bf16 %v2079, %v2078
      %v2101 = vpack.c.bf16 %v2081, %v2080
      %v2102 = vpack.c.bf16 %v2083, %v2082
      %v2103 = vpack.c.bf16 %v2085, %v2084
      %v2104 = vpack.c.bf16 %v2087, %v2086
      %v2105 = vpack.c.bf16 %v2089, %v2088
      %v2106 = vld [vmem:[%s1 + $0x10] sm:$0x3]
      %v2108 = vsel %vm257, %v2090, 0
      %v2111 = vsel %vm257, %v2091, 0
      %v2114 = vsel %vm257, %v2092, 0
      %v2117 = vsel %vm257, %v2093, 0
      %v2120 = vsel %vm257, %v2094, 0
      %v2123 = vsel %vm257, %v2095, 0
      %v2126 = vsel %vm257, %v2096, 0
      %v2129 = vsel %vm257, %v2097, 0
      %v2132 = vsel %vm257, %v2098, 0
      %v2135 = vsel %vm257, %v2099, 0
      %v2138 = vsel %vm257, %v2100, 0
      %v2141 = vsel %vm257, %v2101, 0
      %v2144 = vsel %vm257, %v2102, 0
      %v2147 = vsel %vm257, %v2103, 0
      %v2150 = vsel %vm257, %v2104, 0
      %v2153 = vsel %vm257, %v2105, 0
      %v2156 = vsel %vm486, %v2106, 0
      %2158 = vmatpush.bf16.msra.mxu0 0
      %2159 = vmatpush.bf16.msra.mxu0 0
      %2160 = vmatpush.bf16.msra.mxu0 0
      %2161 = vmatpush.bf16.msra.mxu0 0
      %2162 = vmatpush.bf16.msra.mxu0 0
      %2163 = vmatpush.bf16.msra.mxu0 0
      %2164 = vmatpush.bf16.msra.mxu0 0
      %2165 = vmatpush.bf16.msra.mxu0 %v2156
      %2166 = vmatmul.bf16.gmra.mxu0 %v2108
      %v2167 = vpop.f32.mrf.mxu0
      %v2168 = vadd.f32 0.0, %v2167
      %v2169 = vpop.f32.mrf.mxu0
      %v2170 = vadd.f32 0.0, %v2169
      %2171 = vmatmul.bf16.gmra.mxu0 %v2111
      %v2172 = vpop.f32.mrf.mxu0
      %v2173 = vadd.f32 0.0, %v2172
      %v2174 = vpop.f32.mrf.mxu0
      %v2175 = vadd.f32 0.0, %v2174
      %2176 = vmatmul.bf16.gmra.mxu0 %v2114
      %v2177 = vpop.f32.mrf.mxu0
      %v2178 = vadd.f32 0.0, %v2177
      %v2179 = vpop.f32.mrf.mxu0
      %v2180 = vadd.f32 0.0, %v2179
      %2181 = vmatmul.bf16.gmra.mxu0 %v2117
      %v2182 = vpop.f32.mrf.mxu0
      %v2183 = vadd.f32 0.0, %v2182
      %v2184 = vpop.f32.mrf.mxu0
      %v2185 = vadd.f32 0.0, %v2184
      %2186 = vmatmul.bf16.gmra.mxu0 %v2120
      %v2187 = vpop.f32.mrf.mxu0
      %v2188 = vadd.f32 0.0, %v2187
      %v2189 = vpop.f32.mrf.mxu0
      %v2190 = vadd.f32 0.0, %v2189
      %2191 = vmatmul.bf16.gmra.mxu0 %v2123
      %v2192 = vpop.f32.mrf.mxu0
      %v2193 = vadd.f32 0.0, %v2192
      %v2194 = vpop.f32.mrf.mxu0
      %v2195 = vadd.f32 0.0, %v2194
      %2196 = vmatmul.bf16.gmra.mxu0 %v2126
      %v2197 = vpop.f32.mrf.mxu0
      %v2198 = vadd.f32 0.0, %v2197
      %v2199 = vpop.f32.mrf.mxu0
      %v2200 = vadd.f32 0.0, %v2199
      %2201 = vmatmul.bf16.gmra.mxu0 %v2129
      %v2202 = vpop.f32.mrf.mxu0
      %v2203 = vadd.f32 0.0, %v2202
      %v2204 = vpop.f32.mrf.mxu0
      %v2205 = vadd.f32 0.0, %v2204
      %2206 = vmatmul.bf16.gmra.mxu0 %v2132
      %v2207 = vpop.f32.mrf.mxu0
      %v2208 = vadd.f32 0.0, %v2207
      %v2209 = vpop.f32.mrf.mxu0
      %v2210 = vadd.f32 0.0, %v2209
      %2211 = vmatmul.bf16.gmra.mxu0 %v2135
      %v2212 = vpop.f32.mrf.mxu0
      %v2213 = vadd.f32 0.0, %v2212
      %v2214 = vpop.f32.mrf.mxu0
      %v2215 = vadd.f32 0.0, %v2214
      %2216 = vmatmul.bf16.gmra.mxu0 %v2138
      %v2217 = vpop.f32.mrf.mxu0
      %v2218 = vadd.f32 0.0, %v2217
      %v2219 = vpop.f32.mrf.mxu0
      %v2220 = vadd.f32 0.0, %v2219
      %2221 = vmatmul.bf16.gmra.mxu0 %v2141
      %v2222 = vpop.f32.mrf.mxu0
      %v2223 = vadd.f32 0.0, %v2222
      %v2224 = vpop.f32.mrf.mxu0
      %v2225 = vadd.f32 0.0, %v2224
      %2226 = vmatmul.bf16.gmra.mxu0 %v2144
      %v2227 = vpop.f32.mrf.mxu0
      %v2228 = vadd.f32 0.0, %v2227
      %v2229 = vpop.f32.mrf.mxu0
      %v2230 = vadd.f32 0.0, %v2229
      %2231 = vmatmul.bf16.gmra.mxu0 %v2147
      %v2232 = vpop.f32.mrf.mxu0
      %v2233 = vadd.f32 0.0, %v2232
      %v2234 = vpop.f32.mrf.mxu0
      %v2235 = vadd.f32 0.0, %v2234
      %2236 = vmatmul.bf16.gmra.mxu0 %v2150
      %v2237 = vpop.f32.mrf.mxu0
      %v2238 = vadd.f32 0.0, %v2237
      %v2239 = vpop.f32.mrf.mxu0
      %v2240 = vadd.f32 0.0, %v2239
      %2241 = vmatmul.bf16.gmra.mxu0 %v2153
      %v2242 = vpop.f32.mrf.mxu0
      %v2243 = vadd.f32 0.0, %v2242
      %v2244 = vpop.f32.mrf.mxu0
      %v2245 = vadd.f32 0.0, %v2244
      %2246 = vdwg.mxu0
      %v2247 = vadd.f32 %v2026, %v2168
      %v2248 = vadd.f32 %v2027, %v2170
      %v2249 = vadd.f32 %v2028, %v2173
      %v2250 = vadd.f32 %v2029, %v2175
      %v2251 = vadd.f32 %v2030, %v2178
      %v2252 = vadd.f32 %v2031, %v2180
      %v2253 = vadd.f32 %v2032, %v2183
      %v2254 = vadd.f32 %v2033, %v2185
      %v2255 = vadd.f32 %v2034, %v2188
      %v2256 = vadd.f32 %v2035, %v2190
      %v2257 = vadd.f32 %v2036, %v2193
      %v2258 = vadd.f32 %v2037, %v2195
      %v2259 = vadd.f32 %v2038, %v2198
      %v2260 = vadd.f32 %v2039, %v2200
      %v2261 = vadd.f32 %v2040, %v2203
      %v2262 = vadd.f32 %v2041, %v2205
      %v2263 = vadd.f32 %v2042, %v2208
      %v2264 = vadd.f32 %v2043, %v2210
      %v2265 = vadd.f32 %v2044, %v2213
      %v2266 = vadd.f32 %v2045, %v2215
      %v2267 = vadd.f32 %v2046, %v2218
      %v2268 = vadd.f32 %v2047, %v2220
      %v2269 = vadd.f32 %v2048, %v2223
      %v2270 = vadd.f32 %v2049, %v2225
      %v2271 = vadd.f32 %v2050, %v2228
      %v2272 = vadd.f32 %v2051, %v2230
      %v2273 = vadd.f32 %v2052, %v2233
      %v2274 = vadd.f32 %v2053, %v2235
      %v2275 = vadd.f32 %v2054, %v2238
      %v2276 = vadd.f32 %v2055, %v2240
      %v2277 = vadd.f32 %v2056, %v2243
      %v2278 = vadd.f32 %v2057, %v2245
      %v2311 = vrot.slane %v2247, 2
      %v2312 = vrot.slane %v2247, 4
      %v2313 = vrot.slane %v2247, 6
      %v2314 = vrot.slane %v2248, 2
      %v2315 = vrot.slane %v2248, 4
      %v2316 = vrot.slane %v2248, 6
      %v2317 = vrot.slane %v2249, 2
      %v2318 = vrot.slane %v2249, 4
      %v2319 = vrot.slane %v2249, 6
      %v2320 = vrot.slane %v2250, 2
      %v2321 = vrot.slane %v2250, 4
      %v2322 = vrot.slane %v2250, 6
      %v2323 = vrot.slane %v2251, 2
      %v2324 = vrot.slane %v2251, 4
      %v2325 = vrot.slane %v2251, 6
      %v2326 = vrot.slane %v2252, 2
      %v2327 = vrot.slane %v2252, 4
      %v2328 = vrot.slane %v2252, 6
      %v2329 = vrot.slane %v2253, 2
      %v2330 = vrot.slane %v2253, 4
      %v2331 = vrot.slane %v2253, 6
      %v2332 = vrot.slane %v2254, 2
      %v2333 = vrot.slane %v2254, 4
      %v2334 = vrot.slane %v2254, 6
      %v2335 = vrot.slane %v2255, 2
      %v2336 = vrot.slane %v2255, 4
      %v2337 = vrot.slane %v2255, 6
      %v2338 = vrot.slane %v2256, 2
      %v2339 = vrot.slane %v2256, 4
      %v2340 = vrot.slane %v2256, 6
      %v2341 = vrot.slane %v2257, 2
      %v2342 = vrot.slane %v2257, 4
      %v2343 = vrot.slane %v2257, 6
      %v2344 = vrot.slane %v2258, 2
      %v2345 = vrot.slane %v2258, 4
      %v2346 = vrot.slane %v2258, 6
      %v2347 = vrot.slane %v2259, 2
      %v2348 = vrot.slane %v2259, 4
      %v2349 = vrot.slane %v2259, 6
      %v2350 = vrot.slane %v2260, 2
      %v2351 = vrot.slane %v2260, 4
      %v2352 = vrot.slane %v2260, 6
      %v2353 = vrot.slane %v2261, 2
      %v2354 = vrot.slane %v2261, 4
      %v2355 = vrot.slane %v2261, 6
      %v2356 = vrot.slane %v2262, 2
      %v2357 = vrot.slane %v2262, 4
      %v2358 = vrot.slane %v2262, 6
      %v2359 = vrot.slane %v2263, 2
      %v2360 = vrot.slane %v2263, 4
      %v2361 = vrot.slane %v2263, 6
      %v2362 = vrot.slane %v2264, 2
      %v2363 = vrot.slane %v2264, 4
      %v2364 = vrot.slane %v2264, 6
      %v2365 = vrot.slane %v2265, 2
      %v2366 = vrot.slane %v2265, 4
      %v2367 = vrot.slane %v2265, 6
      %v2368 = vrot.slane %v2266, 2
      %v2369 = vrot.slane %v2266, 4
      %v2370 = vrot.slane %v2266, 6
      %v2371 = vrot.slane %v2267, 2
      %v2372 = vrot.slane %v2267, 4
      %v2373 = vrot.slane %v2267, 6
      %v2374 = vrot.slane %v2268, 2
      %v2375 = vrot.slane %v2268, 4
      %v2376 = vrot.slane %v2268, 6
      %v2377 = vrot.slane %v2269, 2
      %v2378 = vrot.slane %v2269, 4
      %v2379 = vrot.slane %v2269, 6
      %v2380 = vrot.slane %v2270, 2
      %v2381 = vrot.slane %v2270, 4
      %v2382 = vrot.slane %v2270, 6
      %v2383 = vrot.slane %v2271, 2
      %v2384 = vrot.slane %v2271, 4
      %v2385 = vrot.slane %v2271, 6
      %v2386 = vrot.slane %v2272, 2
      %v2387 = vrot.slane %v2272, 4
      %v2388 = vrot.slane %v2272, 6
      %v2389 = vrot.slane %v2273, 2
      %v2390 = vrot.slane %v2273, 4
      %v2391 = vrot.slane %v2273, 6
      %v2392 = vrot.slane %v2274, 2
      %v2393 = vrot.slane %v2274, 4
      %v2394 = vrot.slane %v2274, 6
      %v2395 = vrot.slane %v2275, 2
      %v2396 = vrot.slane %v2275, 4
      %v2397 = vrot.slane %v2275, 6
      %v2398 = vrot.slane %v2276, 2
      %v2399 = vrot.slane %v2276, 4
      %v2400 = vrot.slane %v2276, 6
      %v2401 = vrot.slane %v2277, 2
      %v2402 = vrot.slane %v2277, 4
      %v2403 = vrot.slane %v2277, 6
      %v2404 = vrot.slane %v2278, 2
      %v2405 = vrot.slane %v2278, 4
      %v2406 = vrot.slane %v2278, 6
      %vm2503 = vcmask 58368
      %v2504 = vsel %vm2503, %v2247, -inf
      %v2505 = vsel %vm2503, %v2249, -inf
      %v2506 = vmax.f32 %v2504, %v2505
      %v2507 = vrot.slane %v2506, 4
      %v2508 = vmax.f32 %v2506, %v2507
      %v2509 = vrot.slane %v2508, 2
      %v2510 = vmax.f32 %v2508, %v2509
      %v2511 = vrot.slane %v2510, 1
      %v2512 = vmax.f32 %v2510, %v2511
      %v2513 = vsel %vm2503, %v2311, -inf
      %v2514 = vsel %vm2503, %v2317, -inf
      %v2515 = vmax.f32 %v2513, %v2514
      %v2516 = vrot.slane %v2515, 4
      %v2517 = vmax.f32 %v2515, %v2516
      %v2518 = vrot.slane %v2517, 2
      %v2519 = vmax.f32 %v2517, %v2518
      %v2520 = vrot.slane %v2519, 1
      %v2521 = vmax.f32 %v2519, %v2520
      %v2522 = vsel %vm2503, %v2312, -inf
      %v2523 = vsel %vm2503, %v2318, -inf
      %v2524 = vmax.f32 %v2522, %v2523
      %v2525 = vrot.slane %v2524, 4
      %v2526 = vmax.f32 %v2524, %v2525
      %v2527 = vrot.slane %v2526, 2
      %v2528 = vmax.f32 %v2526, %v2527
      %v2529 = vrot.slane %v2528, 1
      %v2530 = vmax.f32 %v2528, %v2529
      %v2531 = vsel %vm2503, %v2313, -inf
      %v2532 = vsel %vm2503, %v2319, -inf
      %v2533 = vmax.f32 %v2531, %v2532
      %v2534 = vrot.slane %v2533, 4
      %v2535 = vmax.f32 %v2533, %v2534
      %v2536 = vrot.slane %v2535, 2
      %v2537 = vmax.f32 %v2535, %v2536
      %v2538 = vrot.slane %v2537, 1
      %v2539 = vmax.f32 %v2537, %v2538
      %v2540 = vsel %vm2503, %v2248, -inf
      %v2541 = vsel %vm2503, %v2250, -inf
      %v2542 = vmax.f32 %v2540, %v2541
      %v2543 = vrot.slane %v2542, 4
      %v2544 = vmax.f32 %v2542, %v2543
      %v2545 = vrot.slane %v2544, 2
      %v2546 = vmax.f32 %v2544, %v2545
      %v2547 = vrot.slane %v2546, 1
      %v2548 = vmax.f32 %v2546, %v2547
      %v2549 = vsel %vm2503, %v2314, -inf
      %v2550 = vsel %vm2503, %v2320, -inf
      %v2551 = vmax.f32 %v2549, %v2550
      %v2552 = vrot.slane %v2551, 4
      %v2553 = vmax.f32 %v2551, %v2552
      %v2554 = vrot.slane %v2553, 2
      %v2555 = vmax.f32 %v2553, %v2554
      %v2556 = vrot.slane %v2555, 1
      %v2557 = vmax.f32 %v2555, %v2556
      %v2558 = vsel %vm2503, %v2315, -inf
      %v2559 = vsel %vm2503, %v2321, -inf
      %v2560 = vmax.f32 %v2558, %v2559
      %v2561 = vrot.slane %v2560, 4
      %v2562 = vmax.f32 %v2560, %v2561
      %v2563 = vrot.slane %v2562, 2
      %v2564 = vmax.f32 %v2562, %v2563
      %v2565 = vrot.slane %v2564, 1
      %v2566 = vmax.f32 %v2564, %v2565
      %v2567 = vsel %vm2503, %v2316, -inf
      %v2568 = vsel %vm2503, %v2322, -inf
      %v2569 = vmax.f32 %v2567, %v2568
      %v2570 = vrot.slane %v2569, 4
      %v2571 = vmax.f32 %v2569, %v2570
      %v2572 = vrot.slane %v2571, 2
      %v2573 = vmax.f32 %v2571, %v2572
      %v2574 = vrot.slane %v2573, 1
      %v2575 = vmax.f32 %v2573, %v2574
      %v2576 = vsel %vm2503, %v2251, -inf
      %v2577 = vsel %vm2503, %v2253, -inf
      %v2578 = vmax.f32 %v2576, %v2577
      %v2579 = vrot.slane %v2578, 4
      %v2580 = vmax.f32 %v2578, %v2579
      %v2581 = vrot.slane %v2580, 2
      %v2582 = vmax.f32 %v2580, %v2581
      %v2583 = vrot.slane %v2582, 1
      %v2584 = vmax.f32 %v2582, %v2583
      %v2585 = vsel %vm2503, %v2323, -inf
      %v2586 = vsel %vm2503, %v2329, -inf
      %v2587 = vmax.f32 %v2585, %v2586
      %v2588 = vrot.slane %v2587, 4
      %v2589 = vmax.f32 %v2587, %v2588
      %v2590 = vrot.slane %v2589, 2
      %v2591 = vmax.f32 %v2589, %v2590
      %v2592 = vrot.slane %v2591, 1
      %v2593 = vmax.f32 %v2591, %v2592
      %v2594 = vsel %vm2503, %v2324, -inf
      %v2595 = vsel %vm2503, %v2330, -inf
      %v2596 = vmax.f32 %v2594, %v2595
      %v2597 = vrot.slane %v2596, 4
      %v2598 = vmax.f32 %v2596, %v2597
      %v2599 = vrot.slane %v2598, 2
      %v2600 = vmax.f32 %v2598, %v2599
      %v2601 = vrot.slane %v2600, 1
      %v2602 = vmax.f32 %v2600, %v2601
      %v2603 = vsel %vm2503, %v2325, -inf
      %v2604 = vsel %vm2503, %v2331, -inf
      %v2605 = vmax.f32 %v2603, %v2604
      %v2606 = vrot.slane %v2605, 4
      %v2607 = vmax.f32 %v2605, %v2606
      %v2608 = vrot.slane %v2607, 2
      %v2609 = vmax.f32 %v2607, %v2608
      %v2610 = vrot.slane %v2609, 1
      %v2611 = vmax.f32 %v2609, %v2610
      %v2612 = vsel %vm2503, %v2252, -inf
      %v2613 = vsel %vm2503, %v2254, -inf
      %v2614 = vmax.f32 %v2612, %v2613
      %v2615 = vrot.slane %v2614, 4
      %v2616 = vmax.f32 %v2614, %v2615
      %v2617 = vrot.slane %v2616, 2
      %v2618 = vmax.f32 %v2616, %v2617
      %v2619 = vrot.slane %v2618, 1
      %v2620 = vmax.f32 %v2618, %v2619
      %v2621 = vsel %vm2503, %v2326, -inf
      %v2622 = vsel %vm2503, %v2332, -inf
      %v2623 = vmax.f32 %v2621, %v2622
      %v2624 = vrot.slane %v2623, 4
      %v2625 = vmax.f32 %v2623, %v2624
      %v2626 = vrot.slane %v2625, 2
      %v2627 = vmax.f32 %v2625, %v2626
      %v2628 = vrot.slane %v2627, 1
      %v2629 = vmax.f32 %v2627, %v2628
      %v2630 = vsel %vm2503, %v2327, -inf
      %v2631 = vsel %vm2503, %v2333, -inf
      %v2632 = vmax.f32 %v2630, %v2631
      %v2633 = vrot.slane %v2632, 4
      %v2634 = vmax.f32 %v2632, %v2633
      %v2635 = vrot.slane %v2634, 2
      %v2636 = vmax.f32 %v2634, %v2635
      %v2637 = vrot.slane %v2636, 1
      %v2638 = vmax.f32 %v2636, %v2637
      %v2639 = vsel %vm2503, %v2328, -inf
      %v2640 = vsel %vm2503, %v2334, -inf
      %v2641 = vmax.f32 %v2639, %v2640
      %v2642 = vrot.slane %v2641, 4
      %v2643 = vmax.f32 %v2641, %v2642
      %v2644 = vrot.slane %v2643, 2
      %v2645 = vmax.f32 %v2643, %v2644
      %v2646 = vrot.slane %v2645, 1
      %v2647 = vmax.f32 %v2645, %v2646
      %v2648 = vsel %vm2503, %v2255, -inf
      %v2649 = vsel %vm2503, %v2257, -inf
      %v2650 = vmax.f32 %v2648, %v2649
      %v2651 = vrot.slane %v2650, 4
      %v2652 = vmax.f32 %v2650, %v2651
      %v2653 = vrot.slane %v2652, 2
      %v2654 = vmax.f32 %v2652, %v2653
      %v2655 = vrot.slane %v2654, 1
      %v2656 = vmax.f32 %v2654, %v2655
      %v2657 = vsel %vm2503, %v2335, -inf
      %v2658 = vsel %vm2503, %v2341, -inf
      %v2659 = vmax.f32 %v2657, %v2658
      %v2660 = vrot.slane %v2659, 4
      %v2661 = vmax.f32 %v2659, %v2660
      %v2662 = vrot.slane %v2661, 2
      %v2663 = vmax.f32 %v2661, %v2662
      %v2664 = vrot.slane %v2663, 1
      %v2665 = vmax.f32 %v2663, %v2664
      %v2666 = vsel %vm2503, %v2336, -inf
      %v2667 = vsel %vm2503, %v2342, -inf
      %v2668 = vmax.f32 %v2666, %v2667
      %v2669 = vrot.slane %v2668, 4
      %v2670 = vmax.f32 %v2668, %v2669
      %v2671 = vrot.slane %v2670, 2
      %v2672 = vmax.f32 %v2670, %v2671
      %v2673 = vrot.slane %v2672, 1
      %v2674 = vmax.f32 %v2672, %v2673
      %v2675 = vsel %vm2503, %v2337, -inf
      %v2676 = vsel %vm2503, %v2343, -inf
      %v2677 = vmax.f32 %v2675, %v2676
      %v2678 = vrot.slane %v2677, 4
      %v2679 = vmax.f32 %v2677, %v2678
      %v2680 = vrot.slane %v2679, 2
      %v2681 = vmax.f32 %v2679, %v2680
      %v2682 = vrot.slane %v2681, 1
      %v2683 = vmax.f32 %v2681, %v2682
      %v2684 = vsel %vm2503, %v2256, -inf
      %v2685 = vsel %vm2503, %v2258, -inf
      %v2686 = vmax.f32 %v2684, %v2685
      %v2687 = vrot.slane %v2686, 4
      %v2688 = vmax.f32 %v2686, %v2687
      %v2689 = vrot.slane %v2688, 2
      %v2690 = vmax.f32 %v2688, %v2689
      %v2691 = vrot.slane %v2690, 1
      %v2692 = vmax.f32 %v2690, %v2691
      %v2693 = vsel %vm2503, %v2338, -inf
      %v2694 = vsel %vm2503, %v2344, -inf
      %v2695 = vmax.f32 %v2693, %v2694
      %v2696 = vrot.slane %v2695, 4
      %v2697 = vmax.f32 %v2695, %v2696
      %v2698 = vrot.slane %v2697, 2
      %v2699 = vmax.f32 %v2697, %v2698
      %v2700 = vrot.slane %v2699, 1
      %v2701 = vmax.f32 %v2699, %v2700
      %v2702 = vsel %vm2503, %v2339, -inf
      %v2703 = vsel %vm2503, %v2345, -inf
      %v2704 = vmax.f32 %v2702, %v2703
      %v2705 = vrot.slane %v2704, 4
      %v2706 = vmax.f32 %v2704, %v2705
      %v2707 = vrot.slane %v2706, 2
      %v2708 = vmax.f32 %v2706, %v2707
      %v2709 = vrot.slane %v2708, 1
      %v2710 = vmax.f32 %v2708, %v2709
      %v2711 = vsel %vm2503, %v2340, -inf
      %v2712 = vsel %vm2503, %v2346, -inf
      %v2713 = vmax.f32 %v2711, %v2712
      %v2714 = vrot.slane %v2713, 4
      %v2715 = vmax.f32 %v2713, %v2714
      %v2716 = vrot.slane %v2715, 2
      %v2717 = vmax.f32 %v2715, %v2716
      %v2718 = vrot.slane %v2717, 1
      %v2719 = vmax.f32 %v2717, %v2718
      %v2720 = vsel %vm2503, %v2259, -inf
      %v2721 = vsel %vm2503, %v2261, -inf
      %v2722 = vmax.f32 %v2720, %v2721
      %v2723 = vrot.slane %v2722, 4
      %v2724 = vmax.f32 %v2722, %v2723
      %v2725 = vrot.slane %v2724, 2
      %v2726 = vmax.f32 %v2724, %v2725
      %v2727 = vrot.slane %v2726, 1
      %v2728 = vmax.f32 %v2726, %v2727
      %v2729 = vsel %vm2503, %v2347, -inf
      %v2730 = vsel %vm2503, %v2353, -inf
      %v2731 = vmax.f32 %v2729, %v2730
      %v2732 = vrot.slane %v2731, 4
      %v2733 = vmax.f32 %v2731, %v2732
      %v2734 = vrot.slane %v2733, 2
      %v2735 = vmax.f32 %v2733, %v2734
      %v2736 = vrot.slane %v2735, 1
      %v2737 = vmax.f32 %v2735, %v2736
      %v2738 = vsel %vm2503, %v2348, -inf
      %v2739 = vsel %vm2503, %v2354, -inf
      %v2740 = vmax.f32 %v2738, %v2739
      %v2741 = vrot.slane %v2740, 4
      %v2742 = vmax.f32 %v2740, %v2741
      %v2743 = vrot.slane %v2742, 2
      %v2744 = vmax.f32 %v2742, %v2743
      %v2745 = vrot.slane %v2744, 1
      %v2746 = vmax.f32 %v2744, %v2745
      %v2747 = vsel %vm2503, %v2349, -inf
      %v2748 = vsel %vm2503, %v2355, -inf
      %v2749 = vmax.f32 %v2747, %v2748
      %v2750 = vrot.slane %v2749, 4
      %v2751 = vmax.f32 %v2749, %v2750
      %v2752 = vrot.slane %v2751, 2
      %v2753 = vmax.f32 %v2751, %v2752
      %v2754 = vrot.slane %v2753, 1
      %v2755 = vmax.f32 %v2753, %v2754
      %v2756 = vsel %vm2503, %v2260, -inf
      %v2757 = vsel %vm2503, %v2262, -inf
      %v2758 = vmax.f32 %v2756, %v2757
      %v2759 = vrot.slane %v2758, 4
      %v2760 = vmax.f32 %v2758, %v2759
      %v2761 = vrot.slane %v2760, 2
      %v2762 = vmax.f32 %v2760, %v2761
      %v2763 = vrot.slane %v2762, 1
      %v2764 = vmax.f32 %v2762, %v2763
      %v2765 = vsel %vm2503, %v2350, -inf
      %v2766 = vsel %vm2503, %v2356, -inf
      %v2767 = vmax.f32 %v2765, %v2766
      %v2768 = vrot.slane %v2767, 4
      %v2769 = vmax.f32 %v2767, %v2768
      %v2770 = vrot.slane %v2769, 2
      %v2771 = vmax.f32 %v2769, %v2770
      %v2772 = vrot.slane %v2771, 1
      %v2773 = vmax.f32 %v2771, %v2772
      %v2774 = vsel %vm2503, %v2351, -inf
      %v2775 = vsel %vm2503, %v2357, -inf
      %v2776 = vmax.f32 %v2774, %v2775
      %v2777 = vrot.slane %v2776, 4
      %v2778 = vmax.f32 %v2776, %v2777
      %v2779 = vrot.slane %v2778, 2
      %v2780 = vmax.f32 %v2778, %v2779
      %v2781 = vrot.slane %v2780, 1
      %v2782 = vmax.f32 %v2780, %v2781
      %v2783 = vsel %vm2503, %v2352, -inf
      %v2784 = vsel %vm2503, %v2358, -inf
      %v2785 = vmax.f32 %v2783, %v2784
      %v2786 = vrot.slane %v2785, 4
      %v2787 = vmax.f32 %v2785, %v2786
      %v2788 = vrot.slane %v2787, 2
      %v2789 = vmax.f32 %v2787, %v2788
      %v2790 = vrot.slane %v2789, 1
      %v2791 = vmax.f32 %v2789, %v2790
      %v2792 = vsel %vm2503, %v2263, -inf
      %v2793 = vsel %vm2503, %v2265, -inf
      %v2794 = vmax.f32 %v2792, %v2793
      %v2795 = vrot.slane %v2794, 4
      %v2796 = vmax.f32 %v2794, %v2795
      %v2797 = vrot.slane %v2796, 2
      %v2798 = vmax.f32 %v2796, %v2797
      %v2799 = vrot.slane %v2798, 1
      %v2800 = vmax.f32 %v2798, %v2799
      %v2801 = vsel %vm2503, %v2359, -inf
      %v2802 = vsel %vm2503, %v2365, -inf
      %v2803 = vmax.f32 %v2801, %v2802
      %v2804 = vrot.slane %v2803, 4
      %v2805 = vmax.f32 %v2803, %v2804
      %v2806 = vrot.slane %v2805, 2
      %v2807 = vmax.f32 %v2805, %v2806
      %v2808 = vrot.slane %v2807, 1
      %v2809 = vmax.f32 %v2807, %v2808
      %v2810 = vsel %vm2503, %v2360, -inf
      %v2811 = vsel %vm2503, %v2366, -inf
      %v2812 = vmax.f32 %v2810, %v2811
      %v2813 = vrot.slane %v2812, 4
      %v2814 = vmax.f32 %v2812, %v2813
      %v2815 = vrot.slane %v2814, 2
      %v2816 = vmax.f32 %v2814, %v2815
      %v2817 = vrot.slane %v2816, 1
      %v2818 = vmax.f32 %v2816, %v2817
      %v2819 = vsel %vm2503, %v2361, -inf
      %v2820 = vsel %vm2503, %v2367, -inf
      %v2821 = vmax.f32 %v2819, %v2820
      %v2822 = vrot.slane %v2821, 4
      %v2823 = vmax.f32 %v2821, %v2822
      %v2824 = vrot.slane %v2823, 2
      %v2825 = vmax.f32 %v2823, %v2824
      %v2826 = vrot.slane %v2825, 1
      %v2827 = vmax.f32 %v2825, %v2826
      %v2828 = vsel %vm2503, %v2264, -inf
      %v2829 = vsel %vm2503, %v2266, -inf
      %v2830 = vmax.f32 %v2828, %v2829
      %v2831 = vrot.slane %v2830, 4
      %v2832 = vmax.f32 %v2830, %v2831
      %v2833 = vrot.slane %v2832, 2
      %v2834 = vmax.f32 %v2832, %v2833
      %v2835 = vrot.slane %v2834, 1
      %v2836 = vmax.f32 %v2834, %v2835
      %v2837 = vsel %vm2503, %v2362, -inf
      %v2838 = vsel %vm2503, %v2368, -inf
      %v2839 = vmax.f32 %v2837, %v2838
      %v2840 = vrot.slane %v2839, 4
      %v2841 = vmax.f32 %v2839, %v2840
      %v2842 = vrot.slane %v2841, 2
      %v2843 = vmax.f32 %v2841, %v2842
      %v2844 = vrot.slane %v2843, 1
      %v2845 = vmax.f32 %v2843, %v2844
      %v2846 = vsel %vm2503, %v2363, -inf
      %v2847 = vsel %vm2503, %v2369, -inf
      %v2848 = vmax.f32 %v2846, %v2847
      %v2849 = vrot.slane %v2848, 4
      %v2850 = vmax.f32 %v2848, %v2849
      %v2851 = vrot.slane %v2850, 2
      %v2852 = vmax.f32 %v2850, %v2851
      %v2853 = vrot.slane %v2852, 1
      %v2854 = vmax.f32 %v2852, %v2853
      %v2855 = vsel %vm2503, %v2364, -inf
      %v2856 = vsel %vm2503, %v2370, -inf
      %v2857 = vmax.f32 %v2855, %v2856
      %v2858 = vrot.slane %v2857, 4
      %v2859 = vmax.f32 %v2857, %v2858
      %v2860 = vrot.slane %v2859, 2
      %v2861 = vmax.f32 %v2859, %v2860
      %v2862 = vrot.slane %v2861, 1
      %v2863 = vmax.f32 %v2861, %v2862
      %v2864 = vsel %vm2503, %v2267, -inf
      %v2865 = vsel %vm2503, %v2269, -inf
      %v2866 = vmax.f32 %v2864, %v2865
      %v2867 = vrot.slane %v2866, 4
      %v2868 = vmax.f32 %v2866, %v2867
      %v2869 = vrot.slane %v2868, 2
      %v2870 = vmax.f32 %v2868, %v2869
      %v2871 = vrot.slane %v2870, 1
      %v2872 = vmax.f32 %v2870, %v2871
      %v2873 = vsel %vm2503, %v2371, -inf
      %v2874 = vsel %vm2503, %v2377, -inf
      %v2875 = vmax.f32 %v2873, %v2874
      %v2876 = vrot.slane %v2875, 4
      %v2877 = vmax.f32 %v2875, %v2876
      %v2878 = vrot.slane %v2877, 2
      %v2879 = vmax.f32 %v2877, %v2878
      %v2880 = vrot.slane %v2879, 1
      %v2881 = vmax.f32 %v2879, %v2880
      %v2882 = vsel %vm2503, %v2372, -inf
      %v2883 = vsel %vm2503, %v2378, -inf
      %v2884 = vmax.f32 %v2882, %v2883
      %v2885 = vrot.slane %v2884, 4
      %v2886 = vmax.f32 %v2884, %v2885
      %v2887 = vrot.slane %v2886, 2
      %v2888 = vmax.f32 %v2886, %v2887
      %v2889 = vrot.slane %v2888, 1
      %v2890 = vmax.f32 %v2888, %v2889
      %v2891 = vsel %vm2503, %v2373, -inf
      %v2892 = vsel %vm2503, %v2379, -inf
      %v2893 = vmax.f32 %v2891, %v2892
      %v2894 = vrot.slane %v2893, 4
      %v2895 = vmax.f32 %v2893, %v2894
      %v2896 = vrot.slane %v2895, 2
      %v2897 = vmax.f32 %v2895, %v2896
      %v2898 = vrot.slane %v2897, 1
      %v2899 = vmax.f32 %v2897, %v2898
      %v2900 = vsel %vm2503, %v2268, -inf
      %v2901 = vsel %vm2503, %v2270, -inf
      %v2902 = vmax.f32 %v2900, %v2901
      %v2903 = vrot.slane %v2902, 4
      %v2904 = vmax.f32 %v2902, %v2903
      %v2905 = vrot.slane %v2904, 2
      %v2906 = vmax.f32 %v2904, %v2905
      %v2907 = vrot.slane %v2906, 1
      %v2908 = vmax.f32 %v2906, %v2907
      %v2909 = vsel %vm2503, %v2374, -inf
      %v2910 = vsel %vm2503, %v2380, -inf
      %v2911 = vmax.f32 %v2909, %v2910
      %v2912 = vrot.slane %v2911, 4
      %v2913 = vmax.f32 %v2911, %v2912
      %v2914 = vrot.slane %v2913, 2
      %v2915 = vmax.f32 %v2913, %v2914
      %v2916 = vrot.slane %v2915, 1
      %v2917 = vmax.f32 %v2915, %v2916
      %v2918 = vsel %vm2503, %v2375, -inf
      %v2919 = vsel %vm2503, %v2381, -inf
      %v2920 = vmax.f32 %v2918, %v2919
      %v2921 = vrot.slane %v2920, 4
      %v2922 = vmax.f32 %v2920, %v2921
      %v2923 = vrot.slane %v2922, 2
      %v2924 = vmax.f32 %v2922, %v2923
      %v2925 = vrot.slane %v2924, 1
      %v2926 = vmax.f32 %v2924, %v2925
      %v2927 = vsel %vm2503, %v2376, -inf
      %v2928 = vsel %vm2503, %v2382, -inf
      %v2929 = vmax.f32 %v2927, %v2928
      %v2930 = vrot.slane %v2929, 4
      %v2931 = vmax.f32 %v2929, %v2930
      %v2932 = vrot.slane %v2931, 2
      %v2933 = vmax.f32 %v2931, %v2932
      %v2934 = vrot.slane %v2933, 1
      %v2935 = vmax.f32 %v2933, %v2934
      %v2936 = vsel %vm2503, %v2271, -inf
      %v2937 = vsel %vm2503, %v2273, -inf
      %v2938 = vmax.f32 %v2936, %v2937
      %v2939 = vrot.slane %v2938, 4
      %v2940 = vmax.f32 %v2938, %v2939
      %v2941 = vrot.slane %v2940, 2
      %v2942 = vmax.f32 %v2940, %v2941
      %v2943 = vrot.slane %v2942, 1
      %v2944 = vmax.f32 %v2942, %v2943
      %v2945 = vsel %vm2503, %v2383, -inf
      %v2946 = vsel %vm2503, %v2389, -inf
      %v2947 = vmax.f32 %v2945, %v2946
      %v2948 = vrot.slane %v2947, 4
      %v2949 = vmax.f32 %v2947, %v2948
      %v2950 = vrot.slane %v2949, 2
      %v2951 = vmax.f32 %v2949, %v2950
      %v2952 = vrot.slane %v2951, 1
      %v2953 = vmax.f32 %v2951, %v2952
      %v2954 = vsel %vm2503, %v2384, -inf
      %v2955 = vsel %vm2503, %v2390, -inf
      %v2956 = vmax.f32 %v2954, %v2955
      %v2957 = vrot.slane %v2956, 4
      %v2958 = vmax.f32 %v2956, %v2957
      %v2959 = vrot.slane %v2958, 2
      %v2960 = vmax.f32 %v2958, %v2959
      %v2961 = vrot.slane %v2960, 1
      %v2962 = vmax.f32 %v2960, %v2961
      %v2963 = vsel %vm2503, %v2385, -inf
      %v2964 = vsel %vm2503, %v2391, -inf
      %v2965 = vmax.f32 %v2963, %v2964
      %v2966 = vrot.slane %v2965, 4
      %v2967 = vmax.f32 %v2965, %v2966
      %v2968 = vrot.slane %v2967, 2
      %v2969 = vmax.f32 %v2967, %v2968
      %v2970 = vrot.slane %v2969, 1
      %v2971 = vmax.f32 %v2969, %v2970
      %v2972 = vsel %vm2503, %v2272, -inf
      %v2973 = vsel %vm2503, %v2274, -inf
      %v2974 = vmax.f32 %v2972, %v2973
      %v2975 = vrot.slane %v2974, 4
      %v2976 = vmax.f32 %v2974, %v2975
      %v2977 = vrot.slane %v2976, 2
      %v2978 = vmax.f32 %v2976, %v2977
      %v2979 = vrot.slane %v2978, 1
      %v2980 = vmax.f32 %v2978, %v2979
      %v2981 = vsel %vm2503, %v2386, -inf
      %v2982 = vsel %vm2503, %v2392, -inf
      %v2983 = vmax.f32 %v2981, %v2982
      %v2984 = vrot.slane %v2983, 4
      %v2985 = vmax.f32 %v2983, %v2984
      %v2986 = vrot.slane %v2985, 2
      %v2987 = vmax.f32 %v2985, %v2986
      %v2988 = vrot.slane %v2987, 1
      %v2989 = vmax.f32 %v2987, %v2988
      %v2990 = vsel %vm2503, %v2387, -inf
      %v2991 = vsel %vm2503, %v2393, -inf
      %v2992 = vmax.f32 %v2990, %v2991
      %v2993 = vrot.slane %v2992, 4
      %v2994 = vmax.f32 %v2992, %v2993
      %v2995 = vrot.slane %v2994, 2
      %v2996 = vmax.f32 %v2994, %v2995
      %v2997 = vrot.slane %v2996, 1
      %v2998 = vmax.f32 %v2996, %v2997
      %v2999 = vsel %vm2503, %v2388, -inf
      %v3000 = vsel %vm2503, %v2394, -inf
      %v3001 = vmax.f32 %v2999, %v3000
      %v3002 = vrot.slane %v3001, 4
      %v3003 = vmax.f32 %v3001, %v3002
      %v3004 = vrot.slane %v3003, 2
      %v3005 = vmax.f32 %v3003, %v3004
      %v3006 = vrot.slane %v3005, 1
      %v3007 = vmax.f32 %v3005, %v3006
      %v3008 = vsel %vm2503, %v2275, -inf
      %v3009 = vsel %vm2503, %v2277, -inf
      %v3010 = vmax.f32 %v3008, %v3009
      %v3011 = vrot.slane %v3010, 4
      %v3012 = vmax.f32 %v3010, %v3011
      %v3013 = vrot.slane %v3012, 2
      %v3014 = vmax.f32 %v3012, %v3013
      %v3015 = vrot.slane %v3014, 1
      %v3016 = vmax.f32 %v3014, %v3015
      %v3017 = vsel %vm2503, %v2395, -inf
      %v3018 = vsel %vm2503, %v2401, -inf
      %v3019 = vmax.f32 %v3017, %v3018
      %v3020 = vrot.slane %v3019, 4
      %v3021 = vmax.f32 %v3019, %v3020
      %v3022 = vrot.slane %v3021, 2
      %v3023 = vmax.f32 %v3021, %v3022
      %v3024 = vrot.slane %v3023, 1
      %v3025 = vmax.f32 %v3023, %v3024
      %v3026 = vsel %vm2503, %v2396, -inf
      %v3027 = vsel %vm2503, %v2402, -inf
      %v3028 = vmax.f32 %v3026, %v3027
      %v3029 = vrot.slane %v3028, 4
      %v3030 = vmax.f32 %v3028, %v3029
      %v3031 = vrot.slane %v3030, 2
      %v3032 = vmax.f32 %v3030, %v3031
      %v3033 = vrot.slane %v3032, 1
      %v3034 = vmax.f32 %v3032, %v3033
      %v3035 = vsel %vm2503, %v2397, -inf
      %v3036 = vsel %vm2503, %v2403, -inf
      %v3037 = vmax.f32 %v3035, %v3036
      %v3038 = vrot.slane %v3037, 4
      %v3039 = vmax.f32 %v3037, %v3038
      %v3040 = vrot.slane %v3039, 2
      %v3041 = vmax.f32 %v3039, %v3040
      %v3042 = vrot.slane %v3041, 1
      %v3043 = vmax.f32 %v3041, %v3042
      %v3044 = vsel %vm2503, %v2276, -inf
      %v3045 = vsel %vm2503, %v2278, -inf
      %v3046 = vmax.f32 %v3044, %v3045
      %v3047 = vrot.slane %v3046, 4
      %v3048 = vmax.f32 %v3046, %v3047
      %v3049 = vrot.slane %v3048, 2
      %v3050 = vmax.f32 %v3048, %v3049
      %v3051 = vrot.slane %v3050, 1
      %v3052 = vmax.f32 %v3050, %v3051
      %v3053 = vsel %vm2503, %v2398, -inf
      %v3054 = vsel %vm2503, %v2404, -inf
      %v3055 = vmax.f32 %v3053, %v3054
      %v3056 = vrot.slane %v3055, 4
      %v3057 = vmax.f32 %v3055, %v3056
      %v3058 = vrot.slane %v3057, 2
      %v3059 = vmax.f32 %v3057, %v3058
      %v3060 = vrot.slane %v3059, 1
      %v3061 = vmax.f32 %v3059, %v3060
      %v3062 = vsel %vm2503, %v2399, -inf
      %v3063 = vsel %vm2503, %v2405, -inf
      %v3064 = vmax.f32 %v3062, %v3063
      %v3065 = vrot.slane %v3064, 4
      %v3066 = vmax.f32 %v3064, %v3065
      %v3067 = vrot.slane %v3066, 2
      %v3068 = vmax.f32 %v3066, %v3067
      %v3069 = vrot.slane %v3068, 1
      %v3070 = vmax.f32 %v3068, %v3069
      %v3071 = vsel %vm2503, %v2400, -inf
      %v3072 = vsel %vm2503, %v2406, -inf
      %v3073 = vmax.f32 %v3071, %v3072
      %v3074 = vrot.slane %v3073, 4
      %v3075 = vmax.f32 %v3073, %v3074
      %v3076 = vrot.slane %v3075, 2
      %v3077 = vmax.f32 %v3075, %v3076
      %v3078 = vrot.slane %v3077, 1
      %v3079 = vmax.f32 %v3077, %v3078
      %v3081 = vperm.slane %v256, 0
      %v3083 = vadd.f32 %v2512, %v3081
      %v3084 = vadd.f32 %v2521, %v3081
      %v3085 = vadd.f32 %v2530, %v3081
      %v3086 = vadd.f32 %v2539, %v3081
      %v3087 = vadd.f32 %v2548, %v3081
      %v3088 = vadd.f32 %v2557, %v3081
      %v3089 = vadd.f32 %v2566, %v3081
      %v3090 = vadd.f32 %v2575, %v3081
      %v3091 = vadd.f32 %v2584, %v3081
      %v3092 = vadd.f32 %v2593, %v3081
      %v3093 = vadd.f32 %v2602, %v3081
      %v3094 = vadd.f32 %v2611, %v3081
      %v3095 = vadd.f32 %v2620, %v3081
      %v3096 = vadd.f32 %v2629, %v3081
      %v3097 = vadd.f32 %v2638, %v3081
      %v3098 = vadd.f32 %v2647, %v3081
      %v3099 = vadd.f32 %v2656, %v3081
      %v3100 = vadd.f32 %v2665, %v3081
      %v3101 = vadd.f32 %v2674, %v3081
      %v3102 = vadd.f32 %v2683, %v3081
      %v3103 = vadd.f32 %v2692, %v3081
      %v3104 = vadd.f32 %v2701, %v3081
      %v3105 = vadd.f32 %v2710, %v3081
      %v3106 = vadd.f32 %v2719, %v3081
      %v3107 = vadd.f32 %v2728, %v3081
      %v3108 = vadd.f32 %v2737, %v3081
      %v3109 = vadd.f32 %v2746, %v3081
      %v3110 = vadd.f32 %v2755, %v3081
      %v3111 = vadd.f32 %v2764, %v3081
      %v3112 = vadd.f32 %v2773, %v3081
      %v3113 = vadd.f32 %v2782, %v3081
      %v3114 = vadd.f32 %v2791, %v3081
      %v3115 = vadd.f32 %v2800, %v3081
      %v3116 = vadd.f32 %v2809, %v3081
      %v3117 = vadd.f32 %v2818, %v3081
      %v3118 = vadd.f32 %v2827, %v3081
      %v3119 = vadd.f32 %v2836, %v3081
      %v3120 = vadd.f32 %v2845, %v3081
      %v3121 = vadd.f32 %v2854, %v3081
      %v3122 = vadd.f32 %v2863, %v3081
      %v3123 = vadd.f32 %v2872, %v3081
      %v3124 = vadd.f32 %v2881, %v3081
      %v3125 = vadd.f32 %v2890, %v3081
      %v3126 = vadd.f32 %v2899, %v3081
      %v3127 = vadd.f32 %v2908, %v3081
      %v3128 = vadd.f32 %v2917, %v3081
      %v3129 = vadd.f32 %v2926, %v3081
      %v3130 = vadd.f32 %v2935, %v3081
      %v3131 = vadd.f32 %v2944, %v3081
      %v3132 = vadd.f32 %v2953, %v3081
      %v3133 = vadd.f32 %v2962, %v3081
      %v3134 = vadd.f32 %v2971, %v3081
      %v3135 = vadd.f32 %v2980, %v3081
      %v3136 = vadd.f32 %v2989, %v3081
      %v3137 = vadd.f32 %v2998, %v3081
      %v3138 = vadd.f32 %v3007, %v3081
      %v3139 = vadd.f32 %v3016, %v3081
      %v3140 = vadd.f32 %v3025, %v3081
      %v3141 = vadd.f32 %v3034, %v3081
      %v3142 = vadd.f32 %v3043, %v3081
      %v3143 = vadd.f32 %v3052, %v3081
      %v3144 = vadd.f32 %v3061, %v3081
      %v3145 = vadd.f32 %v3070, %v3081
      %v3146 = vadd.f32 %v3079, %v3081
      %v3147 = vmax.f32 %v3083, 0.0
      %v3148 = vmax.f32 %v3084, 0.0
      %v3149 = vmax.f32 %v3085, 0.0
      %v3150 = vmax.f32 %v3086, 0.0
      %v3151 = vmax.f32 %v3087, 0.0
      %v3152 = vmax.f32 %v3088, 0.0
      %v3153 = vmax.f32 %v3089, 0.0
      %v3154 = vmax.f32 %v3090, 0.0
      %v3155 = vmax.f32 %v3091, 0.0
      %v3156 = vmax.f32 %v3092, 0.0
      %v3157 = vmax.f32 %v3093, 0.0
      %v3158 = vmax.f32 %v3094, 0.0
      %v3159 = vmax.f32 %v3095, 0.0
      %v3160 = vmax.f32 %v3096, 0.0
      %v3161 = vmax.f32 %v3097, 0.0
      %v3162 = vmax.f32 %v3098, 0.0
      %v3163 = vmax.f32 %v3099, 0.0
      %v3164 = vmax.f32 %v3100, 0.0
      %v3165 = vmax.f32 %v3101, 0.0
      %v3166 = vmax.f32 %v3102, 0.0
      %v3167 = vmax.f32 %v3103, 0.0
      %v3168 = vmax.f32 %v3104, 0.0
      %v3169 = vmax.f32 %v3105, 0.0
      %v3170 = vmax.f32 %v3106, 0.0
      %v3171 = vmax.f32 %v3107, 0.0
      %v3172 = vmax.f32 %v3108, 0.0
      %v3173 = vmax.f32 %v3109, 0.0
      %v3174 = vmax.f32 %v3110, 0.0
      %v3175 = vmax.f32 %v3111, 0.0
      %v3176 = vmax.f32 %v3112, 0.0
      %v3177 = vmax.f32 %v3113, 0.0
      %v3178 = vmax.f32 %v3114, 0.0
      %v3179 = vmax.f32 %v3115, 0.0
      %v3180 = vmax.f32 %v3116, 0.0
      %v3181 = vmax.f32 %v3117, 0.0
      %v3182 = vmax.f32 %v3118, 0.0
      %v3183 = vmax.f32 %v3119, 0.0
      %v3184 = vmax.f32 %v3120, 0.0
      %v3185 = vmax.f32 %v3121, 0.0
      %v3186 = vmax.f32 %v3122, 0.0
      %v3187 = vmax.f32 %v3123, 0.0
      %v3188 = vmax.f32 %v3124, 0.0
      %v3189 = vmax.f32 %v3125, 0.0
      %v3190 = vmax.f32 %v3126, 0.0
      %v3191 = vmax.f32 %v3127, 0.0
      %v3192 = vmax.f32 %v3128, 0.0
      %v3193 = vmax.f32 %v3129, 0.0
      %v3194 = vmax.f32 %v3130, 0.0
      %v3195 = vmax.f32 %v3131, 0.0
      %v3196 = vmax.f32 %v3132, 0.0
      %v3197 = vmax.f32 %v3133, 0.0
      %v3198 = vmax.f32 %v3134, 0.0
      %v3199 = vmax.f32 %v3135, 0.0
      %v3200 = vmax.f32 %v3136, 0.0
      %v3201 = vmax.f32 %v3137, 0.0
      %v3202 = vmax.f32 %v3138, 0.0
      %v3203 = vmax.f32 %v3139, 0.0
      %v3204 = vmax.f32 %v3140, 0.0
      %v3205 = vmax.f32 %v3141, 0.0
      %v3206 = vmax.f32 %v3142, 0.0
      %v3207 = vmax.f32 %v3143, 0.0
      %v3208 = vmax.f32 %v3144, 0.0
      %v3209 = vmax.f32 %v3145, 0.0
      %v3210 = vmax.f32 %v3146, 0.0
      %v3211 = vld [vmem:[%s4] sm:$0x1]
      %vm3212 = vcmask 64512
      %3213 = vst.msk [vmem:[#allocation3] sm:$0xff] %vm3212, 0.0
      %3214 = vst.msk [vmem:[#allocation3 + $0x8] sm:$0x3] %vm2503, 0.0
      %s3215 = scalar_lea.vmem [#allocation3], 144
      %3216 = vst.msk [vmem:[%s3215] sm:$0xff] %vm3212, 0.0
      %3217 = vst.msk [vmem:[%s3215 + $0x8] sm:$0x3] %vm2503, 0.0
      %vm3218 = vcmask 57344
      %3219 = vst.msk [vmem:[#allocation3] sm:$0x1] %vm3218, 0.0
      %3220 = vst.msk [vmem:[#allocation3 + $0x10] sm:$0x1] %vm3218, 0.0
      %3221 = vst.msk [vmem:[#allocation3 + $0x20] sm:$0x1] %vm3218, 0.0
      %3222 = vst.msk [vmem:[#allocation3 + $0x30] sm:$0x1] %vm3218, 0.0
      %3223 = vst.msk [vmem:[#allocation3 + $0x40] sm:$0x1] %vm3218, 0.0
      %3224 = vst.msk [vmem:[#allocation3 + $0x50] sm:$0x1] %vm3218, 0.0
      %3225 = vst.msk [vmem:[#allocation3 + $0x60] sm:$0x1] %vm3218, 0.0
      %3226 = vst.msk [vmem:[#allocation3 + $0x70] sm:$0x1] %vm3218, 0.0
      %3227 = vst.msk [vmem:[#allocation3 + $0x80] sm:$0x1] %vm3218, 0.0
      %3228 = vst.msk [vmem:[#allocation3 + $0x90] sm:$0x1] %vm3218, 0.0
      %3229 = vst.msk [vmem:[#allocation3 + $0x9] sm:$0x1] %vm3218, 0.0
      %3230 = vst.msk [vmem:[#allocation3 + $0x19] sm:$0x1] %vm3218, 0.0
      %3231 = vst.msk [vmem:[#allocation3 + $0x29] sm:$0x1] %vm3218, 0.0
      %3232 = vst.msk [vmem:[#allocation3 + $0x39] sm:$0x1] %vm3218, 0.0
      %3233 = vst.msk [vmem:[#allocation3 + $0x49] sm:$0x1] %vm3218, 0.0
      %3234 = vst.msk [vmem:[#allocation3 + $0x59] sm:$0x1] %vm3218, 0.0
      %3235 = vst.msk [vmem:[#allocation3 + $0x69] sm:$0x1] %vm3218, 0.0
      %3236 = vst.msk [vmem:[#allocation3 + $0x79] sm:$0x1] %vm3218, 0.0
      %3237 = vst.msk [vmem:[#allocation3 + $0x89] sm:$0x1] %vm3218, 0.0
      %3238 = vst.msk [vmem:[#allocation3 + $0x99] sm:$0x1] %vm3218, 0.0
      %v3303 = vrot.slane %v3148, 7
      %vm3304 = vcmask 1041409
      %v3305 = vsel %vm3304, %v3303, %v3147
      %v3306 = vrot.slane %v3149, 6
      %vm3307 = vcmask 1042434
      %v3308 = vsel %vm3307, %v3306, %v3305
      %v3309 = vrot.slane %v3150, 5
      %vm3310 = vcmask 1043459
      %v3311 = vsel %vm3310, %v3309, %v3308
      %v3312 = vrot.slane %v3151, 4
      %vm3313 = vcmask 1044484
      %v3314 = vsel %vm3313, %v3312, %v3311
      %v3315 = vrot.slane %v3152, 3
      %vm3316 = vcmask 1045509
      %v3317 = vsel %vm3316, %v3315, %v3314
      %v3318 = vrot.slane %v3153, 2
      %vm3319 = vcmask 1046534
      %v3320 = vsel %vm3319, %v3318, %v3317
      %v3321 = vrot.slane %v3154, 1
      %vm3322 = vcmask 1047559
      %v3323 = vsel %vm3322, %v3321, %v3320
      %v3324 = vrot.slane %v3156, 7
      %v3325 = vsel %vm3304, %v3324, %v3155
      %v3326 = vrot.slane %v3157, 6
      %v3327 = vsel %vm3307, %v3326, %v3325
      %v3328 = vrot.slane %v3158, 5
      %v3329 = vsel %vm3310, %v3328, %v3327
      %v3330 = vrot.slane %v3159, 4
      %v3331 = vsel %vm3313, %v3330, %v3329
      %v3332 = vrot.slane %v3160, 3
      %v3333 = vsel %vm3316, %v3332, %v3331
      %v3334 = vrot.slane %v3161, 2
      %v3335 = vsel %vm3319, %v3334, %v3333
      %v3336 = vrot.slane %v3162, 1
      %v3337 = vsel %vm3322, %v3336, %v3335
      %v3338 = vrot.slane %v3164, 7
      %v3339 = vsel %vm3304, %v3338, %v3163
      %v3340 = vrot.slane %v3165, 6
      %v3341 = vsel %vm3307, %v3340, %v3339
      %v3342 = vrot.slane %v3166, 5
      %v3343 = vsel %vm3310, %v3342, %v3341
      %v3344 = vrot.slane %v3167, 4
      %v3345 = vsel %vm3313, %v3344, %v3343
      %v3346 = vrot.slane %v3168, 3
      %v3347 = vsel %vm3316, %v3346, %v3345
      %v3348 = vrot.slane %v3169, 2
      %v3349 = vsel %vm3319, %v3348, %v3347
      %v3350 = vrot.slane %v3170, 1
      %v3351 = vsel %vm3322, %v3350, %v3349
      %v3352 = vrot.slane %v3172, 7
      %v3353 = vsel %vm3304, %v3352, %v3171
      %v3354 = vrot.slane %v3173, 6
      %v3355 = vsel %vm3307, %v3354, %v3353
      %v3356 = vrot.slane %v3174, 5
      %v3357 = vsel %vm3310, %v3356, %v3355
      %v3358 = vrot.slane %v3175, 4
      %v3359 = vsel %vm3313, %v3358, %v3357
      %v3360 = vrot.slane %v3176, 3
      %v3361 = vsel %vm3316, %v3360, %v3359
      %v3362 = vrot.slane %v3177, 2
      %v3363 = vsel %vm3319, %v3362, %v3361
      %v3364 = vrot.slane %v3178, 1
      %v3365 = vsel %vm3322, %v3364, %v3363
      %v3366 = vrot.slane %v3180, 7
      %v3367 = vsel %vm3304, %v3366, %v3179
      %v3368 = vrot.slane %v3181, 6
      %v3369 = vsel %vm3307, %v3368, %v3367
      %v3370 = vrot.slane %v3182, 5
      %v3371 = vsel %vm3310, %v3370, %v3369
      %v3372 = vrot.slane %v3183, 4
      %v3373 = vsel %vm3313, %v3372, %v3371
      %v3374 = vrot.slane %v3184, 3
      %v3375 = vsel %vm3316, %v3374, %v3373
      %v3376 = vrot.slane %v3185, 2
      %v3377 = vsel %vm3319, %v3376, %v3375
      %v3378 = vrot.slane %v3186, 1
      %v3379 = vsel %vm3322, %v3378, %v3377
      %v3380 = vrot.slane %v3188, 7
      %v3381 = vsel %vm3304, %v3380, %v3187
      %v3382 = vrot.slane %v3189, 6
      %v3383 = vsel %vm3307, %v3382, %v3381
      %v3384 = vrot.slane %v3190, 5
      %v3385 = vsel %vm3310, %v3384, %v3383
      %v3386 = vrot.slane %v3191, 4
      %v3387 = vsel %vm3313, %v3386, %v3385
      %v3388 = vrot.slane %v3192, 3
      %v3389 = vsel %vm3316, %v3388, %v3387
      %v3390 = vrot.slane %v3193, 2
      %v3391 = vsel %vm3319, %v3390, %v3389
      %v3392 = vrot.slane %v3194, 1
      %v3393 = vsel %vm3322, %v3392, %v3391
      %v3394 = vrot.slane %v3196, 7
      %v3395 = vsel %vm3304, %v3394, %v3195
      %v3396 = vrot.slane %v3197, 6
      %v3397 = vsel %vm3307, %v3396, %v3395
      %v3398 = vrot.slane %v3198, 5
      %v3399 = vsel %vm3310, %v3398, %v3397
      %v3400 = vrot.slane %v3199, 4
      %v3401 = vsel %vm3313, %v3400, %v3399
      %v3402 = vrot.slane %v3200, 3
      %v3403 = vsel %vm3316, %v3402, %v3401
      %v3404 = vrot.slane %v3201, 2
      %v3405 = vsel %vm3319, %v3404, %v3403
      %v3406 = vrot.slane %v3202, 1
      %v3407 = vsel %vm3322, %v3406, %v3405
      %v3408 = vrot.slane %v3204, 7
      %v3409 = vsel %vm3304, %v3408, %v3203
      %v3410 = vrot.slane %v3205, 6
      %v3411 = vsel %vm3307, %v3410, %v3409
      %v3412 = vrot.slane %v3206, 5
      %v3413 = vsel %vm3310, %v3412, %v3411
      %v3414 = vrot.slane %v3207, 4
      %v3415 = vsel %vm3313, %v3414, %v3413
      %v3416 = vrot.slane %v3208, 3
      %v3417 = vsel %vm3316, %v3416, %v3415
      %v3418 = vrot.slane %v3209, 2
      %v3419 = vsel %vm3319, %v3418, %v3417
      %v3420 = vrot.slane %v3210, 1
      %v3421 = vsel %vm3322, %v3420, %v3419
      %s3430 = scalar_lea.vmem [#allocation3], 16
      %3431 = vst.msk [vmem:[%s3430 + $0x1] sm:$0xff] %vm3212, %v3323
      %3432 = vst.msk [vmem:[%s3430 + $0x11] sm:$0xff] %vm3212, %v3337
      %3433 = vst.msk [vmem:[%s3430 + $0x21] sm:$0xff] %vm3212, %v3351
      %3434 = vst.msk [vmem:[%s3430 + $0x31] sm:$0xff] %vm3212, %v3365
      %3435 = vst.msk [vmem:[%s3430 + $0x41] sm:$0xff] %vm3212, %v3379
      %3436 = vst.msk [vmem:[%s3430 + $0x51] sm:$0xff] %vm3212, %v3393
      %3437 = vst.msk [vmem:[%s3430 + $0x61] sm:$0xff] %vm3212, %v3407
      %3438 = vst.msk [vmem:[%s3430 + $0x71] sm:$0xff] %vm3212, %v3421
      %v3439 = vld [vmem:[#allocation3] sm:$0xff]
      %v3440 = vld [vmem:[#allocation3 + $0x10] sm:$0xff]
      %v3441 = vld [vmem:[#allocation3 + $0x20] sm:$0xff]
      %v3442 = vld [vmem:[#allocation3 + $0x30] sm:$0xff]
      %v3443 = vld [vmem:[#allocation3 + $0x40] sm:$0xff]
      %v3444 = vld [vmem:[#allocation3 + $0x50] sm:$0xff]
      %v3445 = vld [vmem:[#allocation3 + $0x60] sm:$0xff]
      %v3446 = vld [vmem:[#allocation3 + $0x70] sm:$0xff]
      %v3447 = vpack.c.bf16 %v3440, %v3439
      %v3448 = vpack.c.bf16 %v3442, %v3441
      %v3449 = vpack.c.bf16 %v3444, %v3443
      %v3450 = vpack.c.bf16 %v3446, %v3445
      %v3451 = vld [vmem:[%s3] sm:$0xf]
      %v3452 = vld [vmem:[#allocation3 + $0x1] sm:$0xff]
      %v3453 = vld [vmem:[#allocation3 + $0x11] sm:$0xff]
      %v3454 = vld [vmem:[#allocation3 + $0x21] sm:$0xff]
      %v3455 = vld [vmem:[#allocation3 + $0x31] sm:$0xff]
      %v3456 = vld [vmem:[#allocation3 + $0x41] sm:$0xff]
      %v3457 = vld [vmem:[#allocation3 + $0x51] sm:$0xff]
      %v3458 = vld [vmem:[#allocation3 + $0x61] sm:$0xff]
      %v3459 = vld [vmem:[#allocation3 + $0x71] sm:$0xff]
      %v3460 = vpack.c.bf16 %v3453, %v3452
      %v3461 = vpack.c.bf16 %v3455, %v3454
      %v3462 = vpack.c.bf16 %v3457, %v3456
      %v3463 = vpack.c.bf16 %v3459, %v3458
      %v3464 = vld [vmem:[%s3 + $0x4] sm:$0xf]
      %v3466 = vsel %vm3212, %v3460, 0
      %v3469 = vsel %vm3212, %v3461, 0
      %v3472 = vsel %vm3212, %v3462, 0
      %v3475 = vsel %vm3212, %v3463, 0
      %vm3477 = vcmask 1043456
      %v3479 = vsel %vm3477, %v3464, 0
      %3481 = vmatpush.bf16.msra.mxu0 0
      %3482 = vmatpush.bf16.msra.mxu0 0
      %3483 = vmatpush.bf16.msra.mxu0 0
      %3484 = vmatpush.bf16.msra.mxu0 0
      %3485 = vmatpush.bf16.msra.mxu0 0
      %3486 = vmatpush.bf16.msra.mxu0 0
      %3487 = vmatpush.bf16.msra.mxu0 0
      %3488 = vmatpush.bf16.msra.mxu0 %v3479
      %3489 = vmatmul.bf16.gmra.mxu0 %v3466
      %v3490 = vpop.f32.mrf.mxu0
      %v3491 = vadd.f32 0.0, %v3490
      %v3492 = vpop.f32.mrf.mxu0
      %v3493 = vadd.f32 0.0, %v3492
      %3494 = vmatmul.bf16.gmra.mxu0 %v3469
      %v3495 = vpop.f32.mrf.mxu0
      %v3496 = vadd.f32 0.0, %v3495
      %v3497 = vpop.f32.mrf.mxu0
      %v3498 = vadd.f32 0.0, %v3497
      %3499 = vmatmul.bf16.gmra.mxu0 %v3472
      %v3500 = vpop.f32.mrf.mxu0
      %v3501 = vadd.f32 0.0, %v3500
      %v3502 = vpop.f32.mrf.mxu0
      %v3503 = vadd.f32 0.0, %v3502
      %3504 = vmatmul.bf16.gmra.mxu0 %v3475
      %v3505 = vpop.f32.mrf.mxu0
      %v3506 = vadd.f32 0.0, %v3505
      %v3507 = vpop.f32.mrf.mxu0
      %v3508 = vadd.f32 0.0, %v3507
      %3509 = vdwg.mxu0
      %v3511 = vsel %vm3212, %v3447, 0
      %v3514 = vsel %vm3212, %v3448, 0
      %v3517 = vsel %vm3212, %v3449, 0
      %v3520 = vsel %vm3212, %v3450, 0
      %v3523 = vsel %vm3477, %v3451, 0
      %3525 = vmatpush.bf16.msra.mxu0 0
      %3526 = vmatpush.bf16.msra.mxu0 0
      %3527 = vmatpush.bf16.msra.mxu0 0
      %3528 = vmatpush.bf16.msra.mxu0 0
      %3529 = vmatpush.bf16.msra.mxu0 0
      %3530 = vmatpush.bf16.msra.mxu0 0
      %3531 = vmatpush.bf16.msra.mxu0 0
      %3532 = vmatpush.bf16.msra.mxu0 %v3523
      %3533 = vmatmul.bf16.gmra.mxu0 %v3511
      %v3534 = vpop.f32.mrf.mxu0
      %v3535 = vadd.f32 %v3491, %v3534
      %v3536 = vpop.f32.mrf.mxu0
      %v3537 = vadd.f32 %v3493, %v3536
      %3538 = vmatmul.bf16.gmra.mxu0 %v3514
      %v3539 = vpop.f32.mrf.mxu0
      %v3540 = vadd.f32 %v3496, %v3539
      %v3541 = vpop.f32.mrf.mxu0
      %v3542 = vadd.f32 %v3498, %v3541
      %3543 = vmatmul.bf16.gmra.mxu0 %v3517
      %v3544 = vpop.f32.mrf.mxu0
      %v3545 = vadd.f32 %v3501, %v3544
      %v3546 = vpop.f32.mrf.mxu0
      %v3547 = vadd.f32 %v3503, %v3546
      %3548 = vmatmul.bf16.gmra.mxu0 %v3520
      %v3549 = vpop.f32.mrf.mxu0
      %v3550 = vadd.f32 %v3506, %v3549
      %v3551 = vpop.f32.mrf.mxu0
      %v3552 = vadd.f32 %v3508, %v3551
      %3553 = vdwg.mxu0
      %v3554 = vld [vmem:[#allocation3 + $0x2] sm:$0xff]
      %v3555 = vld [vmem:[#allocation3 + $0x12] sm:$0xff]
      %v3556 = vld [vmem:[#allocation3 + $0x22] sm:$0xff]
      %v3557 = vld [vmem:[#allocation3 + $0x32] sm:$0xff]
      %v3558 = vld [vmem:[#allocation3 + $0x42] sm:$0xff]
      %v3559 = vld [vmem:[#allocation3 + $0x52] sm:$0xff]
      %v3560 = vld [vmem:[#allocation3 + $0x62] sm:$0xff]
      %v3561 = vld [vmem:[#allocation3 + $0x72] sm:$0xff]
      %v3562 = vpack.c.bf16 %v3555, %v3554
      %v3563 = vpack.c.bf16 %v3557, %v3556
      %v3564 = vpack.c.bf16 %v3559, %v3558
      %v3565 = vpack.c.bf16 %v3561, %v3560
      %v3566 = vld [vmem:[%s3 + $0x8] sm:$0xf]
      %v3568 = vsel %vm3212, %v3562, 0
      %v3571 = vsel %vm3212, %v3563, 0
      %v3574 = vsel %vm3212, %v3564, 0
      %v3577 = vsel %vm3212, %v3565, 0
      %v3580 = vsel %vm3477, %v3566, 0
      %3582 = vmatpush.bf16.msra.mxu0 0
      %3583 = vmatpush.bf16.msra.mxu0 0
      %3584 = vmatpush.bf16.msra.mxu0 0
      %3585 = vmatpush.bf16.msra.mxu0 0
      %3586 = vmatpush.bf16.msra.mxu0 0
      %3587 = vmatpush.bf16.msra.mxu0 0
      %3588 = vmatpush.bf16.msra.mxu0 0
      %3589 = vmatpush.bf16.msra.mxu0 %v3580
      %3590 = vmatmul.bf16.gmra.mxu0 %v3568
      %v3591 = vpop.f32.mrf.mxu0
      %v3592 = vadd.f32 0.0, %v3591
      %v3593 = vpop.f32.mrf.mxu0
      %v3594 = vadd.f32 0.0, %v3593
      %3595 = vmatmul.bf16.gmra.mxu0 %v3571
      %v3596 = vpop.f32.mrf.mxu0
      %v3597 = vadd.f32 0.0, %v3596
      %v3598 = vpop.f32.mrf.mxu0
      %v3599 = vadd.f32 0.0, %v3598
      %3600 = vmatmul.bf16.gmra.mxu0 %v3574
      %v3601 = vpop.f32.mrf.mxu0
      %v3602 = vadd.f32 0.0, %v3601
      %v3603 = vpop.f32.mrf.mxu0
      %v3604 = vadd.f32 0.0, %v3603
      %3605 = vmatmul.bf16.gmra.mxu0 %v3577
      %v3606 = vpop.f32.mrf.mxu0
      %v3607 = vadd.f32 0.0, %v3606
      %v3608 = vpop.f32.mrf.mxu0
      %v3609 = vadd.f32 0.0, %v3608
      %3610 = vdwg.mxu0
      %v3611 = vadd.f32 %v3535, %v3592
      %v3612 = vadd.f32 %v3537, %v3594
      %v3613 = vadd.f32 %v3540, %v3597
      %v3614 = vadd.f32 %v3542, %v3599
      %v3615 = vadd.f32 %v3545, %v3602
      %v3616 = vadd.f32 %v3547, %v3604
      %v3617 = vadd.f32 %v3550, %v3607
      %v3618 = vadd.f32 %v3552, %v3609
      %v3619 = vld [vmem:[%s3430] sm:$0xff]
      %v3620 = vld [vmem:[%s3430 + $0x10] sm:$0xff]
      %v3621 = vld [vmem:[%s3430 + $0x20] sm:$0xff]
      %v3622 = vld [vmem:[%s3430 + $0x30] sm:$0xff]
      %v3623 = vld [vmem:[%s3430 + $0x40] sm:$0xff]
      %v3624 = vld [vmem:[%s3430 + $0x50] sm:$0xff]
      %v3625 = vld [vmem:[%s3430 + $0x60] sm:$0xff]
      %v3626 = vld [vmem:[%s3430 + $0x70] sm:$0xff]
      %v3627 = vpack.c.bf16 %v3620, %v3619
      %v3628 = vpack.c.bf16 %v3622, %v3621
      %v3629 = vpack.c.bf16 %v3624, %v3623
      %v3630 = vpack.c.bf16 %v3626, %v3625
      %v3631 = vld [vmem:[%s3 + $0xc] sm:$0xf]
      %v3633 = vsel %vm3212, %v3627, 0
      %v3636 = vsel %vm3212, %v3628, 0
      %v3639 = vsel %vm3212, %v3629, 0
      %v3642 = vsel %vm3212, %v3630, 0
      %v3645 = vsel %vm3477, %v3631, 0
      %3647 = vmatpush.bf16.msra.mxu0 0
      %3648 = vmatpush.bf16.msra.mxu0 0
      %3649 = vmatpush.bf16.msra.mxu0 0
      %3650 = vmatpush.bf16.msra.mxu0 0
      %3651 = vmatpush.bf16.msra.mxu0 0
      %3652 = vmatpush.bf16.msra.mxu0 0
      %3653 = vmatpush.bf16.msra.mxu0 0
      %3654 = vmatpush.bf16.msra.mxu0 %v3645
      %3655 = vmatmul.bf16.gmra.mxu0 %v3633
      %v3656 = vpop.f32.mrf.mxu0
      %v3657 = vadd.f32 0.0, %v3656
      %v3658 = vpop.f32.mrf.mxu0
      %v3659 = vadd.f32 0.0, %v3658
      %3660 = vmatmul.bf16.gmra.mxu0 %v3636
      %v3661 = vpop.f32.mrf.mxu0
      %v3662 = vadd.f32 0.0, %v3661
      %v3663 = vpop.f32.mrf.mxu0
      %v3664 = vadd.f32 0.0, %v3663
      %3665 = vmatmul.bf16.gmra.mxu0 %v3639
      %v3666 = vpop.f32.mrf.mxu0
      %v3667 = vadd.f32 0.0, %v3666
      %v3668 = vpop.f32.mrf.mxu0
      %v3669 = vadd.f32 0.0, %v3668
      %3670 = vmatmul.bf16.gmra.mxu0 %v3642
      %v3671 = vpop.f32.mrf.mxu0
      %v3672 = vadd.f32 0.0, %v3671
      %v3673 = vpop.f32.mrf.mxu0
      %v3674 = vadd.f32 0.0, %v3673
      %3675 = vdwg.mxu0
      %v3676 = vadd.f32 %v3611, %v3657
      %v3677 = vadd.f32 %v3612, %v3659
      %v3678 = vadd.f32 %v3613, %v3662
      %v3679 = vadd.f32 %v3614, %v3664
      %v3680 = vadd.f32 %v3615, %v3667
      %v3681 = vadd.f32 %v3616, %v3669
      %v3682 = vadd.f32 %v3617, %v3672
      %v3683 = vadd.f32 %v3618, %v3674
      %v3684 = vld [vmem:[%s3430 + $0x1] sm:$0xff]
      %v3685 = vld [vmem:[%s3430 + $0x11] sm:$0xff]
      %v3686 = vld [vmem:[%s3430 + $0x21] sm:$0xff]
      %v3687 = vld [vmem:[%s3430 + $0x31] sm:$0xff]
      %v3688 = vld [vmem:[%s3430 + $0x41] sm:$0xff]
      %v3689 = vld [vmem:[%s3430 + $0x51] sm:$0xff]
      %v3690 = vld [vmem:[%s3430 + $0x61] sm:$0xff]
      %v3691 = vld [vmem:[%s3430 + $0x71] sm:$0xff]
      %v3692 = vpack.c.bf16 %v3685, %v3684
      %v3693 = vpack.c.bf16 %v3687, %v3686
      %v3694 = vpack.c.bf16 %v3689, %v3688
      %v3695 = vpack.c.bf16 %v3691, %v3690
      %v3696 = vld [vmem:[%s3 + $0x10] sm:$0xf]
      %v3698 = vsel %vm3212, %v3692, 0
      %v3701 = vsel %vm3212, %v3693, 0
      %v3704 = vsel %vm3212, %v3694, 0
      %v3707 = vsel %vm3212, %v3695, 0
      %v3710 = vsel %vm3477, %v3696, 0
      %3712 = vmatpush.bf16.msra.mxu0 0
      %3713 = vmatpush.bf16.msra.mxu0 0
      %3714 = vmatpush.bf16.msra.mxu0 0
      %3715 = vmatpush.bf16.msra.mxu0 0
      %3716 = vmatpush.bf16.msra.mxu0 0
      %3717 = vmatpush.bf16.msra.mxu0 0
      %3718 = vmatpush.bf16.msra.mxu0 0
      %3719 = vmatpush.bf16.msra.mxu0 %v3710
      %3720 = vmatmul.bf16.gmra.mxu0 %v3698
      %v3721 = vpop.f32.mrf.mxu0
      %v3722 = vadd.f32 0.0, %v3721
      %v3723 = vpop.f32.mrf.mxu0
      %v3724 = vadd.f32 0.0, %v3723
      %3725 = vmatmul.bf16.gmra.mxu0 %v3701
      %v3726 = vpop.f32.mrf.mxu0
      %v3727 = vadd.f32 0.0, %v3726
      %v3728 = vpop.f32.mrf.mxu0
      %v3729 = vadd.f32 0.0, %v3728
      %3730 = vmatmul.bf16.gmra.mxu0 %v3704
      %v3731 = vpop.f32.mrf.mxu0
      %v3732 = vadd.f32 0.0, %v3731
      %v3733 = vpop.f32.mrf.mxu0
      %v3734 = vadd.f32 0.0, %v3733
      %3735 = vmatmul.bf16.gmra.mxu0 %v3707
      %v3736 = vpop.f32.mrf.mxu0
      %v3737 = vadd.f32 0.0, %v3736
      %v3738 = vpop.f32.mrf.mxu0
      %v3739 = vadd.f32 0.0, %v3738
      %3740 = vdwg.mxu0
      %v3741 = vadd.f32 %v3676, %v3722
      %v3742 = vadd.f32 %v3677, %v3724
      %v3743 = vadd.f32 %v3678, %v3727
      %v3744 = vadd.f32 %v3679, %v3729
      %v3745 = vadd.f32 %v3680, %v3732
      %v3746 = vadd.f32 %v3681, %v3734
      %v3747 = vadd.f32 %v3682, %v3737
      %v3748 = vadd.f32 %v3683, %v3739
      %v3749 = vld [vmem:[%s3430 + $0x2] sm:$0xff]
      %v3750 = vld [vmem:[%s3430 + $0x12] sm:$0xff]
      %v3751 = vld [vmem:[%s3430 + $0x22] sm:$0xff]
      %v3752 = vld [vmem:[%s3430 + $0x32] sm:$0xff]
      %v3753 = vld [vmem:[%s3430 + $0x42] sm:$0xff]
      %v3754 = vld [vmem:[%s3430 + $0x52] sm:$0xff]
      %v3755 = vld [vmem:[%s3430 + $0x62] sm:$0xff]
      %v3756 = vld [vmem:[%s3430 + $0x72] sm:$0xff]
      %v3757 = vpack.c.bf16 %v3750, %v3749
      %v3758 = vpack.c.bf16 %v3752, %v3751
      %v3759 = vpack.c.bf16 %v3754, %v3753
      %v3760 = vpack.c.bf16 %v3756, %v3755
      %v3761 = vld [vmem:[%s3 + $0x14] sm:$0xf]
      %v3763 = vsel %vm3212, %v3757, 0
      %v3766 = vsel %vm3212, %v3758, 0
      %v3769 = vsel %vm3212, %v3759, 0
      %v3772 = vsel %vm3212, %v3760, 0
      %v3775 = vsel %vm3477, %v3761, 0
      %3777 = vmatpush.bf16.msra.mxu0 0
      %3778 = vmatpush.bf16.msra.mxu0 0
      %3779 = vmatpush.bf16.msra.mxu0 0
      %3780 = vmatpush.bf16.msra.mxu0 0
      %3781 = vmatpush.bf16.msra.mxu0 0
      %3782 = vmatpush.bf16.msra.mxu0 0
      %3783 = vmatpush.bf16.msra.mxu0 0
      %3784 = vmatpush.bf16.msra.mxu0 %v3775
      %3785 = vmatmul.bf16.gmra.mxu0 %v3763
      %v3786 = vpop.f32.mrf.mxu0
      %v3787 = vadd.f32 0.0, %v3786
      %v3788 = vpop.f32.mrf.mxu0
      %v3789 = vadd.f32 0.0, %v3788
      %3790 = vmatmul.bf16.gmra.mxu0 %v3766
      %v3791 = vpop.f32.mrf.mxu0
      %v3792 = vadd.f32 0.0, %v3791
      %v3793 = vpop.f32.mrf.mxu0
      %v3794 = vadd.f32 0.0, %v3793
      %3795 = vmatmul.bf16.gmra.mxu0 %v3769
      %v3796 = vpop.f32.mrf.mxu0
      %v3797 = vadd.f32 0.0, %v3796
      %v3798 = vpop.f32.mrf.mxu0
      %v3799 = vadd.f32 0.0, %v3798
      %3800 = vmatmul.bf16.gmra.mxu0 %v3772
      %v3801 = vpop.f32.mrf.mxu0
      %v3802 = vadd.f32 0.0, %v3801
      %v3803 = vpop.f32.mrf.mxu0
      %v3804 = vadd.f32 0.0, %v3803
      %3805 = vdwg.mxu0
      %v3806 = vadd.f32 %v3741, %v3787
      %v3807 = vadd.f32 %v3742, %v3789
      %v3808 = vadd.f32 %v3743, %v3792
      %v3809 = vadd.f32 %v3744, %v3794
      %v3810 = vadd.f32 %v3745, %v3797
      %v3811 = vadd.f32 %v3746, %v3799
      %v3812 = vadd.f32 %v3747, %v3802
      %v3813 = vadd.f32 %v3748, %v3804
      %s3814 = scalar_lea.vmem [#allocation3], 32
      %v3815 = vld [vmem:[%s3814] sm:$0xff]
      %v3816 = vld [vmem:[%s3814 + $0x10] sm:$0xff]
      %v3817 = vld [vmem:[%s3814 + $0x20] sm:$0xff]
      %v3818 = vld [vmem:[%s3814 + $0x30] sm:$0xff]
      %v3819 = vld [vmem:[%s3814 + $0x40] sm:$0xff]
      %v3820 = vld [vmem:[%s3814 + $0x50] sm:$0xff]
      %v3821 = vld [vmem:[%s3814 + $0x60] sm:$0xff]
      %v3822 = vld [vmem:[%s3814 + $0x70] sm:$0xff]
      %v3823 = vpack.c.bf16 %v3816, %v3815
      %v3824 = vpack.c.bf16 %v3818, %v3817
      %v3825 = vpack.c.bf16 %v3820, %v3819
      %v3826 = vpack.c.bf16 %v3822, %v3821
      %v3827 = vld [vmem:[%s3 + $0x18] sm:$0xf]
      %v3829 = vsel %vm3212, %v3823, 0
      %v3832 = vsel %vm3212, %v3824, 0
      %v3835 = vsel %vm3212, %v3825, 0
      %v3838 = vsel %vm3212, %v3826, 0
      %v3841 = vsel %vm3477, %v3827, 0
      %3843 = vmatpush.bf16.msra.mxu0 0
      %3844 = vmatpush.bf16.msra.mxu0 0
      %3845 = vmatpush.bf16.msra.mxu0 0
      %3846 = vmatpush.bf16.msra.mxu0 0
      %3847 = vmatpush.bf16.msra.mxu0 0
      %3848 = vmatpush.bf16.msra.mxu0 0
      %3849 = vmatpush.bf16.msra.mxu0 0
      %3850 = vmatpush.bf16.msra.mxu0 %v3841
      %3851 = vmatmul.bf16.gmra.mxu0 %v3829
      %v3852 = vpop.f32.mrf.mxu0
      %v3853 = vadd.f32 0.0, %v3852
      %v3854 = vpop.f32.mrf.mxu0
      %v3855 = vadd.f32 0.0, %v3854
      %3856 = vmatmul.bf16.gmra.mxu0 %v3832
      %v3857 = vpop.f32.mrf.mxu0
      %v3858 = vadd.f32 0.0, %v3857
      %v3859 = vpop.f32.mrf.mxu0
      %v3860 = vadd.f32 0.0, %v3859
      %3861 = vmatmul.bf16.gmra.mxu0 %v3835
      %v3862 = vpop.f32.mrf.mxu0
      %v3863 = vadd.f32 0.0, %v3862
      %v3864 = vpop.f32.mrf.mxu0
      %v3865 = vadd.f32 0.0, %v3864
      %3866 = vmatmul.bf16.gmra.mxu0 %v3838
      %v3867 = vpop.f32.mrf.mxu0
      %v3868 = vadd.f32 0.0, %v3867
      %v3869 = vpop.f32.mrf.mxu0
      %v3870 = vadd.f32 0.0, %v3869
      %3871 = vdwg.mxu0
      %v3872 = vadd.f32 %v3806, %v3853
      %v3873 = vadd.f32 %v3807, %v3855
      %v3874 = vadd.f32 %v3808, %v3858
      %v3875 = vadd.f32 %v3809, %v3860
      %v3876 = vadd.f32 %v3810, %v3863
      %v3877 = vadd.f32 %v3811, %v3865
      %v3878 = vadd.f32 %v3812, %v3868
      %v3879 = vadd.f32 %v3813, %v3870
      %v3880 = vld [vmem:[%s3814 + $0x1] sm:$0xff]
      %v3881 = vld [vmem:[%s3814 + $0x11] sm:$0xff]
      %v3882 = vld [vmem:[%s3814 + $0x21] sm:$0xff]
      %v3883 = vld [vmem:[%s3814 + $0x31] sm:$0xff]
      %v3884 = vld [vmem:[%s3814 + $0x41] sm:$0xff]
      %v3885 = vld [vmem:[%s3814 + $0x51] sm:$0xff]
      %v3886 = vld [vmem:[%s3814 + $0x61] sm:$0xff]
      %v3887 = vld [vmem:[%s3814 + $0x71] sm:$0xff]
      %v3888 = vpack.c.bf16 %v3881, %v3880
      %v3889 = vpack.c.bf16 %v3883, %v3882
      %v3890 = vpack.c.bf16 %v3885, %v3884
      %v3891 = vpack.c.bf16 %v3887, %v3886
      %v3892 = vld [vmem:[%s3 + $0x1c] sm:$0xf]
      %v3894 = vsel %vm3212, %v3888, 0
      %v3897 = vsel %vm3212, %v3889, 0
      %v3900 = vsel %vm3212, %v3890, 0
      %v3903 = vsel %vm3212, %v3891, 0
      %v3906 = vsel %vm3477, %v3892, 0
      %3908 = vmatpush.bf16.msra.mxu0 0
      %3909 = vmatpush.bf16.msra.mxu0 0
      %3910 = vmatpush.bf16.msra.mxu0 0
      %3911 = vmatpush.bf16.msra.mxu0 0
      %3912 = vmatpush.bf16.msra.mxu0 0
      %3913 = vmatpush.bf16.msra.mxu0 0
      %3914 = vmatpush.bf16.msra.mxu0 0
      %3915 = vmatpush.bf16.msra.mxu0 %v3906
      %3916 = vmatmul.bf16.gmra.mxu0 %v3894
      %v3917 = vpop.f32.mrf.mxu0
      %v3918 = vadd.f32 0.0, %v3917
      %v3919 = vpop.f32.mrf.mxu0
      %v3920 = vadd.f32 0.0, %v3919
      %3921 = vmatmul.bf16.gmra.mxu0 %v3897
      %v3922 = vpop.f32.mrf.mxu0
      %v3923 = vadd.f32 0.0, %v3922
      %v3924 = vpop.f32.mrf.mxu0
      %v3925 = vadd.f32 0.0, %v3924
      %3926 = vmatmul.bf16.gmra.mxu0 %v3900
      %v3927 = vpop.f32.mrf.mxu0
      %v3928 = vadd.f32 0.0, %v3927
      %v3929 = vpop.f32.mrf.mxu0
      %v3930 = vadd.f32 0.0, %v3929
      %3931 = vmatmul.bf16.gmra.mxu0 %v3903
      %v3932 = vpop.f32.mrf.mxu0
      %v3933 = vadd.f32 0.0, %v3932
      %v3934 = vpop.f32.mrf.mxu0
      %v3935 = vadd.f32 0.0, %v3934
      %3936 = vdwg.mxu0
      %v3937 = vadd.f32 %v3872, %v3918
      %v3938 = vadd.f32 %v3873, %v3920
      %v3939 = vadd.f32 %v3874, %v3923
      %v3940 = vadd.f32 %v3875, %v3925
      %v3941 = vadd.f32 %v3876, %v3928
      %v3942 = vadd.f32 %v3877, %v3930
      %v3943 = vadd.f32 %v3878, %v3933
      %v3944 = vadd.f32 %v3879, %v3935
      %v3945 = vld [vmem:[%s3814 + $0x2] sm:$0xff]
      %v3946 = vld [vmem:[%s3814 + $0x12] sm:$0xff]
      %v3947 = vld [vmem:[%s3814 + $0x22] sm:$0xff]
      %v3948 = vld [vmem:[%s3814 + $0x32] sm:$0xff]
      %v3949 = vld [vmem:[%s3814 + $0x42] sm:$0xff]
      %v3950 = vld [vmem:[%s3814 + $0x52] sm:$0xff]
      %v3951 = vld [vmem:[%s3814 + $0x62] sm:$0xff]
      %v3952 = vld [vmem:[%s3814 + $0x72] sm:$0xff]
      %v3953 = vpack.c.bf16 %v3946, %v3945
      %v3954 = vpack.c.bf16 %v3948, %v3947
      %v3955 = vpack.c.bf16 %v3950, %v3949
      %v3956 = vpack.c.bf16 %v3952, %v3951
      %v3957 = vld [vmem:[%s3 + $0x20] sm:$0xf]
      %v3959 = vsel %vm3212, %v3953, 0
      %v3962 = vsel %vm3212, %v3954, 0
      %v3965 = vsel %vm3212, %v3955, 0
      %v3968 = vsel %vm3212, %v3956, 0
      %v3971 = vsel %vm3477, %v3957, 0
      %3973 = vmatpush.bf16.msra.mxu0 0
      %3974 = vmatpush.bf16.msra.mxu0 0
      %3975 = vmatpush.bf16.msra.mxu0 0
      %3976 = vmatpush.bf16.msra.mxu0 0
      %3977 = vmatpush.bf16.msra.mxu0 0
      %3978 = vmatpush.bf16.msra.mxu0 0
      %3979 = vmatpush.bf16.msra.mxu0 0
      %3980 = vmatpush.bf16.msra.mxu0 %v3971
      %3981 = vmatmul.bf16.gmra.mxu0 %v3959
      %v3982 = vpop.f32.mrf.mxu0
      %v3983 = vadd.f32 0.0, %v3982
      %v3984 = vpop.f32.mrf.mxu0
      %v3985 = vadd.f32 0.0, %v3984
      %3986 = vmatmul.bf16.gmra.mxu0 %v3962
      %v3987 = vpop.f32.mrf.mxu0
      %v3988 = vadd.f32 0.0, %v3987
      %v3989 = vpop.f32.mrf.mxu0
      %v3990 = vadd.f32 0.0, %v3989
      %3991 = vmatmul.bf16.gmra.mxu0 %v3965
      %v3992 = vpop.f32.mrf.mxu0
      %v3993 = vadd.f32 0.0, %v3992
      %v3994 = vpop.f32.mrf.mxu0
      %v3995 = vadd.f32 0.0, %v3994
      %3996 = vmatmul.bf16.gmra.mxu0 %v3968
      %v3997 = vpop.f32.mrf.mxu0
      %v3998 = vadd.f32 0.0, %v3997
      %v3999 = vpop.f32.mrf.mxu0
      %v4000 = vadd.f32 0.0, %v3999
      %4001 = vdwg.mxu0
      %v4002 = vadd.f32 %v3937, %v3983
      %v4003 = vadd.f32 %v3938, %v3985
      %v4004 = vadd.f32 %v3939, %v3988
      %v4005 = vadd.f32 %v3940, %v3990
      %v4006 = vadd.f32 %v3941, %v3993
      %v4007 = vadd.f32 %v3942, %v3995
      %v4008 = vadd.f32 %v3943, %v3998
      %v4009 = vadd.f32 %v3944, %v4000
      %v4018 = vrot.slane %v4002, 2
      %v4019 = vrot.slane %v4002, 4
      %v4020 = vrot.slane %v4002, 6
      %v4021 = vrot.slane %v4003, 2
      %v4022 = vrot.slane %v4003, 4
      %v4023 = vrot.slane %v4003, 6
      %v4024 = vrot.slane %v4004, 2
      %v4025 = vrot.slane %v4004, 4
      %v4026 = vrot.slane %v4004, 6
      %v4027 = vrot.slane %v4005, 2
      %v4028 = vrot.slane %v4005, 4
      %v4029 = vrot.slane %v4005, 6
      %v4030 = vrot.slane %v4006, 2
      %v4031 = vrot.slane %v4006, 4
      %v4032 = vrot.slane %v4006, 6
      %v4033 = vrot.slane %v4007, 2
      %v4034 = vrot.slane %v4007, 4
      %v4035 = vrot.slane %v4007, 6
      %v4036 = vrot.slane %v4008, 2
      %v4037 = vrot.slane %v4008, 4
      %v4038 = vrot.slane %v4008, 6
      %v4039 = vrot.slane %v4009, 2
      %v4040 = vrot.slane %v4009, 4
      %v4041 = vrot.slane %v4009, 6
      %vm4066 = vcmask 123904
      %v4067 = vsel %vm4066, %v4002, -inf
      %v4068 = vsel %vm4066, %v4003, -inf
      %v4069 = vmax.f32 %v4067, %v4068
      %v4070 = vrot.slane %v4069, 4
      %v4071 = vmax.f32 %v4069, %v4070
      %v4072 = vrot.slane %v4071, 2
      %v4073 = vmax.f32 %v4071, %v4072
      %v4074 = vrot.slane %v4073, 1
      %v4075 = vmax.f32 %v4073, %v4074
      %v4076 = vsel %vm4066, %v4018, -inf
      %v4077 = vsel %vm4066, %v4021, -inf
      %v4078 = vmax.f32 %v4076, %v4077
      %v4079 = vrot.slane %v4078, 4
      %v4080 = vmax.f32 %v4078, %v4079
      %v4081 = vrot.slane %v4080, 2
      %v4082 = vmax.f32 %v4080, %v4081
      %v4083 = vrot.slane %v4082, 1
      %v4084 = vmax.f32 %v4082, %v4083
      %v4085 = vsel %vm4066, %v4019, -inf
      %v4086 = vsel %vm4066, %v4022, -inf
      %v4087 = vmax.f32 %v4085, %v4086
      %v4088 = vrot.slane %v4087, 4
      %v4089 = vmax.f32 %v4087, %v4088
      %v4090 = vrot.slane %v4089, 2
      %v4091 = vmax.f32 %v4089, %v4090
      %v4092 = vrot.slane %v4091, 1
      %v4093 = vmax.f32 %v4091, %v4092
      %v4094 = vsel %vm4066, %v4020, -inf
      %v4095 = vsel %vm4066, %v4023, -inf
      %v4096 = vmax.f32 %v4094, %v4095
      %v4097 = vrot.slane %v4096, 4
      %v4098 = vmax.f32 %v4096, %v4097
      %v4099 = vrot.slane %v4098, 2
      %v4100 = vmax.f32 %v4098, %v4099
      %v4101 = vrot.slane %v4100, 1
      %v4102 = vmax.f32 %v4100, %v4101
      %v4103 = vsel %vm4066, %v4004, -inf
      %v4104 = vsel %vm4066, %v4005, -inf
      %v4105 = vmax.f32 %v4103, %v4104
      %v4106 = vrot.slane %v4105, 4
      %v4107 = vmax.f32 %v4105, %v4106
      %v4108 = vrot.slane %v4107, 2
      %v4109 = vmax.f32 %v4107, %v4108
      %v4110 = vrot.slane %v4109, 1
      %v4111 = vmax.f32 %v4109, %v4110
      %v4112 = vsel %vm4066, %v4024, -inf
      %v4113 = vsel %vm4066, %v4027, -inf
      %v4114 = vmax.f32 %v4112, %v4113
      %v4115 = vrot.slane %v4114, 4
      %v4116 = vmax.f32 %v4114, %v4115
      %v4117 = vrot.slane %v4116, 2
      %v4118 = vmax.f32 %v4116, %v4117
      %v4119 = vrot.slane %v4118, 1
      %v4120 = vmax.f32 %v4118, %v4119
      %v4121 = vsel %vm4066, %v4025, -inf
      %v4122 = vsel %vm4066, %v4028, -inf
      %v4123 = vmax.f32 %v4121, %v4122
      %v4124 = vrot.slane %v4123, 4
      %v4125 = vmax.f32 %v4123, %v4124
      %v4126 = vrot.slane %v4125, 2
      %v4127 = vmax.f32 %v4125, %v4126
      %v4128 = vrot.slane %v4127, 1
      %v4129 = vmax.f32 %v4127, %v4128
      %v4130 = vsel %vm4066, %v4026, -inf
      %v4131 = vsel %vm4066, %v4029, -inf
      %v4132 = vmax.f32 %v4130, %v4131
      %v4133 = vrot.slane %v4132, 4
      %v4134 = vmax.f32 %v4132, %v4133
      %v4135 = vrot.slane %v4134, 2
      %v4136 = vmax.f32 %v4134, %v4135
      %v4137 = vrot.slane %v4136, 1
      %v4138 = vmax.f32 %v4136, %v4137
      %v4139 = vsel %vm4066, %v4006, -inf
      %v4140 = vsel %vm4066, %v4007, -inf
      %v4141 = vmax.f32 %v4139, %v4140
      %v4142 = vrot.slane %v4141, 4
      %v4143 = vmax.f32 %v4141, %v4142
      %v4144 = vrot.slane %v4143, 2
      %v4145 = vmax.f32 %v4143, %v4144
      %v4146 = vrot.slane %v4145, 1
      %v4147 = vmax.f32 %v4145, %v4146
      %v4148 = vsel %vm4066, %v4030, -inf
      %v4149 = vsel %vm4066, %v4033, -inf
      %v4150 = vmax.f32 %v4148, %v4149
      %v4151 = vrot.slane %v4150, 4
      %v4152 = vmax.f32 %v4150, %v4151
      %v4153 = vrot.slane %v4152, 2
      %v4154 = vmax.f32 %v4152, %v4153
      %v4155 = vrot.slane %v4154, 1
      %v4156 = vmax.f32 %v4154, %v4155
      %v4157 = vsel %vm4066, %v4031, -inf
      %v4158 = vsel %vm4066, %v4034, -inf
      %v4159 = vmax.f32 %v4157, %v4158
      %v4160 = vrot.slane %v4159, 4
      %v4161 = vmax.f32 %v4159, %v4160
      %v4162 = vrot.slane %v4161, 2
      %v4163 = vmax.f32 %v4161, %v4162
      %v4164 = vrot.slane %v4163, 1
      %v4165 = vmax.f32 %v4163, %v4164
      %v4166 = vsel %vm4066, %v4032, -inf
      %v4167 = vsel %vm4066, %v4035, -inf
      %v4168 = vmax.f32 %v4166, %v4167
      %v4169 = vrot.slane %v4168, 4
      %v4170 = vmax.f32 %v4168, %v4169
      %v4171 = vrot.slane %v4170, 2
      %v4172 = vmax.f32 %v4170, %v4171
      %v4173 = vrot.slane %v4172, 1
      %v4174 = vmax.f32 %v4172, %v4173
      %v4175 = vsel %vm4066, %v4008, -inf
      %v4176 = vsel %vm4066, %v4009, -inf
      %v4177 = vmax.f32 %v4175, %v4176
      %v4178 = vrot.slane %v4177, 4
      %v4179 = vmax.f32 %v4177, %v4178
      %v4180 = vrot.slane %v4179, 2
      %v4181 = vmax.f32 %v4179, %v4180
      %v4182 = vrot.slane %v4181, 1
      %v4183 = vmax.f32 %v4181, %v4182
      %v4184 = vsel %vm4066, %v4036, -inf
      %v4185 = vsel %vm4066, %v4039, -inf
      %v4186 = vmax.f32 %v4184, %v4185
      %v4187 = vrot.slane %v4186, 4
      %v4188 = vmax.f32 %v4186, %v4187
      %v4189 = vrot.slane %v4188, 2
      %v4190 = vmax.f32 %v4188, %v4189
      %v4191 = vrot.slane %v4190, 1
      %v4192 = vmax.f32 %v4190, %v4191
      %v4193 = vsel %vm4066, %v4037, -inf
      %v4194 = vsel %vm4066, %v4040, -inf
      %v4195 = vmax.f32 %v4193, %v4194
      %v4196 = vrot.slane %v4195, 4
      %v4197 = vmax.f32 %v4195, %v4196
      %v4198 = vrot.slane %v4197, 2
      %v4199 = vmax.f32 %v4197, %v4198
      %v4200 = vrot.slane %v4199, 1
      %v4201 = vmax.f32 %v4199, %v4200
      %v4202 = vsel %vm4066, %v4038, -inf
      %v4203 = vsel %vm4066, %v4041, -inf
      %v4204 = vmax.f32 %v4202, %v4203
      %v4205 = vrot.slane %v4204, 4
      %v4206 = vmax.f32 %v4204, %v4205
      %v4207 = vrot.slane %v4206, 2
      %v4208 = vmax.f32 %v4206, %v4207
      %v4209 = vrot.slane %v4208, 1
      %v4210 = vmax.f32 %v4208, %v4209
      %v4212 = vperm.slane %v3211, 0
      %v4214 = vadd.f32 %v4075, %v4212
      %v4215 = vadd.f32 %v4084, %v4212
      %v4216 = vadd.f32 %v4093, %v4212
      %v4217 = vadd.f32 %v4102, %v4212
      %v4218 = vadd.f32 %v4111, %v4212
      %v4219 = vadd.f32 %v4120, %v4212
      %v4220 = vadd.f32 %v4129, %v4212
      %v4221 = vadd.f32 %v4138, %v4212
      %v4222 = vadd.f32 %v4147, %v4212
      %v4223 = vadd.f32 %v4156, %v4212
      %v4224 = vadd.f32 %v4165, %v4212
      %v4225 = vadd.f32 %v4174, %v4212
      %v4226 = vadd.f32 %v4183, %v4212
      %v4227 = vadd.f32 %v4192, %v4212
      %v4228 = vadd.f32 %v4201, %v4212
      %v4229 = vadd.f32 %v4210, %v4212
      %v4230 = vmax.f32 %v4214, 0.0
      %v4231 = vmax.f32 %v4215, 0.0
      %v4232 = vmax.f32 %v4216, 0.0
      %v4233 = vmax.f32 %v4217, 0.0
      %v4234 = vmax.f32 %v4218, 0.0
      %v4235 = vmax.f32 %v4219, 0.0
      %v4236 = vmax.f32 %v4220, 0.0
      %v4237 = vmax.f32 %v4221, 0.0
      %v4238 = vmax.f32 %v4222, 0.0
      %v4239 = vmax.f32 %v4223, 0.0
      %v4240 = vmax.f32 %v4224, 0.0
      %v4241 = vmax.f32 %v4225, 0.0
      %v4242 = vmax.f32 %v4226, 0.0
      %v4243 = vmax.f32 %v4227, 0.0
      %v4244 = vmax.f32 %v4228, 0.0
      %v4245 = vmax.f32 %v4229, 0.0
      %v4262 = vrot.slane %v4231, 7
      %v4263 = vsel %vm3304, %v4262, %v4230
      %v4264 = vrot.slane %v4232, 6
      %v4265 = vsel %vm3307, %v4264, %v4263
      %v4266 = vrot.slane %v4233, 5
      %v4267 = vsel %vm3310, %v4266, %v4265
      %v4268 = vrot.slane %v4235, 7
      %v4269 = vsel %vm3304, %v4268, %v4234
      %v4270 = vrot.slane %v4236, 6
      %v4271 = vsel %vm3307, %v4270, %v4269
      %v4272 = vrot.slane %v4237, 5
      %v4273 = vsel %vm3310, %v4272, %v4271
      %v4274 = vrot.slane %v4239, 7
      %v4275 = vsel %vm3304, %v4274, %v4238
      %v4276 = vrot.slane %v4240, 6
      %v4277 = vsel %vm3307, %v4276, %v4275
      %v4278 = vrot.slane %v4241, 5
      %v4279 = vsel %vm3310, %v4278, %v4277
      %v4280 = vrot.slane %v4243, 7
      %v4281 = vsel %vm3304, %v4280, %v4242
      %v4282 = vrot.slane %v4244, 6
      %v4283 = vsel %vm3307, %v4282, %v4281
      %v4284 = vrot.slane %v4245, 5
      %v4285 = vsel %vm3310, %v4284, %v4283
      %v4290 = vrot.slane %v4279, 4
      %vm4291 = vcmask 1047556
      %v4292 = vsel %vm4291, %v4290, %v4267
      %v4294 = vunpack.c.l.s4 1983009808
      %v4295 = vunpack.c.0.s8 %v4294
      %v4296 = vperm.slane %v4292, %v4295
      %v4297 = vrot.slane %v4285, 4
      %v4298 = vsel %vm4291, %v4297, %v4273
      %v4300 = vunpack.c.l.s4 1983009808
      %v4301 = vunpack.c.0.s8 %v4300
      %v4302 = vperm.slane %v4298, %v4301
      %v4303 = vrot.slane %v4302, 4
      %v4304 = vsel %vm4291, %v4303, %v4296
      %v4305 = vrot.slane %v4296, 4
      %v4306 = vsel %vm4291, %v4302, %v4305
      %v4308 = vunpack.c.l.s4 1934713408
      %v4309 = vunpack.c.0.s8 %v4308
      %v4310 = vperm.slane %v4304, %v4309
      %v4312 = vunpack.c.l.s4 1934713408
      %v4313 = vunpack.c.0.s8 %v4312
      %v4314 = vperm.slane %v4306, %v4313
      %v4315 = vrot.slane %v4310, 4
      %v4316 = vsel %vm4291, 0.0, %v4315
      %v4317 = vrot.slane %v4314, 4
      %v4318 = vsel %vm4291, 0.0, %v4317
      %4320 = vrot.lane.b32.xlu0 %v4316, 16
      %v4321 = vpop.permute.xlu0 %4320
      %4324 = vrot.lane.b32.xlu0 %v4314, 32
      %v4325 = vpop.permute.xlu0 %4324
      %4328 = vrot.lane.b32.xlu0 %v4318, 48
      %v4329 = vpop.permute.xlu0 %4328
      %vm4331 = vcmask 130048
      %v4332 = vsel %vm4331, %v4310, %v4321
      %vm4333 = vcmask 261120
      %v4334 = vsel %vm4333, %v4332, %v4325
      %vm4335 = vcmask 392192
      %v4336 = vsel %vm4335, %v4334, %v4329
      %vm4337 = vcmask 519168
      %4338 = vst.msk [vmem:[%s222] sm:$0xf] %vm4337, %v4336
      %p4339 = scmp.lt.s32.totalorder %s16, 1
      %s4340 = scalar_select %p4339, %s16, 1
      %s4341 = smul.addr %s4340, 4
      %s4342 = scalar_lea.vmem %s5, %s4341
      // Predicated region
      $region41: #{vgg_conv_forward.1} parent=39 // pred_check
        %p4343 = pneg %p144
      $region42: #{vgg_conv_forward.1} parent=39 // pred_check_branch
        %4345 = sbr.rel (%p4343) target = $region44
      $region43: #{vgg_conv_forward.1} parent=39 // pred_region
        _
      $region44: #{vgg_conv_forward.1} parent=39 // pred_fallthru
        _
    $region40: #{vgg_conv_forward.1} parent=5 // pred_fallthru
      _
    %p4346 = scmp.le.s32.totalorder 2, %s11
    // Predicated region
    $region45: #{vgg_conv_forward.1} parent=5 // pred_check
      %p4347 = pneg %p4346
    $region46: #{vgg_conv_forward.1} parent=5 // pred_check_branch
      %4349 = sbr.rel (%p4347) target = $region48
    $region47: #{vgg_conv_forward.1} parent=5 // pred_region
      %s4350 = ssub.s32 %s11, 2
      // Predicated region
      $region49: #{vgg_conv_forward.1} parent=47 // pred_check
        %p4351 = pneg %p150
      $region50: #{vgg_conv_forward.1} parent=47 // pred_check_branch
        %4353 = sbr.rel (%p4351) target = $region52
      $region51: #{vgg_conv_forward.1} parent=47 // pred_region
        %p4354 = scmp.lt.s32.totalorder %s17, 1
        %s4355 = scalar_select %p4354, %s17, 1
        %s4356 = smul.addr %s4355, 4
        %s4357 = scalar_lea.vmem %s5, %s4356
      $region52: #{vgg_conv_forward.1} parent=47 // pred_fallthru
        _
    $region48: #{vgg_conv_forward.1} parent=5 // pred_fallthru
      _
  $region6: #{vgg_conv_forward.1} parent=0 // loop_footer
    %s15 = sadd.s32 1, %s11
  $region7: #{vgg_conv_forward.1} parent=0 // loop_footer_branch
    %10 = sbr.rel target = $region3
  $region8: #{vgg_conv_forward.1} parent=0 // loop_exit
    _

</llo_original>
